<compile_context>
chip_gen: v7x
topology: tpu7x:2x2x1
jax: 0.10.0
libtpu: 0.0.40
codegen_flags: <defaults>
</compile_context>

<pallas_src>
import math
import numpy as np
import jax
import jax.numpy as jnp
from jax.experimental import pallas as pl
from jax.experimental.pallas import tpu as pltpu

NUM_CODES = 50
EMBED_DIM = 32
SEQ_LEN = 8
NUM_NUMERIC = 6
N_HEADS = 4
FF_DIM = 256
N_LAYERS = 2
N_CLASSES = 11
N_CLASSES_PAD = 128          # lane-dense final store; sliced to 11 in the wrapper
BATCH = 2
ROWS = BATCH * SEQ_LEN
HEAD_DIM = EMBED_DIM // N_HEADS
LN_EPS = 1e-5
NEG_INF = -1e30


def _layer_norm(v, w, b):
    mu = jnp.mean(v, axis=-1, keepdims=True)
    var = jnp.mean((v - mu) ** 2, axis=-1, keepdims=True)
    return (v - mu) * jax.lax.rsqrt(var + LN_EPS) * w + b


def transformer_classifier_kernel(
    x_ref, pos_ref, num_ref,
    wqkv_ref, wo_ref, w1_ref, w2_ref, lvec_ref,
    nw1_ref, nw2_ref, cw1p_ref, cw1n_ref, cw2_ref, gvec_ref,
    out_ref,
    attn_scr,
):
    f32 = jnp.float32
    scale = 1.0 / math.sqrt(HEAD_DIM)

    # embedding + positional embedding (embed_dropout is identity at inference)
    x = x_ref[...] + pos_ref[...]                                   # (ROWS, D)

    # Additive block-diagonal mask so one (ROWS, ROWS) score matmul per head covers
    # all batches at once (cross-batch scores -> -1e30 -> exp underflows to 0).
    ri = jax.lax.broadcasted_iota(jnp.int32, (ROWS, ROWS), 0)
    ci = jax.lax.broadcasted_iota(jnp.int32, (ROWS, ROWS), 1)
    same = None
    for b in range(BATCH):                                          # comparisons only
        r_in = (ri >= b * SEQ_LEN) & (ri < (b + 1) * SEQ_LEN)
        c_in = (ci >= b * SEQ_LEN) & (ci < (b + 1) * SEQ_LEN)
        blk = r_in & c_in
        same = blk if same is None else (same | blk)
    neg_mask = jnp.where(same, 0.0, NEG_INF).astype(f32)            # (ROWS, ROWS)

    # nn.TransformerEncoder, post-norm (norm_first=False), relu FFN
    for l in range(N_LAYERS):
        lv = lvec_ref[l]                                            # (8, FF_DIM) slab
        bqkv = lv[0:1, 0:3 * EMBED_DIM]
        bo = lv[1:2, 0:EMBED_DIM]
        b1 = lv[2:3, :]
        b2 = lv[3:4, 0:EMBED_DIM]
        ln1w = lv[4:5, 0:EMBED_DIM]
        ln1b = lv[5:6, 0:EMBED_DIM]
        ln2w = lv[6:7, 0:EMBED_DIM]
        ln2b = lv[7:8, 0:EMBED_DIM]

        # fused QKV projection: one matmul per layer
        qkv = jnp.dot(x, wqkv_ref[l], preferred_element_type=f32) + bqkv   # (ROWS, 3D)

        for h in range(N_HEADS):
            c = h * HEAD_DIM
            qh = qkv[:, c:c + HEAD_DIM]                                    # (ROWS, Hd)
            kh = qkv[:, EMBED_DIM + c:EMBED_DIM + c + HEAD_DIM]
            vh = qkv[:, 2 * EMBED_DIM + c:2 * EMBED_DIM + c + HEAD_DIM]
            # scores for both batches at once; contract last axes (no kh.T relayout)
            s = jax.lax.dot_general(qh, kh, (((1,), (1,)), ((), ())),
                                    preferred_element_type=f32)            # (ROWS, ROWS)
            s = s * scale + neg_mask
            s = s - jnp.max(s, axis=-1, keepdims=True)
            p = jnp.exp(s)
            p = p * pl.reciprocal(jnp.sum(p, axis=-1, keepdims=True))      # exact recip
            # cross-batch p entries are exactly 0, so one PV matmul is correct
            attn_scr[:, c:c + HEAD_DIM] = jnp.dot(p, vh,
                                                  preferred_element_type=f32)

        attn = jnp.dot(attn_scr[...], wo_ref[l], preferred_element_type=f32) + bo
        x = _layer_norm(x + attn, ln1w, ln1b)

        h1 = jnp.maximum(jnp.dot(x, w1_ref[l], preferred_element_type=f32) + b1, 0.0)
        h2 = jnp.dot(h1, w2_ref[l], preferred_element_type=f32) + b2
        x = _layer_norm(x + h2, ln2w, ln2b)

    # AdaptiveAvgPool1d(1): constant (BATCH, ROWS) averaging matrix on the MXU
    pr = jax.lax.broadcasted_iota(jnp.int32, (BATCH, ROWS), 0)
    pc = jax.lax.broadcasted_iota(jnp.int32, (BATCH, ROWS), 1)
    in_blk = (pc >= pr * SEQ_LEN) & (pc < (pr + 1) * SEQ_LEN)
    pool_mat = jnp.where(in_blk, 1.0 / SEQ_LEN, 0.0).astype(f32)
    pooled = jnp.dot(pool_mat, x, preferred_element_type=f32)       # (B, D)

    gv = gvec_ref[...]                                              # (8, FF_DIM) slab
    nb1 = gv[0:1, :]
    nb2 = gv[1:2, 0:EMBED_DIM]
    cb1 = gv[2:3, :]
    cb2 = gv[3:4, 0:N_CLASSES_PAD]

    # num_projection: Linear -> ReLU -> (Dropout=id) -> Linear
    n1 = jnp.maximum(jnp.dot(num_ref[...], nw1_ref[...],
                             preferred_element_type=f32) + nb1, 0.0)
    nproj = jnp.dot(n1, nw2_ref[...], preferred_element_type=f32) + nb2    # (B, D)

    # classifier on concat([pooled, nproj]) without the lane concat:
    # comb @ cw1 == pooled @ cw1_pool + nproj @ cw1_num
    c1 = jnp.maximum(
        jnp.dot(pooled, cw1p_ref[...], preferred_element_type=f32)
        + jnp.dot(nproj, cw1n_ref[...], preferred_element_type=f32) + cb1, 0.0)
    out_ref[...] = jnp.dot(c1, cw2_ref[...], preferred_element_type=f32) + cb2


def make_params(key):
    keys = iter(jax.random.split(key, 64))

    def nrm(shape, scale=0.05):
        return scale * jax.random.normal(next(keys), shape, dtype=jnp.float32)

    def stack(shape, scale=0.05):
        return jnp.stack([nrm(shape, scale) for _ in range(N_LAYERS)])

    p = {}
    emb = nrm((NUM_CODES, EMBED_DIM), 1.0)
    p["embedding"] = emb.at[0].set(0.0)               # padding_idx=0 -> zero row
    p["pos"] = nrm((1, SEQ_LEN, EMBED_DIM), 0.02)

    # transformer layers, weights stored (in, out); Q/K/V fused along the out axis
    p["wqkv"] = stack((EMBED_DIM, 3 * EMBED_DIM))
    p["bqkv"] = stack((1, 3 * EMBED_DIM))
    p["wo"] = stack((EMBED_DIM, EMBED_DIM))
    p["bo"] = stack((1, EMBED_DIM))
    p["w1"] = stack((EMBED_DIM, FF_DIM))
    p["b1"] = stack((1, FF_DIM))
    p["w2"] = stack((FF_DIM, EMBED_DIM))
    p["b2"] = stack((1, EMBED_DIM))
    p["ln1w"] = jnp.ones((N_LAYERS, 1, EMBED_DIM), jnp.float32)
    p["ln1b"] = jnp.zeros((N_LAYERS, 1, EMBED_DIM), jnp.float32)
    p["ln2w"] = jnp.ones((N_LAYERS, 1, EMBED_DIM), jnp.float32)
    p["ln2b"] = jnp.zeros((N_LAYERS, 1, EMBED_DIM), jnp.float32)

    # num_projection
    p["nw1"] = nrm((NUM_NUMERIC, FF_DIM))
    p["nb1"] = nrm((1, FF_DIM))
    p["nw2"] = nrm((FF_DIM, EMBED_DIM))
    p["nb2"] = nrm((1, EMBED_DIM))

    # classifier (cw1 pre-split so the kernel needs no lane concat)
    p["cw1_pool"] = nrm((EMBED_DIM, FF_DIM))
    p["cw1_num"] = nrm((EMBED_DIM, FF_DIM))
    p["cb1"] = nrm((1, FF_DIM))
    p["cw2"] = nrm((FF_DIM, N_CLASSES))
    p["cb2"] = nrm((1, N_CLASSES))

    # ---- packed kernel-layout params (fewer, tile-dense DMAs) ----
    lvec = jnp.zeros((N_LAYERS, 8, FF_DIM), jnp.float32)
    lvec = lvec.at[:, 0, :3 * EMBED_DIM].set(p["bqkv"][:, 0, :])
    lvec = lvec.at[:, 1, :EMBED_DIM].set(p["bo"][:, 0, :])
    lvec = lvec.at[:, 2, :].set(p["b1"][:, 0, :])
    lvec = lvec.at[:, 3, :EMBED_DIM].set(p["b2"][:, 0, :])
    lvec = lvec.at[:, 4, :EMBED_DIM].set(p["ln1w"][:, 0, :])
    lvec = lvec.at[:, 5, :EMBED_DIM].set(p["ln1b"][:, 0, :])
    lvec = lvec.at[:, 6, :EMBED_DIM].set(p["ln2w"][:, 0, :])
    lvec = lvec.at[:, 7, :EMBED_DIM].set(p["ln2b"][:, 0, :])
    p["lvec"] = lvec

    gvec = jnp.zeros((8, FF_DIM), jnp.float32)
    gvec = gvec.at[0, :].set(p["nb1"][0])
    gvec = gvec.at[1, :EMBED_DIM].set(p["nb2"][0])
    gvec = gvec.at[2, :].set(p["cb1"][0])
    gvec = gvec.at[3, :N_CLASSES].set(p["cb2"][0])
    p["gvec"] = gvec

    p["cw2_pad"] = jnp.zeros((FF_DIM, N_CLASSES_PAD),
                             jnp.float32).at[:, :N_CLASSES].set(p["cw2"])
    return p


def forward(params, seq, num):
    # glue: embedding gather + flatten; all heavy compute runs inside the kernel
    x = jnp.take(params["embedding"], seq, axis=0)                        # (B, S, D)
    x_flat = x.reshape(ROWS, EMBED_DIM)
    pos_flat = jnp.broadcast_to(
        params["pos"], (BATCH, SEQ_LEN, EMBED_DIM)).reshape(ROWS, EMBED_DIM)

    inputs = [
        x_flat, pos_flat, num,
        params["wqkv"], params["wo"], params["w1"], params["w2"], params["lvec"],
        params["nw1"], params["nw2"], params["cw1_pool"], params["cw1_num"],
        params["cw2_pad"], params["gvec"],
    ]
    vmem_spec = pl.BlockSpec(memory_space=pltpu.MemorySpace.VMEM)
    # TODO(synk): at BATCH=2 a batch grid over both v7x TensorCores is not worth the
    # per-step overhead; add grid=(BATCH,) + dimension_semantics=("parallel",) if the
    # batch size ever grows.
    out = pl.pallas_call(
        transformer_classifier_kernel,
        out_shape=jax.ShapeDtypeStruct((BATCH, N_CLASSES_PAD), jnp.float32),
        in_specs=[vmem_spec] * len(inputs),
        out_specs=vmem_spec,
        scratch_shapes=[pltpu.VMEM((ROWS, EMBED_DIM), jnp.float32)],
    )(*inputs)
    return out[:, :N_CLASSES]


def reference(params, seq, num):
    # pure-JAX reference of the same forward pass (eval mode), for correctness check
    x = jnp.take(params["embedding"], seq, axis=0) + params["pos"]        # (B, S, D)
    scale = 1.0 / math.sqrt(HEAD_DIM)
    for l in range(N_LAYERS):
        qkv = x @ params["wqkv"][l] + params["bqkv"][l]
        q = qkv[..., :EMBED_DIM]
        k = qkv[..., EMBED_DIM:2 * EMBED_DIM]
        v = qkv[..., 2 * EMBED_DIM:]
        qh = q.reshape(BATCH, SEQ_LEN, N_HEADS, HEAD_DIM).transpose(0, 2, 1, 3)
        kh = k.reshape(BATCH, SEQ_LEN, N_HEADS, HEAD_DIM).transpose(0, 2, 1, 3)
        vh = v.reshape(BATCH, SEQ_LEN, N_HEADS, HEAD_DIM).transpose(0, 2, 1, 3)
        s = jnp.einsum("bhqd,bhkd->bhqk", qh, kh) * scale
        p = jax.nn.softmax(s, axis=-1)
        o = jnp.einsum("bhqk,bhkd->bhqd", p, vh).transpose(0, 2, 1, 3)
        o = o.reshape(BATCH, SEQ_LEN, EMBED_DIM)
        attn = o @ params["wo"][l] + params["bo"][l]
        x = _layer_norm(x + attn, params["ln1w"][l], params["ln1b"][l])
        h = jnp.maximum(x @ params["w1"][l] + params["b1"][l], 0.0)
        h = h @ params["w2"][l] + params["b2"][l]
        x = _layer_norm(x + h, params["ln2w"][l], params["ln2b"][l])
    pooled = jnp.mean(x, axis=1)                                          # (B, D)
    n1 = jnp.maximum(num @ params["nw1"] + params["nb1"], 0.0)
    nproj = n1 @ params["nw2"] + params["nb2"]
    c1 = jnp.maximum(pooled @ params["cw1_pool"]
                     + nproj @ params["cw1_num"] + params["cb1"], 0.0)
    return c1 @ params["cw2"] + params["cb2"]


if __name__ == "__main__":
    key = jax.random.PRNGKey(0)
    kp, ks, kn = jax.random.split(key, 3)
    params = make_params(kp)
    seq = jax.random.randint(ks, (BATCH, SEQ_LEN), 0, NUM_CODES, dtype=jnp.int32)
    num = jax.random.normal(kn, (BATCH, NUM_NUMERIC), dtype=jnp.float32)

    out = jax.block_until_ready(forward(params, seq, num))
    assert out.shape == (BATCH, N_CLASSES)

    ref = reference(params, seq, num)
    np.testing.assert_allclose(np.asarray(out), np.asarray(ref), rtol=1e-4, atol=1e-4)
    print("KERNEL_OK")
</pallas_src>

<mosaic_0001>
module attributes {stable_mosaic.version = 11 : i64} {
  func.func @transformer_classifier_kernel(%arg0: memref<16x32xf32, #tpu.memory_space<vmem>>, %arg1: memref<16x32xf32, #tpu.memory_space<vmem>>, %arg2: memref<2x6xf32, #tpu.memory_space<vmem>>, %arg3: memref<2x32x96xf32, #tpu.memory_space<vmem>>, %arg4: memref<2x32x32xf32, #tpu.memory_space<vmem>>, %arg5: memref<2x32x256xf32, #tpu.memory_space<vmem>>, %arg6: memref<2x256x32xf32, #tpu.memory_space<vmem>>, %arg7: memref<2x8x256xf32, #tpu.memory_space<vmem>>, %arg8: memref<6x256xf32, #tpu.memory_space<vmem>>, %arg9: memref<256x32xf32, #tpu.memory_space<vmem>>, %arg10: memref<32x256xf32, #tpu.memory_space<vmem>>, %arg11: memref<32x256xf32, #tpu.memory_space<vmem>>, %arg12: memref<256x128xf32, #tpu.memory_space<vmem>>, %arg13: memref<8x256xf32, #tpu.memory_space<vmem>>, %arg14: memref<2x128xf32, #tpu.memory_space<vmem>>, %arg15: memref<16x32xf32, #tpu.memory_space<vmem>>) attributes {dimension_semantics = [], scalar_prefetch = 0 : i64, scratch_operands = 1 : i64, tpu.core_type = #tpu.core_type<tc>} {
    %c0 = arith.constant 0 : index
    %c0_0 = arith.constant 0 : index
    %0 = vector.load %arg0[%c0, %c0_0] : memref<16x32xf32, #tpu.memory_space<vmem>>, vector<16x32xf32>
    %c0_1 = arith.constant 0 : index
    %c0_2 = arith.constant 0 : index
    %1 = vector.load %arg1[%c0_1, %c0_2] : memref<16x32xf32, #tpu.memory_space<vmem>>, vector<16x32xf32>
    %2 = arith.addf %0, %1 : vector<16x32xf32>
    %3 = tpu.iota {dimensions = array<i32: 0>} : vector<16x16xi32>
    %4 = tpu.iota {dimensions = array<i32: 1>} : vector<16x16xi32>
    %c0_i32 = arith.constant 0 : i32
    %5 = vector.broadcast %c0_i32 : i32 to vector<16x16xi32>
    %6 = arith.cmpi sge, %3, %5 : vector<16x16xi32>
    %c8_i32 = arith.constant 8 : i32
    %7 = vector.broadcast %c8_i32 : i32 to vector<16x16xi32>
    %8 = arith.cmpi slt, %3, %7 : vector<16x16xi32>
    %9 = arith.andi %6, %8 : vector<16x16xi1>
    %c0_i32_3 = arith.constant 0 : i32
    %10 = vector.broadcast %c0_i32_3 : i32 to vector<16x16xi32>
    %11 = arith.cmpi sge, %4, %10 : vector<16x16xi32>
    %c8_i32_4 = arith.constant 8 : i32
    %12 = vector.broadcast %c8_i32_4 : i32 to vector<16x16xi32>
    %13 = arith.cmpi slt, %4, %12 : vector<16x16xi32>
    %14 = arith.andi %11, %13 : vector<16x16xi1>
    %15 = arith.andi %9, %14 : vector<16x16xi1>
    %c8_i32_5 = arith.constant 8 : i32
    %16 = vector.broadcast %c8_i32_5 : i32 to vector<16x16xi32>
    %17 = arith.cmpi sge, %3, %16 : vector<16x16xi32>
    %c16_i32 = arith.constant 16 : i32
    %18 = vector.broadcast %c16_i32 : i32 to vector<16x16xi32>
    %19 = arith.cmpi slt, %3, %18 : vector<16x16xi32>
    %20 = arith.andi %17, %19 : vector<16x16xi1>
    %c8_i32_6 = arith.constant 8 : i32
    %21 = vector.broadcast %c8_i32_6 : i32 to vector<16x16xi32>
    %22 = arith.cmpi sge, %4, %21 : vector<16x16xi32>
    %c16_i32_7 = arith.constant 16 : i32
    %23 = vector.broadcast %c16_i32_7 : i32 to vector<16x16xi32>
    %24 = arith.cmpi slt, %4, %23 : vector<16x16xi32>
    %25 = arith.andi %22, %24 : vector<16x16xi1>
    %26 = arith.andi %20, %25 : vector<16x16xi1>
    %27 = arith.ori %15, %26 : vector<16x16xi1>
    %cst = arith.constant 0.000000e+00 : f32
    %cst_8 = arith.constant -1.000000e+30 : f32
    %28 = vector.broadcast %cst : f32 to vector<16x16xf32>
    %29 = vector.broadcast %cst_8 : f32 to vector<16x16xf32>
    %30 = arith.select %27, %28, %29 : vector<16x16xi1>, vector<16x16xf32>
    %c0_9 = arith.constant 0 : index
    %c0_10 = arith.constant 0 : index
    %c0_11 = arith.constant 0 : index
    %31 = vector.load %arg7[%c0_9, %c0_10, %c0_11] : memref<2x8x256xf32, #tpu.memory_space<vmem>>, vector<1x8x256xf32>
    %32 = vector.shape_cast %31 : vector<1x8x256xf32> to vector<8x256xf32>
    %33 = vector.extract_strided_slice %32 {offsets = [0, 0], sizes = [1, 96], strides = [1, 1]} : vector<8x256xf32> to vector<1x96xf32>
    %34 = vector.extract_strided_slice %32 {offsets = [1, 0], sizes = [1, 32], strides = [1, 1]} : vector<8x256xf32> to vector<1x32xf32>
    %35 = vector.extract_strided_slice %32 {offsets = [2, 0], sizes = [1, 256], strides = [1, 1]} : vector<8x256xf32> to vector<1x256xf32>
    %36 = vector.extract_strided_slice %32 {offsets = [3, 0], sizes = [1, 32], strides = [1, 1]} : vector<8x256xf32> to vector<1x32xf32>
    %37 = vector.extract_strided_slice %32 {offsets = [4, 0], sizes = [1, 32], strides = [1, 1]} : vector<8x256xf32> to vector<1x32xf32>
    %38 = vector.extract_strided_slice %32 {offsets = [5, 0], sizes = [1, 32], strides = [1, 1]} : vector<8x256xf32> to vector<1x32xf32>
    %39 = vector.extract_strided_slice %32 {offsets = [6, 0], sizes = [1, 32], strides = [1, 1]} : vector<8x256xf32> to vector<1x32xf32>
    %40 = vector.extract_strided_slice %32 {offsets = [7, 0], sizes = [1, 32], strides = [1, 1]} : vector<8x256xf32> to vector<1x32xf32>
    %c0_12 = arith.constant 0 : index
    %c0_13 = arith.constant 0 : index
    %c0_14 = arith.constant 0 : index
    %41 = vector.load %arg3[%c0_12, %c0_13, %c0_14] : memref<2x32x96xf32, #tpu.memory_space<vmem>>, vector<1x32x96xf32>
    %42 = vector.shape_cast %41 : vector<1x32x96xf32> to vector<32x96xf32>
    %cst_15 = arith.constant dense<0.000000e+00> : vector<16x96xf32>
    %43 = tpu.matmul %2, %42, %cst_15 {dimension_numbers = #tpu.dot_dimension_numbers<[1], [0], [0], [1], [0, 0, 1, 1], [], []>} : vector<16x32xf32>, vector<32x96xf32>, vector<16x96xf32> -> vector<16x96xf32>
    %44 = vector.broadcast %33 : vector<1x96xf32> to vector<16x96xf32>
    %45 = arith.addf %43, %44 : vector<16x96xf32>
    %46 = vector.extract_strided_slice %45 {offsets = [0, 0], sizes = [16, 8], strides = [1, 1]} : vector<16x96xf32> to vector<16x8xf32>
    %47 = vector.extract_strided_slice %45 {offsets = [0, 32], sizes = [16, 8], strides = [1, 1]} : vector<16x96xf32> to vector<16x8xf32>
    %48 = vector.extract_strided_slice %45 {offsets = [0, 64], sizes = [16, 8], strides = [1, 1]} : vector<16x96xf32> to vector<16x8xf32>
    %cst_16 = arith.constant dense<0.000000e+00> : vector<16x16xf32>
    %49 = tpu.matmul %46, %47, %cst_16 {dimension_numbers = #tpu.dot_dimension_numbers<[1], [1], [0], [0], [0, 0, 1, 0], [], []>} : vector<16x8xf32>, vector<16x8xf32>, vector<16x16xf32> -> vector<16x16xf32>
    %cst_17 = arith.constant 0.353553385 : f32
    %50 = vector.broadcast %cst_17 : f32 to vector<16x16xf32>
    %51 = arith.mulf %49, %50 : vector<16x16xf32>
    %52 = arith.addf %51, %30 : vector<16x16xf32>
    %cst_18 = arith.constant dense<0xFF800000> : vector<16xf32>
    %53 = vector.multi_reduction <maximumf>, %52, %cst_18 [1] : vector<16x16xf32> to vector<16xf32>
    %54 = vector.shape_cast %53 : vector<16xf32> to vector<16x1xf32>
    %55 = vector.broadcast %54 : vector<16x1xf32> to vector<16x16xf32>
    %56 = arith.subf %52, %55 : vector<16x16xf32>
    %57 = math.exp %56 : vector<16x16xf32>
    %cst_19 = arith.constant dense<0.000000e+00> : vector<16xf32>
    %58 = vector.multi_reduction <add>, %57, %cst_19 [1] : vector<16x16xf32> to vector<16xf32>
    %59 = vector.shape_cast %58 : vector<16xf32> to vector<16x1xf32>
    %60 = tpu.reciprocal %59 : vector<16x1xf32> -> vector<16x1xf32>
    %61 = vector.broadcast %60 : vector<16x1xf32> to vector<16x16xf32>
    %62 = arith.mulf %57, %61 : vector<16x16xf32>
    %cst_20 = arith.constant dense<0.000000e+00> : vector<16x8xf32>
    %63 = tpu.matmul %62, %48, %cst_20 {dimension_numbers = #tpu.dot_dimension_numbers<[1], [0], [0], [1], [0, 0, 1, 1], [], []>} : vector<16x16xf32>, vector<16x8xf32>, vector<16x8xf32> -> vector<16x8xf32>
    %c0_21 = arith.constant 0 : index
    %c0_22 = arith.constant 0 : index
    %64 = vector.load %arg15[%c0_21, %c0_22] : memref<16x32xf32, #tpu.memory_space<vmem>>, vector<16x8xf32>
    tpu.vector_store %arg15[%c0_21, %c0_22], %63 {strides = array<i32>} : memref<16x32xf32, #tpu.memory_space<vmem>>, vector<16x8xf32>,
    %65 = vector.extract_strided_slice %45 {offsets = [0, 8], sizes = [16, 8], strides = [1, 1]} : vector<16x96xf32> to vector<16x8xf32>
    %66 = vector.extract_strided_slice %45 {offsets = [0, 40], sizes = [16, 8], strides = [1, 1]} : vector<16x96xf32> to vector<16x8xf32>
    %67 = vector.extract_strided_slice %45 {offsets = [0, 72], sizes = [16, 8], strides = [1, 1]} : vector<16x96xf32> to vector<16x8xf32>
    %cst_23 = arith.constant dense<0.000000e+00> : vector<16x16xf32>
    %68 = tpu.matmul %65, %66, %cst_23 {dimension_numbers = #tpu.dot_dimension_numbers<[1], [1], [0], [0], [0, 0, 1, 0], [], []>} : vector<16x8xf32>, vector<16x8xf32>, vector<16x16xf32> -> vector<16x16xf32>
    %cst_24 = arith.constant 0.353553385 : f32
    %69 = vector.broadcast %cst_24 : f32 to vector<16x16xf32>
    %70 = arith.mulf %68, %69 : vector<16x16xf32>
    %71 = arith.addf %70, %30 : vector<16x16xf32>
    %cst_25 = arith.constant dense<0xFF800000> : vector<16xf32>
    %72 = vector.multi_reduction <maximumf>, %71, %cst_25 [1] : vector<16x16xf32> to vector<16xf32>
    %73 = vector.shape_cast %72 : vector<16xf32> to vector<16x1xf32>
    %74 = vector.broadcast %73 : vector<16x1xf32> to vector<16x16xf32>
    %75 = arith.subf %71, %74 : vector<16x16xf32>
    %76 = math.exp %75 : vector<16x16xf32>
    %cst_26 = arith.constant dense<0.000000e+00> : vector<16xf32>
    %77 = vector.multi_reduction <add>, %76, %cst_26 [1] : vector<16x16xf32> to vector<16xf32>
    %78 = vector.shape_cast %77 : vector<16xf32> to vector<16x1xf32>
    %79 = tpu.reciprocal %78 : vector<16x1xf32> -> vector<16x1xf32>
    %80 = vector.broadcast %79 : vector<16x1xf32> to vector<16x16xf32>
    %81 = arith.mulf %76, %80 : vector<16x16xf32>
    %cst_27 = arith.constant dense<0.000000e+00> : vector<16x8xf32>
    %82 = tpu.matmul %81, %67, %cst_27 {dimension_numbers = #tpu.dot_dimension_numbers<[1], [0], [0], [1], [0, 0, 1, 1], [], []>} : vector<16x16xf32>, vector<16x8xf32>, vector<16x8xf32> -> vector<16x8xf32>
    %c0_28 = arith.constant 0 : index
    %c8 = arith.constant 8 : index
    %83 = vector.load %arg15[%c0_28, %c8] : memref<16x32xf32, #tpu.memory_space<vmem>>, vector<16x8xf32>
    tpu.vector_store %arg15[%c0_28, %c8], %82 {strides = array<i32>} : memref<16x32xf32, #tpu.memory_space<vmem>>, vector<16x8xf32>,
    %84 = vector.extract_strided_slice %45 {offsets = [0, 16], sizes = [16, 8], strides = [1, 1]} : vector<16x96xf32> to vector<16x8xf32>
    %85 = vector.extract_strided_slice %45 {offsets = [0, 48], sizes = [16, 8], strides = [1, 1]} : vector<16x96xf32> to vector<16x8xf32>
    %86 = vector.extract_strided_slice %45 {offsets = [0, 80], sizes = [16, 8], strides = [1, 1]} : vector<16x96xf32> to vector<16x8xf32>
    %cst_29 = arith.constant dense<0.000000e+00> : vector<16x16xf32>
    %87 = tpu.matmul %84, %85, %cst_29 {dimension_numbers = #tpu.dot_dimension_numbers<[1], [1], [0], [0], [0, 0, 1, 0], [], []>} : vector<16x8xf32>, vector<16x8xf32>, vector<16x16xf32> -> vector<16x16xf32>
    %cst_30 = arith.constant 0.353553385 : f32
    %88 = vector.broadcast %cst_30 : f32 to vector<16x16xf32>
    %89 = arith.mulf %87, %88 : vector<16x16xf32>
    %90 = arith.addf %89, %30 : vector<16x16xf32>
    %cst_31 = arith.constant dense<0xFF800000> : vector<16xf32>
    %91 = vector.multi_reduction <maximumf>, %90, %cst_31 [1] : vector<16x16xf32> to vector<16xf32>
    %92 = vector.shape_cast %91 : vector<16xf32> to vector<16x1xf32>
    %93 = vector.broadcast %92 : vector<16x1xf32> to vector<16x16xf32>
    %94 = arith.subf %90, %93 : vector<16x16xf32>
    %95 = math.exp %94 : vector<16x16xf32>
    %cst_32 = arith.constant dense<0.000000e+00> : vector<16xf32>
    %96 = vector.multi_reduction <add>, %95, %cst_32 [1] : vector<16x16xf32> to vector<16xf32>
    %97 = vector.shape_cast %96 : vector<16xf32> to vector<16x1xf32>
    %98 = tpu.reciprocal %97 : vector<16x1xf32> -> vector<16x1xf32>
    %99 = vector.broadcast %98 : vector<16x1xf32> to vector<16x16xf32>
    %100 = arith.mulf %95, %99 : vector<16x16xf32>
    %cst_33 = arith.constant dense<0.000000e+00> : vector<16x8xf32>
    %101 = tpu.matmul %100, %86, %cst_33 {dimension_numbers = #tpu.dot_dimension_numbers<[1], [0], [0], [1], [0, 0, 1, 1], [], []>} : vector<16x16xf32>, vector<16x8xf32>, vector<16x8xf32> -> vector<16x8xf32>
    %c0_34 = arith.constant 0 : index
    %c16 = arith.constant 16 : index
    %102 = vector.load %arg15[%c0_34, %c16] : memref<16x32xf32, #tpu.memory_space<vmem>>, vector<16x8xf32>
    tpu.vector_store %arg15[%c0_34, %c16], %101 {strides = array<i32>} : memref<16x32xf32, #tpu.memory_space<vmem>>, vector<16x8xf32>,
    %103 = vector.extract_strided_slice %45 {offsets = [0, 24], sizes = [16, 8], strides = [1, 1]} : vector<16x96xf32> to vector<16x8xf32>
    %104 = vector.extract_strided_slice %45 {offsets = [0, 56], sizes = [16, 8], strides = [1, 1]} : vector<16x96xf32> to vector<16x8xf32>
    %105 = vector.extract_strided_slice %45 {offsets = [0, 88], sizes = [16, 8], strides = [1, 1]} : vector<16x96xf32> to vector<16x8xf32>
    %cst_35 = arith.constant dense<0.000000e+00> : vector<16x16xf32>
    %106 = tpu.matmul %103, %104, %cst_35 {dimension_numbers = #tpu.dot_dimension_numbers<[1], [1], [0], [0], [0, 0, 1, 0], [], []>} : vector<16x8xf32>, vector<16x8xf32>, vector<16x16xf32> -> vector<16x16xf32>
    %cst_36 = arith.constant 0.353553385 : f32
    %107 = vector.broadcast %cst_36 : f32 to vector<16x16xf32>
    %108 = arith.mulf %106, %107 : vector<16x16xf32>
    %109 = arith.addf %108, %30 : vector<16x16xf32>
    %cst_37 = arith.constant dense<0xFF800000> : vector<16xf32>
    %110 = vector.multi_reduction <maximumf>, %109, %cst_37 [1] : vector<16x16xf32> to vector<16xf32>
    %111 = vector.shape_cast %110 : vector<16xf32> to vector<16x1xf32>
    %112 = vector.broadcast %111 : vector<16x1xf32> to vector<16x16xf32>
    %113 = arith.subf %109, %112 : vector<16x16xf32>
    %114 = math.exp %113 : vector<16x16xf32>
    %cst_38 = arith.constant dense<0.000000e+00> : vector<16xf32>
    %115 = vector.multi_reduction <add>, %114, %cst_38 [1] : vector<16x16xf32> to vector<16xf32>
    %116 = vector.shape_cast %115 : vector<16xf32> to vector<16x1xf32>
    %117 = tpu.reciprocal %116 : vector<16x1xf32> -> vector<16x1xf32>
    %118 = vector.broadcast %117 : vector<16x1xf32> to vector<16x16xf32>
    %119 = arith.mulf %114, %118 : vector<16x16xf32>
    %cst_39 = arith.constant dense<0.000000e+00> : vector<16x8xf32>
    %120 = tpu.matmul %119, %105, %cst_39 {dimension_numbers = #tpu.dot_dimension_numbers<[1], [0], [0], [1], [0, 0, 1, 1], [], []>} : vector<16x16xf32>, vector<16x8xf32>, vector<16x8xf32> -> vector<16x8xf32>
    %c0_40 = arith.constant 0 : index
    %c24 = arith.constant 24 : index
    %121 = vector.load %arg15[%c0_40, %c24] : memref<16x32xf32, #tpu.memory_space<vmem>>, vector<16x8xf32>
    tpu.vector_store %arg15[%c0_40, %c24], %120 {strides = array<i32>} : memref<16x32xf32, #tpu.memory_space<vmem>>, vector<16x8xf32>,
    %c0_41 = arith.constant 0 : index
    %c0_42 = arith.constant 0 : index
    %122 = vector.load %arg15[%c0_41, %c0_42] : memref<16x32xf32, #tpu.memory_space<vmem>>, vector<16x32xf32>
    %c0_43 = arith.constant 0 : index
    %c0_44 = arith.constant 0 : index
    %c0_45 = arith.constant 0 : index
    %123 = vector.load %arg4[%c0_43, %c0_44, %c0_45] : memref<2x32x32xf32, #tpu.memory_space<vmem>>, vector<1x32x32xf32>
    %124 = vector.shape_cast %123 : vector<1x32x32xf32> to vector<32x32xf32>
    %cst_46 = arith.constant dense<0.000000e+00> : vector<16x32xf32>
    %125 = tpu.matmul %122, %124, %cst_46 {dimension_numbers = #tpu.dot_dimension_numbers<[1], [0], [0], [1], [0, 0, 1, 1], [], []>} : vector<16x32xf32>, vector<32x32xf32>, vector<16x32xf32> -> vector<16x32xf32>
    %126 = vector.broadcast %34 : vector<1x32xf32> to vector<16x32xf32>
    %127 = arith.addf %125, %126 : vector<16x32xf32>
    %128 = arith.addf %2, %127 : vector<16x32xf32>
    %cst_47 = arith.constant dense<0.000000e+00> : vector<16xf32>
    %129 = vector.multi_reduction <add>, %128, %cst_47 [1] : vector<16x32xf32> to vector<16xf32>
    %130 = vector.shape_cast %129 : vector<16xf32> to vector<16x1xf32>
    %cst_48 = arith.constant 3.200000e+01 : f32
    %131 = vector.broadcast %cst_48 : f32 to vector<16x1xf32>
    %132 = arith.divf %130, %131 : vector<16x1xf32>
    %133 = vector.broadcast %132 : vector<16x1xf32> to vector<16x32xf32>
    %134 = arith.subf %128, %133 : vector<16x32xf32>
    %135 = arith.mulf %134, %134 : vector<16x32xf32>
    %cst_49 = arith.constant dense<0.000000e+00> : vector<16xf32>
    %136 = vector.multi_reduction <add>, %135, %cst_49 [1] : vector<16x32xf32> to vector<16xf32>
    %137 = vector.shape_cast %136 : vector<16xf32> to vector<16x1xf32>
    %cst_50 = arith.constant 3.200000e+01 : f32
    %138 = vector.broadcast %cst_50 : f32 to vector<16x1xf32>
    %139 = arith.divf %137, %138 : vector<16x1xf32>
    %140 = vector.broadcast %132 : vector<16x1xf32> to vector<16x32xf32>
    %141 = arith.subf %128, %140 : vector<16x32xf32>
    %cst_51 = arith.constant 9.99999974E-6 : f32
    %142 = vector.broadcast %cst_51 : f32 to vector<16x1xf32>
    %143 = arith.addf %139, %142 : vector<16x1xf32>
    %144 = math.rsqrt %143 : vector<16x1xf32>
    %145 = vector.broadcast %144 : vector<16x1xf32> to vector<16x32xf32>
    %146 = arith.mulf %141, %145 : vector<16x32xf32>
    %147 = vector.broadcast %37 : vector<1x32xf32> to vector<16x32xf32>
    %148 = arith.mulf %146, %147 : vector<16x32xf32>
    %149 = vector.broadcast %38 : vector<1x32xf32> to vector<16x32xf32>
    %150 = arith.addf %148, %149 : vector<16x32xf32>
    %c0_52 = arith.constant 0 : index
    %c0_53 = arith.constant 0 : index
    %c0_54 = arith.constant 0 : index
    %151 = vector.load %arg5[%c0_52, %c0_53, %c0_54] : memref<2x32x256xf32, #tpu.memory_space<vmem>>, vector<1x32x256xf32>
    %152 = vector.shape_cast %151 : vector<1x32x256xf32> to vector<32x256xf32>
    %cst_55 = arith.constant dense<0.000000e+00> : vector<16x256xf32>
    %153 = tpu.matmul %150, %152, %cst_55 {dimension_numbers = #tpu.dot_dimension_numbers<[1], [0], [0], [1], [0, 0, 1, 1], [], []>} : vector<16x32xf32>, vector<32x256xf32>, vector<16x256xf32> -> vector<16x256xf32>
    %154 = vector.broadcast %35 : vector<1x256xf32> to vector<16x256xf32>
    %155 = arith.addf %153, %154 : vector<16x256xf32>
    %cst_56 = arith.constant 0.000000e+00 : f32
    %156 = vector.broadcast %cst_56 : f32 to vector<16x256xf32>
    %157 = arith.maximumf %155, %156 : vector<16x256xf32>
    %c0_57 = arith.constant 0 : index
    %c0_58 = arith.constant 0 : index
    %c0_59 = arith.constant 0 : index
    %158 = vector.load %arg6[%c0_57, %c0_58, %c0_59] : memref<2x256x32xf32, #tpu.memory_space<vmem>>, vector<1x256x32xf32>
    %159 = vector.shape_cast %158 : vector<1x256x32xf32> to vector<256x32xf32>
    %cst_60 = arith.constant dense<0.000000e+00> : vector<16x32xf32>
    %160 = tpu.matmul %157, %159, %cst_60 {dimension_numbers = #tpu.dot_dimension_numbers<[1], [0], [0], [1], [0, 0, 1, 1], [], []>} : vector<16x256xf32>, vector<256x32xf32>, vector<16x32xf32> -> vector<16x32xf32>
    %161 = vector.broadcast %36 : vector<1x32xf32> to vector<16x32xf32>
    %162 = arith.addf %160, %161 : vector<16x32xf32>
    %163 = arith.addf %150, %162 : vector<16x32xf32>
    %cst_61 = arith.constant dense<0.000000e+00> : vector<16xf32>
    %164 = vector.multi_reduction <add>, %163, %cst_61 [1] : vector<16x32xf32> to vector<16xf32>
    %165 = vector.shape_cast %164 : vector<16xf32> to vector<16x1xf32>
    %cst_62 = arith.constant 3.200000e+01 : f32
    %166 = vector.broadcast %cst_62 : f32 to vector<16x1xf32>
    %167 = arith.divf %165, %166 : vector<16x1xf32>
    %168 = vector.broadcast %167 : vector<16x1xf32> to vector<16x32xf32>
    %169 = arith.subf %163, %168 : vector<16x32xf32>
    %170 = arith.mulf %169, %169 : vector<16x32xf32>
    %cst_63 = arith.constant dense<0.000000e+00> : vector<16xf32>
    %171 = vector.multi_reduction <add>, %170, %cst_63 [1] : vector<16x32xf32> to vector<16xf32>
    %172 = vector.shape_cast %171 : vector<16xf32> to vector<16x1xf32>
    %cst_64 = arith.constant 3.200000e+01 : f32
    %173 = vector.broadcast %cst_64 : f32 to vector<16x1xf32>
    %174 = arith.divf %172, %173 : vector<16x1xf32>
    %175 = vector.broadcast %167 : vector<16x1xf32> to vector<16x32xf32>
    %176 = arith.subf %163, %175 : vector<16x32xf32>
    %cst_65 = arith.constant 9.99999974E-6 : f32
    %177 = vector.broadcast %cst_65 : f32 to vector<16x1xf32>
    %178 = arith.addf %174, %177 : vector<16x1xf32>
    %179 = math.rsqrt %178 : vector<16x1xf32>
    %180 = vector.broadcast %179 : vector<16x1xf32> to vector<16x32xf32>
    %181 = arith.mulf %176, %180 : vector<16x32xf32>
    %182 = vector.broadcast %39 : vector<1x32xf32> to vector<16x32xf32>
    %183 = arith.mulf %181, %182 : vector<16x32xf32>
    %184 = vector.broadcast %40 : vector<1x32xf32> to vector<16x32xf32>
    %185 = arith.addf %183, %184 : vector<16x32xf32>
    %c1 = arith.constant 1 : index
    %c0_66 = arith.constant 0 : index
    %c0_67 = arith.constant 0 : index
    %186 = vector.load %arg7[%c1, %c0_66, %c0_67] : memref<2x8x256xf32, #tpu.memory_space<vmem>>, vector<1x8x256xf32>
    %187 = vector.shape_cast %186 : vector<1x8x256xf32> to vector<8x256xf32>
    %188 = vector.extract_strided_slice %187 {offsets = [0, 0], sizes = [1, 96], strides = [1, 1]} : vector<8x256xf32> to vector<1x96xf32>
    %189 = vector.extract_strided_slice %187 {offsets = [1, 0], sizes = [1, 32], strides = [1, 1]} : vector<8x256xf32> to vector<1x32xf32>
    %190 = vector.extract_strided_slice %187 {offsets = [2, 0], sizes = [1, 256], strides = [1, 1]} : vector<8x256xf32> to vector<1x256xf32>
    %191 = vector.extract_strided_slice %187 {offsets = [3, 0], sizes = [1, 32], strides = [1, 1]} : vector<8x256xf32> to vector<1x32xf32>
    %192 = vector.extract_strided_slice %187 {offsets = [4, 0], sizes = [1, 32], strides = [1, 1]} : vector<8x256xf32> to vector<1x32xf32>
    %193 = vector.extract_strided_slice %187 {offsets = [5, 0], sizes = [1, 32], strides = [1, 1]} : vector<8x256xf32> to vector<1x32xf32>
    %194 = vector.extract_strided_slice %187 {offsets = [6, 0], sizes = [1, 32], strides = [1, 1]} : vector<8x256xf32> to vector<1x32xf32>
    %195 = vector.extract_strided_slice %187 {offsets = [7, 0], sizes = [1, 32], strides = [1, 1]} : vector<8x256xf32> to vector<1x32xf32>
    %c1_68 = arith.constant 1 : index
    %c0_69 = arith.constant 0 : index
    %c0_70 = arith.constant 0 : index
    %196 = vector.load %arg3[%c1_68, %c0_69, %c0_70] : memref<2x32x96xf32, #tpu.memory_space<vmem>>, vector<1x32x96xf32>
    %197 = vector.shape_cast %196 : vector<1x32x96xf32> to vector<32x96xf32>
    %cst_71 = arith.constant dense<0.000000e+00> : vector<16x96xf32>
    %198 = tpu.matmul %185, %197, %cst_71 {dimension_numbers = #tpu.dot_dimension_numbers<[1], [0], [0], [1], [0, 0, 1, 1], [], []>} : vector<16x32xf32>, vector<32x96xf32>, vector<16x96xf32> -> vector<16x96xf32>
    %199 = vector.broadcast %188 : vector<1x96xf32> to vector<16x96xf32>
    %200 = arith.addf %198, %199 : vector<16x96xf32>
    %201 = vector.extract_strided_slice %200 {offsets = [0, 0], sizes = [16, 8], strides = [1, 1]} : vector<16x96xf32> to vector<16x8xf32>
    %202 = vector.extract_strided_slice %200 {offsets = [0, 32], sizes = [16, 8], strides = [1, 1]} : vector<16x96xf32> to vector<16x8xf32>
    %203 = vector.extract_strided_slice %200 {offsets = [0, 64], sizes = [16, 8], strides = [1, 1]} : vector<16x96xf32> to vector<16x8xf32>
    %cst_72 = arith.constant dense<0.000000e+00> : vector<16x16xf32>
    %204 = tpu.matmul %201, %202, %cst_72 {dimension_numbers = #tpu.dot_dimension_numbers<[1], [1], [0], [0], [0, 0, 1, 0], [], []>} : vector<16x8xf32>, vector<16x8xf32>, vector<16x16xf32> -> vector<16x16xf32>
    %cst_73 = arith.constant 0.353553385 : f32
    %205 = vector.broadcast %cst_73 : f32 to vector<16x16xf32>
    %206 = arith.mulf %204, %205 : vector<16x16xf32>
    %207 = arith.addf %206, %30 : vector<16x16xf32>
    %cst_74 = arith.constant dense<0xFF800000> : vector<16xf32>
    %208 = vector.multi_reduction <maximumf>, %207, %cst_74 [1] : vector<16x16xf32> to vector<16xf32>
    %209 = vector.shape_cast %208 : vector<16xf32> to vector<16x1xf32>
    %210 = vector.broadcast %209 : vector<16x1xf32> to vector<16x16xf32>
    %211 = arith.subf %207, %210 : vector<16x16xf32>
    %212 = math.exp %211 : vector<16x16xf32>
    %cst_75 = arith.constant dense<0.000000e+00> : vector<16xf32>
    %213 = vector.multi_reduction <add>, %212, %cst_75 [1] : vector<16x16xf32> to vector<16xf32>
    %214 = vector.shape_cast %213 : vector<16xf32> to vector<16x1xf32>
    %215 = tpu.reciprocal %214 : vector<16x1xf32> -> vector<16x1xf32>
    %216 = vector.broadcast %215 : vector<16x1xf32> to vector<16x16xf32>
    %217 = arith.mulf %212, %216 : vector<16x16xf32>
    %cst_76 = arith.constant dense<0.000000e+00> : vector<16x8xf32>
    %218 = tpu.matmul %217, %203, %cst_76 {dimension_numbers = #tpu.dot_dimension_numbers<[1], [0], [0], [1], [0, 0, 1, 1], [], []>} : vector<16x16xf32>, vector<16x8xf32>, vector<16x8xf32> -> vector<16x8xf32>
    %c0_77 = arith.constant 0 : index
    %c0_78 = arith.constant 0 : index
    %219 = vector.load %arg15[%c0_77, %c0_78] : memref<16x32xf32, #tpu.memory_space<vmem>>, vector<16x8xf32>
    tpu.vector_store %arg15[%c0_77, %c0_78], %218 {strides = array<i32>} : memref<16x32xf32, #tpu.memory_space<vmem>>, vector<16x8xf32>,
    %220 = vector.extract_strided_slice %200 {offsets = [0, 8], sizes = [16, 8], strides = [1, 1]} : vector<16x96xf32> to vector<16x8xf32>
    %221 = vector.extract_strided_slice %200 {offsets = [0, 40], sizes = [16, 8], strides = [1, 1]} : vector<16x96xf32> to vector<16x8xf32>
    %222 = vector.extract_strided_slice %200 {offsets = [0, 72], sizes = [16, 8], strides = [1, 1]} : vector<16x96xf32> to vector<16x8xf32>
    %cst_79 = arith.constant dense<0.000000e+00> : vector<16x16xf32>
    %223 = tpu.matmul %220, %221, %cst_79 {dimension_numbers = #tpu.dot_dimension_numbers<[1], [1], [0], [0], [0, 0, 1, 0], [], []>} : vector<16x8xf32>, vector<16x8xf32>, vector<16x16xf32> -> vector<16x16xf32>
    %cst_80 = arith.constant 0.353553385 : f32
    %224 = vector.broadcast %cst_80 : f32 to vector<16x16xf32>
    %225 = arith.mulf %223, %224 : vector<16x16xf32>
    %226 = arith.addf %225, %30 : vector<16x16xf32>
    %cst_81 = arith.constant dense<0xFF800000> : vector<16xf32>
    %227 = vector.multi_reduction <maximumf>, %226, %cst_81 [1] : vector<16x16xf32> to vector<16xf32>
    %228 = vector.shape_cast %227 : vector<16xf32> to vector<16x1xf32>
    %229 = vector.broadcast %228 : vector<16x1xf32> to vector<16x16xf32>
    %230 = arith.subf %226, %229 : vector<16x16xf32>
    %231 = math.exp %230 : vector<16x16xf32>
    %cst_82 = arith.constant dense<0.000000e+00> : vector<16xf32>
    %232 = vector.multi_reduction <add>, %231, %cst_82 [1] : vector<16x16xf32> to vector<16xf32>
    %233 = vector.shape_cast %232 : vector<16xf32> to vector<16x1xf32>
    %234 = tpu.reciprocal %233 : vector<16x1xf32> -> vector<16x1xf32>
    %235 = vector.broadcast %234 : vector<16x1xf32> to vector<16x16xf32>
    %236 = arith.mulf %231, %235 : vector<16x16xf32>
    %cst_83 = arith.constant dense<0.000000e+00> : vector<16x8xf32>
    %237 = tpu.matmul %236, %222, %cst_83 {dimension_numbers = #tpu.dot_dimension_numbers<[1], [0], [0], [1], [0, 0, 1, 1], [], []>} : vector<16x16xf32>, vector<16x8xf32>, vector<16x8xf32> -> vector<16x8xf32>
    %c0_84 = arith.constant 0 : index
    %c8_85 = arith.constant 8 : index
    %238 = vector.load %arg15[%c0_84, %c8_85] : memref<16x32xf32, #tpu.memory_space<vmem>>, vector<16x8xf32>
    tpu.vector_store %arg15[%c0_84, %c8_85], %237 {strides = array<i32>} : memref<16x32xf32, #tpu.memory_space<vmem>>, vector<16x8xf32>,
    %239 = vector.extract_strided_slice %200 {offsets = [0, 16], sizes = [16, 8], strides = [1, 1]} : vector<16x96xf32> to vector<16x8xf32>
    %240 = vector.extract_strided_slice %200 {offsets = [0, 48], sizes = [16, 8], strides = [1, 1]} : vector<16x96xf32> to vector<16x8xf32>
    %241 = vector.extract_strided_slice %200 {offsets = [0, 80], sizes = [16, 8], strides = [1, 1]} : vector<16x96xf32> to vector<16x8xf32>
    %cst_86 = arith.constant dense<0.000000e+00> : vector<16x16xf32>
    %242 = tpu.matmul %239, %240, %cst_86 {dimension_numbers = #tpu.dot_dimension_numbers<[1], [1], [0], [0], [0, 0, 1, 0], [], []>} : vector<16x8xf32>, vector<16x8xf32>, vector<16x16xf32> -> vector<16x16xf32>
    %cst_87 = arith.constant 0.353553385 : f32
    %243 = vector.broadcast %cst_87 : f32 to vector<16x16xf32>
    %244 = arith.mulf %242, %243 : vector<16x16xf32>
    %245 = arith.addf %244, %30 : vector<16x16xf32>
    %cst_88 = arith.constant dense<0xFF800000> : vector<16xf32>
    %246 = vector.multi_reduction <maximumf>, %245, %cst_88 [1] : vector<16x16xf32> to vector<16xf32>
    %247 = vector.shape_cast %246 : vector<16xf32> to vector<16x1xf32>
    %248 = vector.broadcast %247 : vector<16x1xf32> to vector<16x16xf32>
    %249 = arith.subf %245, %248 : vector<16x16xf32>
    %250 = math.exp %249 : vector<16x16xf32>
    %cst_89 = arith.constant dense<0.000000e+00> : vector<16xf32>
    %251 = vector.multi_reduction <add>, %250, %cst_89 [1] : vector<16x16xf32> to vector<16xf32>
    %252 = vector.shape_cast %251 : vector<16xf32> to vector<16x1xf32>
    %253 = tpu.reciprocal %252 : vector<16x1xf32> -> vector<16x1xf32>
    %254 = vector.broadcast %253 : vector<16x1xf32> to vector<16x16xf32>
    %255 = arith.mulf %250, %254 : vector<16x16xf32>
    %cst_90 = arith.constant dense<0.000000e+00> : vector<16x8xf32>
    %256 = tpu.matmul %255, %241, %cst_90 {dimension_numbers = #tpu.dot_dimension_numbers<[1], [0], [0], [1], [0, 0, 1, 1], [], []>} : vector<16x16xf32>, vector<16x8xf32>, vector<16x8xf32> -> vector<16x8xf32>
    %c0_91 = arith.constant 0 : index
    %c16_92 = arith.constant 16 : index
    %257 = vector.load %arg15[%c0_91, %c16_92] : memref<16x32xf32, #tpu.memory_space<vmem>>, vector<16x8xf32>
    tpu.vector_store %arg15[%c0_91, %c16_92], %256 {strides = array<i32>} : memref<16x32xf32, #tpu.memory_space<vmem>>, vector<16x8xf32>,
    %258 = vector.extract_strided_slice %200 {offsets = [0, 24], sizes = [16, 8], strides = [1, 1]} : vector<16x96xf32> to vector<16x8xf32>
    %259 = vector.extract_strided_slice %200 {offsets = [0, 56], sizes = [16, 8], strides = [1, 1]} : vector<16x96xf32> to vector<16x8xf32>
    %260 = vector.extract_strided_slice %200 {offsets = [0, 88], sizes = [16, 8], strides = [1, 1]} : vector<16x96xf32> to vector<16x8xf32>
    %cst_93 = arith.constant dense<0.000000e+00> : vector<16x16xf32>
    %261 = tpu.matmul %258, %259, %cst_93 {dimension_numbers = #tpu.dot_dimension_numbers<[1], [1], [0], [0], [0, 0, 1, 0], [], []>} : vector<16x8xf32>, vector<16x8xf32>, vector<16x16xf32> -> vector<16x16xf32>
    %cst_94 = arith.constant 0.353553385 : f32
    %262 = vector.broadcast %cst_94 : f32 to vector<16x16xf32>
    %263 = arith.mulf %261, %262 : vector<16x16xf32>
    %264 = arith.addf %263, %30 : vector<16x16xf32>
    %cst_95 = arith.constant dense<0xFF800000> : vector<16xf32>
    %265 = vector.multi_reduction <maximumf>, %264, %cst_95 [1] : vector<16x16xf32> to vector<16xf32>
    %266 = vector.shape_cast %265 : vector<16xf32> to vector<16x1xf32>
    %267 = vector.broadcast %266 : vector<16x1xf32> to vector<16x16xf32>
    %268 = arith.subf %264, %267 : vector<16x16xf32>
    %269 = math.exp %268 : vector<16x16xf32>
    %cst_96 = arith.constant dense<0.000000e+00> : vector<16xf32>
    %270 = vector.multi_reduction <add>, %269, %cst_96 [1] : vector<16x16xf32> to vector<16xf32>
    %271 = vector.shape_cast %270 : vector<16xf32> to vector<16x1xf32>
    %272 = tpu.reciprocal %271 : vector<16x1xf32> -> vector<16x1xf32>
    %273 = vector.broadcast %272 : vector<16x1xf32> to vector<16x16xf32>
    %274 = arith.mulf %269, %273 : vector<16x16xf32>
    %cst_97 = arith.constant dense<0.000000e+00> : vector<16x8xf32>
    %275 = tpu.matmul %274, %260, %cst_97 {dimension_numbers = #tpu.dot_dimension_numbers<[1], [0], [0], [1], [0, 0, 1, 1], [], []>} : vector<16x16xf32>, vector<16x8xf32>, vector<16x8xf32> -> vector<16x8xf32>
    %c0_98 = arith.constant 0 : index
    %c24_99 = arith.constant 24 : index
    %276 = vector.load %arg15[%c0_98, %c24_99] : memref<16x32xf32, #tpu.memory_space<vmem>>, vector<16x8xf32>
    tpu.vector_store %arg15[%c0_98, %c24_99], %275 {strides = array<i32>} : memref<16x32xf32, #tpu.memory_space<vmem>>, vector<16x8xf32>,
    %c0_100 = arith.constant 0 : index
    %c0_101 = arith.constant 0 : index
    %277 = vector.load %arg15[%c0_100, %c0_101] : memref<16x32xf32, #tpu.memory_space<vmem>>, vector<16x32xf32>
    %c1_102 = arith.constant 1 : index
    %c0_103 = arith.constant 0 : index
    %c0_104 = arith.constant 0 : index
    %278 = vector.load %arg4[%c1_102, %c0_103, %c0_104] : memref<2x32x32xf32, #tpu.memory_space<vmem>>, vector<1x32x32xf32>
    %279 = vector.shape_cast %278 : vector<1x32x32xf32> to vector<32x32xf32>
    %cst_105 = arith.constant dense<0.000000e+00> : vector<16x32xf32>
    %280 = tpu.matmul %277, %279, %cst_105 {dimension_numbers = #tpu.dot_dimension_numbers<[1], [0], [0], [1], [0, 0, 1, 1], [], []>} : vector<16x32xf32>, vector<32x32xf32>, vector<16x32xf32> -> vector<16x32xf32>
    %281 = vector.broadcast %189 : vector<1x32xf32> to vector<16x32xf32>
    %282 = arith.addf %280, %281 : vector<16x32xf32>
    %283 = arith.addf %185, %282 : vector<16x32xf32>
    %cst_106 = arith.constant dense<0.000000e+00> : vector<16xf32>
    %284 = vector.multi_reduction <add>, %283, %cst_106 [1] : vector<16x32xf32> to vector<16xf32>
    %285 = vector.shape_cast %284 : vector<16xf32> to vector<16x1xf32>
    %cst_107 = arith.constant 3.200000e+01 : f32
    %286 = vector.broadcast %cst_107 : f32 to vector<16x1xf32>
    %287 = arith.divf %285, %286 : vector<16x1xf32>
    %288 = vector.broadcast %287 : vector<16x1xf32> to vector<16x32xf32>
    %289 = arith.subf %283, %288 : vector<16x32xf32>
    %290 = arith.mulf %289, %289 : vector<16x32xf32>
    %cst_108 = arith.constant dense<0.000000e+00> : vector<16xf32>
    %291 = vector.multi_reduction <add>, %290, %cst_108 [1] : vector<16x32xf32> to vector<16xf32>
    %292 = vector.shape_cast %291 : vector<16xf32> to vector<16x1xf32>
    %cst_109 = arith.constant 3.200000e+01 : f32
    %293 = vector.broadcast %cst_109 : f32 to vector<16x1xf32>
    %294 = arith.divf %292, %293 : vector<16x1xf32>
    %295 = vector.broadcast %287 : vector<16x1xf32> to vector<16x32xf32>
    %296 = arith.subf %283, %295 : vector<16x32xf32>
    %cst_110 = arith.constant 9.99999974E-6 : f32
    %297 = vector.broadcast %cst_110 : f32 to vector<16x1xf32>
    %298 = arith.addf %294, %297 : vector<16x1xf32>
    %299 = math.rsqrt %298 : vector<16x1xf32>
    %300 = vector.broadcast %299 : vector<16x1xf32> to vector<16x32xf32>
    %301 = arith.mulf %296, %300 : vector<16x32xf32>
    %302 = vector.broadcast %192 : vector<1x32xf32> to vector<16x32xf32>
    %303 = arith.mulf %301, %302 : vector<16x32xf32>
    %304 = vector.broadcast %193 : vector<1x32xf32> to vector<16x32xf32>
    %305 = arith.addf %303, %304 : vector<16x32xf32>
    %c1_111 = arith.constant 1 : index
    %c0_112 = arith.constant 0 : index
    %c0_113 = arith.constant 0 : index
    %306 = vector.load %arg5[%c1_111, %c0_112, %c0_113] : memref<2x32x256xf32, #tpu.memory_space<vmem>>, vector<1x32x256xf32>
    %307 = vector.shape_cast %306 : vector<1x32x256xf32> to vector<32x256xf32>
    %cst_114 = arith.constant dense<0.000000e+00> : vector<16x256xf32>
    %308 = tpu.matmul %305, %307, %cst_114 {dimension_numbers = #tpu.dot_dimension_numbers<[1], [0], [0], [1], [0, 0, 1, 1], [], []>} : vector<16x32xf32>, vector<32x256xf32>, vector<16x256xf32> -> vector<16x256xf32>
    %309 = vector.broadcast %190 : vector<1x256xf32> to vector<16x256xf32>
    %310 = arith.addf %308, %309 : vector<16x256xf32>
    %cst_115 = arith.constant 0.000000e+00 : f32
    %311 = vector.broadcast %cst_115 : f32 to vector<16x256xf32>
    %312 = arith.maximumf %310, %311 : vector<16x256xf32>
    %c1_116 = arith.constant 1 : index
    %c0_117 = arith.constant 0 : index
    %c0_118 = arith.constant 0 : index
    %313 = vector.load %arg6[%c1_116, %c0_117, %c0_118] : memref<2x256x32xf32, #tpu.memory_space<vmem>>, vector<1x256x32xf32>
    %314 = vector.shape_cast %313 : vector<1x256x32xf32> to vector<256x32xf32>
    %cst_119 = arith.constant dense<0.000000e+00> : vector<16x32xf32>
    %315 = tpu.matmul %312, %314, %cst_119 {dimension_numbers = #tpu.dot_dimension_numbers<[1], [0], [0], [1], [0, 0, 1, 1], [], []>} : vector<16x256xf32>, vector<256x32xf32>, vector<16x32xf32> -> vector<16x32xf32>
    %316 = vector.broadcast %191 : vector<1x32xf32> to vector<16x32xf32>
    %317 = arith.addf %315, %316 : vector<16x32xf32>
    %318 = arith.addf %305, %317 : vector<16x32xf32>
    %cst_120 = arith.constant dense<0.000000e+00> : vector<16xf32>
    %319 = vector.multi_reduction <add>, %318, %cst_120 [1] : vector<16x32xf32> to vector<16xf32>
    %320 = vector.shape_cast %319 : vector<16xf32> to vector<16x1xf32>
    %cst_121 = arith.constant 3.200000e+01 : f32
    %321 = vector.broadcast %cst_121 : f32 to vector<16x1xf32>
    %322 = arith.divf %320, %321 : vector<16x1xf32>
    %323 = vector.broadcast %322 : vector<16x1xf32> to vector<16x32xf32>
    %324 = arith.subf %318, %323 : vector<16x32xf32>
    %325 = arith.mulf %324, %324 : vector<16x32xf32>
    %cst_122 = arith.constant dense<0.000000e+00> : vector<16xf32>
    %326 = vector.multi_reduction <add>, %325, %cst_122 [1] : vector<16x32xf32> to vector<16xf32>
    %327 = vector.shape_cast %326 : vector<16xf32> to vector<16x1xf32>
    %cst_123 = arith.constant 3.200000e+01 : f32
    %328 = vector.broadcast %cst_123 : f32 to vector<16x1xf32>
    %329 = arith.divf %327, %328 : vector<16x1xf32>
    %330 = vector.broadcast %322 : vector<16x1xf32> to vector<16x32xf32>
    %331 = arith.subf %318, %330 : vector<16x32xf32>
    %cst_124 = arith.constant 9.99999974E-6 : f32
    %332 = vector.broadcast %cst_124 : f32 to vector<16x1xf32>
    %333 = arith.addf %329, %332 : vector<16x1xf32>
    %334 = math.rsqrt %333 : vector<16x1xf32>
    %335 = vector.broadcast %334 : vector<16x1xf32> to vector<16x32xf32>
    %336 = arith.mulf %331, %335 : vector<16x32xf32>
    %337 = vector.broadcast %194 : vector<1x32xf32> to vector<16x32xf32>
    %338 = arith.mulf %336, %337 : vector<16x32xf32>
    %339 = vector.broadcast %195 : vector<1x32xf32> to vector<16x32xf32>
    %340 = arith.addf %338, %339 : vector<16x32xf32>
    %341 = tpu.iota {dimensions = array<i32: 0>} : vector<2x16xi32>
    %342 = tpu.iota {dimensions = array<i32: 1>} : vector<2x16xi32>
    %c8_i32_125 = arith.constant 8 : i32
    %343 = vector.broadcast %c8_i32_125 : i32 to vector<2x16xi32>
    %344 = arith.muli %341, %343 : vector<2x16xi32>
    %345 = arith.cmpi sge, %342, %344 : vector<2x16xi32>
    %c1_i32 = arith.constant 1 : i32
    %346 = vector.broadcast %c1_i32 : i32 to vector<2x16xi32>
    %347 = arith.addi %341, %346 : vector<2x16xi32>
    %c8_i32_126 = arith.constant 8 : i32
    %348 = vector.broadcast %c8_i32_126 : i32 to vector<2x16xi32>
    %349 = arith.muli %347, %348 : vector<2x16xi32>
    %350 = arith.cmpi slt, %342, %349 : vector<2x16xi32>
    %351 = arith.andi %345, %350 : vector<2x16xi1>
    %cst_127 = arith.constant 1.250000e-01 : f32
    %cst_128 = arith.constant 0.000000e+00 : f32
    %352 = vector.broadcast %cst_127 : f32 to vector<2x16xf32>
    %353 = vector.broadcast %cst_128 : f32 to vector<2x16xf32>
    %354 = arith.select %351, %352, %353 : vector<2x16xi1>, vector<2x16xf32>
    %cst_129 = arith.constant dense<0.000000e+00> : vector<2x32xf32>
    %355 = tpu.matmul %354, %340, %cst_129 {dimension_numbers = #tpu.dot_dimension_numbers<[1], [0], [0], [1], [0, 0, 1, 1], [], []>} : vector<2x16xf32>, vector<16x32xf32>, vector<2x32xf32> -> vector<2x32xf32>
    %c0_130 = arith.constant 0 : index
    %c0_131 = arith.constant 0 : index
    %356 = vector.load %arg13[%c0_130, %c0_131] : memref<8x256xf32, #tpu.memory_space<vmem>>, vector<8x256xf32>
    %357 = vector.extract_strided_slice %356 {offsets = [0, 0], sizes = [1, 256], strides = [1, 1]} : vector<8x256xf32> to vector<1x256xf32>
    %358 = vector.extract_strided_slice %356 {offsets = [1, 0], sizes = [1, 32], strides = [1, 1]} : vector<8x256xf32> to vector<1x32xf32>
    %359 = vector.extract_strided_slice %356 {offsets = [2, 0], sizes = [1, 256], strides = [1, 1]} : vector<8x256xf32> to vector<1x256xf32>
    %360 = vector.extract_strided_slice %356 {offsets = [3, 0], sizes = [1, 128], strides = [1, 1]} : vector<8x256xf32> to vector<1x128xf32>
    %c0_132 = arith.constant 0 : index
    %c0_133 = arith.constant 0 : index
    %361 = vector.load %arg2[%c0_132, %c0_133] : memref<2x6xf32, #tpu.memory_space<vmem>>, vector<2x6xf32>
    %c0_134 = arith.constant 0 : index
    %c0_135 = arith.constant 0 : index
    %362 = vector.load %arg8[%c0_134, %c0_135] : memref<6x256xf32, #tpu.memory_space<vmem>>, vector<6x256xf32>
    %cst_136 = arith.constant dense<0.000000e+00> : vector<2x256xf32>
    %363 = tpu.matmul %361, %362, %cst_136 {dimension_numbers = #tpu.dot_dimension_numbers<[1], [0], [0], [1], [0, 0, 1, 1], [], []>} : vector<2x6xf32>, vector<6x256xf32>, vector<2x256xf32> -> vector<2x256xf32>
    %364 = vector.broadcast %357 : vector<1x256xf32> to vector<2x256xf32>
    %365 = arith.addf %363, %364 : vector<2x256xf32>
    %cst_137 = arith.constant 0.000000e+00 : f32
    %366 = vector.broadcast %cst_137 : f32 to vector<2x256xf32>
    %367 = arith.maximumf %365, %366 : vector<2x256xf32>
    %c0_138 = arith.constant 0 : index
    %c0_139 = arith.constant 0 : index
    %368 = vector.load %arg9[%c0_138, %c0_139] : memref<256x32xf32, #tpu.memory_space<vmem>>, vector<256x32xf32>
    %cst_140 = arith.constant dense<0.000000e+00> : vector<2x32xf32>
    %369 = tpu.matmul %367, %368, %cst_140 {dimension_numbers = #tpu.dot_dimension_numbers<[1], [0], [0], [1], [0, 0, 1, 1], [], []>} : vector<2x256xf32>, vector<256x32xf32>, vector<2x32xf32> -> vector<2x32xf32>
    %370 = vector.broadcast %358 : vector<1x32xf32> to vector<2x32xf32>
    %371 = arith.addf %369, %370 : vector<2x32xf32>
    %c0_141 = arith.constant 0 : index
    %c0_142 = arith.constant 0 : index
    %372 = vector.load %arg10[%c0_141, %c0_142] : memref<32x256xf32, #tpu.memory_space<vmem>>, vector<32x256xf32>
    %cst_143 = arith.constant dense<0.000000e+00> : vector<2x256xf32>
    %373 = tpu.matmul %355, %372, %cst_143 {dimension_numbers = #tpu.dot_dimension_numbers<[1], [0], [0], [1], [0, 0, 1, 1], [], []>} : vector<2x32xf32>, vector<32x256xf32>, vector<2x256xf32> -> vector<2x256xf32>
    %c0_144 = arith.constant 0 : index
    %c0_145 = arith.constant 0 : index
    %374 = vector.load %arg11[%c0_144, %c0_145] : memref<32x256xf32, #tpu.memory_space<vmem>>, vector<32x256xf32>
    %cst_146 = arith.constant dense<0.000000e+00> : vector<2x256xf32>
    %375 = tpu.matmul %371, %374, %cst_146 {dimension_numbers = #tpu.dot_dimension_numbers<[1], [0], [0], [1], [0, 0, 1, 1], [], []>} : vector<2x32xf32>, vector<32x256xf32>, vector<2x256xf32> -> vector<2x256xf32>
    %376 = arith.addf %373, %375 : vector<2x256xf32>
    %377 = vector.broadcast %359 : vector<1x256xf32> to vector<2x256xf32>
    %378 = arith.addf %376, %377 : vector<2x256xf32>
    %cst_147 = arith.constant 0.000000e+00 : f32
    %379 = vector.broadcast %cst_147 : f32 to vector<2x256xf32>
    %380 = arith.maximumf %378, %379 : vector<2x256xf32>
    %c0_148 = arith.constant 0 : index
    %c0_149 = arith.constant 0 : index
    %381 = vector.load %arg12[%c0_148, %c0_149] : memref<256x128xf32, #tpu.memory_space<vmem>>, vector<256x128xf32>
    %cst_150 = arith.constant dense<0.000000e+00> : vector<2x128xf32>
    %382 = tpu.matmul %380, %381, %cst_150 {dimension_numbers = #tpu.dot_dimension_numbers<[1], [0], [0], [1], [0, 0, 1, 1], [], []>} : vector<2x256xf32>, vector<256x128xf32>, vector<2x128xf32> -> vector<2x128xf32>
    %383 = vector.broadcast %360 : vector<1x128xf32> to vector<2x128xf32>
    %384 = arith.addf %382, %383 : vector<2x128xf32>
    %c0_151 = arith.constant 0 : index
    %c0_152 = arith.constant 0 : index
    %385 = vector.load %arg14[%c0_151, %c0_152] : memref<2x128xf32, #tpu.memory_space<vmem>>, vector<2x128xf32>
    tpu.vector_store %arg14[%c0_151, %c0_152], %384 {strides = array<i32>} : memref<2x128xf32, #tpu.memory_space<vmem>>, vector<2x128xf32>,
    return
  }
}

</mosaic_0001>

<llo_original>
// kernel: tpu_custom_call.1
$region0: #{tpu_custom_call.1}
  #allocation0 [shape = 'u32[]', space=smem, size = 0x4, offset = 0x4, fixed_abs, tag = 'smem constant byte address 0x4 - core index']
  #allocation1 [shape = 'u32[144,128]{1,0:T(1,128)}', space=vmem, size = 0x12000, scoped, tag = 'internal scratch']
  #allocation2 [shape = 'f32[16,32]{1,0:T(8,128)}', space=vmem, size = 0x2000, scoped, tag = 'scratch operand']
  %s0 = inlined_call_operand.vmem [shape: f32[16,32], index: 0, kind: input, shape index: {}]
  %s1 = inlined_call_operand.vmem [shape: f32[16,32], index: 1, kind: input, shape index: {}]
  %s2 = inlined_call_operand.vmem [shape: f32[2,6], index: 2, kind: input, shape index: {}]
  %s3 = inlined_call_operand.vmem [shape: f32[2,32,96], index: 3, kind: input, shape index: {}]
  %s4 = inlined_call_operand.vmem [shape: f32[2,32,32], index: 4, kind: input, shape index: {}]
  %s5 = inlined_call_operand.vmem [shape: f32[2,32,256], index: 5, kind: input, shape index: {}]
  %s6 = inlined_call_operand.vmem [shape: f32[2,256,32], index: 6, kind: input, shape index: {}]
  %s7 = inlined_call_operand.vmem [shape: f32[2,8,256], index: 7, kind: input, shape index: {}]
  %s8 = inlined_call_operand.vmem [shape: f32[6,256], index: 8, kind: input, shape index: {}]
  %s9 = inlined_call_operand.vmem [shape: f32[256,32], index: 9, kind: input, shape index: {}]
  %s10 = inlined_call_operand.vmem [shape: f32[32,256], index: 10, kind: input, shape index: {}]
  %s11 = inlined_call_operand.vmem [shape: f32[32,256], index: 11, kind: input, shape index: {}]
  %s12 = inlined_call_operand.vmem [shape: f32[256,128], index: 12, kind: input, shape index: {}]
  %s13 = inlined_call_operand.vmem [shape: f32[8,256], index: 13, kind: input, shape index: {}]
  %s14 = inlined_call_operand.hbm [shape: f32[2,128], index: 14, kind: output, shape index: {}]
  %s15 = sld [smem:[#allocation0]]
  $region66: #{tpu_custom_call.1} parent=0
    _
  %s17 = ssub.s32 1, %s15
  %s18 = scalar_select 0, %s17, %s15
  $region1: #{tpu_custom_call.1} parent=0
    #allocation3 [shape = 'u8[1024]{0}', space=vmem, size = 0x400, scoped, tag = 'output window, operand 0, single buffered']
    #allocation4 [shape = 's32[1]{0}', space=sflag, size = 0x4, scoped, tag = 'scoped memory for tpu_custom_call.1']
    %19 = vsyncpa [#allocation4], 0
    // Predicated region
    $region2: #{tpu_custom_call.1} parent=1 // pred_check
      _
    $region3: #{tpu_custom_call.1} parent=1 // pred_check_branch
      %21 = sbr.rel (0) target = $region5
    $region4: #{tpu_custom_call.1} parent=1 // pred_region
      _
    $region5: #{tpu_custom_call.1} parent=1 // pred_fallthru
      _
    // Predicated region
    $region6: #{tpu_custom_call.1} parent=1 // pred_check
      _
    $region7: #{tpu_custom_call.1} parent=1 // pred_check_branch
      %23 = sbr.rel (0) target = $region9
    $region8: #{tpu_custom_call.1} parent=1 // pred_region
      _
    $region9: #{tpu_custom_call.1} parent=1 // pred_fallthru
      _
    // Predicated region
    $region10: #{tpu_custom_call.1} parent=1 // pred_check
      _
    $region11: #{tpu_custom_call.1} parent=1 // pred_check_branch
      %25 = sbr.rel (0) target = $region13
    $region12: #{tpu_custom_call.1} parent=1 // pred_region
      _
    $region13: #{tpu_custom_call.1} parent=1 // pred_fallthru
      _
    // Predicated region
    $region14: #{tpu_custom_call.1} parent=1 // pred_check
      _
    $region15: #{tpu_custom_call.1} parent=1 // pred_check_branch
      %27 = sbr.rel (0) target = $region17
    $region16: #{tpu_custom_call.1} parent=1 // pred_region
      _
    $region17: #{tpu_custom_call.1} parent=1 // pred_fallthru
      _
    // Predicated region
    $region18: #{tpu_custom_call.1} parent=1 // pred_check
      _
    $region19: #{tpu_custom_call.1} parent=1 // pred_check_branch
      %29 = sbr.rel (0) target = $region21
    $region20: #{tpu_custom_call.1} parent=1 // pred_region
      _
    $region21: #{tpu_custom_call.1} parent=1 // pred_fallthru
      _
    // Predicated region
    $region22: #{tpu_custom_call.1} parent=1 // pred_check
      _
    $region23: #{tpu_custom_call.1} parent=1 // pred_check_branch
      %31 = sbr.rel (0) target = $region25
    $region24: #{tpu_custom_call.1} parent=1 // pred_region
      _
    $region25: #{tpu_custom_call.1} parent=1 // pred_fallthru
      _
    // Predicated region
    $region26: #{tpu_custom_call.1} parent=1 // pred_check
      _
    $region27: #{tpu_custom_call.1} parent=1 // pred_check_branch
      %33 = sbr.rel (0) target = $region29
    $region28: #{tpu_custom_call.1} parent=1 // pred_region
      _
    $region29: #{tpu_custom_call.1} parent=1 // pred_fallthru
      _
    // Predicated region
    $region30: #{tpu_custom_call.1} parent=1 // pred_check
      _
    $region31: #{tpu_custom_call.1} parent=1 // pred_check_branch
      %35 = sbr.rel (0) target = $region33
    $region32: #{tpu_custom_call.1} parent=1 // pred_region
      _
    $region33: #{tpu_custom_call.1} parent=1 // pred_fallthru
      _
    // Predicated region
    $region34: #{tpu_custom_call.1} parent=1 // pred_check
      _
    $region35: #{tpu_custom_call.1} parent=1 // pred_check_branch
      %37 = sbr.rel (0) target = $region37
    $region36: #{tpu_custom_call.1} parent=1 // pred_region
      _
    $region37: #{tpu_custom_call.1} parent=1 // pred_fallthru
      _
    // Predicated region
    $region38: #{tpu_custom_call.1} parent=1 // pred_check
      _
    $region39: #{tpu_custom_call.1} parent=1 // pred_check_branch
      %39 = sbr.rel (0) target = $region41
    $region40: #{tpu_custom_call.1} parent=1 // pred_region
      _
    $region41: #{tpu_custom_call.1} parent=1 // pred_fallthru
      _
    // Predicated region
    $region42: #{tpu_custom_call.1} parent=1 // pred_check
      _
    $region43: #{tpu_custom_call.1} parent=1 // pred_check_branch
      %41 = sbr.rel (0) target = $region45
    $region44: #{tpu_custom_call.1} parent=1 // pred_region
      _
    $region45: #{tpu_custom_call.1} parent=1 // pred_fallthru
      _
    // Predicated region
    $region46: #{tpu_custom_call.1} parent=1 // pred_check
      _
    $region47: #{tpu_custom_call.1} parent=1 // pred_check_branch
      %43 = sbr.rel (0) target = $region49
    $region48: #{tpu_custom_call.1} parent=1 // pred_region
      _
    $region49: #{tpu_custom_call.1} parent=1 // pred_fallthru
      _
    // Predicated region
    $region50: #{tpu_custom_call.1} parent=1 // pred_check
      _
    $region51: #{tpu_custom_call.1} parent=1 // pred_check_branch
      %45 = sbr.rel (0) target = $region53
    $region52: #{tpu_custom_call.1} parent=1 // pred_region
      _
    $region53: #{tpu_custom_call.1} parent=1 // pred_fallthru
      _
    // Predicated region
    $region54: #{tpu_custom_call.1} parent=1 // pred_check
      _
    $region55: #{tpu_custom_call.1} parent=1 // pred_check_branch
      %47 = sbr.rel (0) target = $region57
    $region56: #{tpu_custom_call.1} parent=1 // pred_region
      _
    $region57: #{tpu_custom_call.1} parent=1 // pred_fallthru
      _
    %v48 = vld [vmem:[%s0] sm:$0xff]
    %v49 = vld [vmem:[%s0 + $0x8] sm:$0xff]
    %v50 = vld [vmem:[%s1] sm:$0xff]
    %v51 = vld [vmem:[%s1 + $0x8] sm:$0xff]
    %v52 = vadd.f32 %v48, %v50
    %v53 = vadd.f32 %v49, %v51
    %v54 = vlaneseq
    %v55 = vshrl.u32 %v54, 7
    %v56 = vadd.s32 %v55, 8
    %v57 = vlaneseq
    %v58 = vand.u32 %v57, 127
    %vm59 = vcmp.ge.s32.totalorder %v55, 0
    %vm60 = vcmp.ge.s32.totalorder %v56, 0
    %vm61 = vcmp.lt.s32.totalorder %v55, 8
    %vm62 = vcmp.lt.s32.totalorder %v56, 8
    %vm63 = vmand %vm59, %vm61
    %vm64 = vmand %vm60, %vm62
    %vm65 = vcmp.ge.s32.totalorder %v58, 0
    %vm66 = vcmp.lt.s32.totalorder %v58, 8
    %vm67 = vmand %vm65, %vm66
    %vm68 = vmand %vm63, %vm67
    %vm69 = vmand %vm64, %vm67
    %vm70 = vcmp.ge.s32.totalorder %v55, 8
    %vm71 = vcmp.ge.s32.totalorder %v56, 8
    %vm72 = vcmp.lt.s32.totalorder %v55, 16
    %vm73 = vcmp.lt.s32.totalorder %v56, 16
    %vm74 = vmand %vm70, %vm72
    %vm75 = vmand %vm71, %vm73
    %vm76 = vcmp.ge.s32.totalorder %v58, 8
    %vm77 = vcmp.lt.s32.totalorder %v58, 16
    %vm78 = vmand %vm76, %vm77
    %vm79 = vmand %vm74, %vm78
    %vm80 = vmand %vm75, %vm78
    %vm81 = vmor %vm68, %vm79
    %vm82 = vmor %vm69, %vm80
    %v83 = vsel %vm81, 0.0, -1e+30
    %v84 = vsel %vm82, 0.0, -1e+30
    %v85 = vld [vmem:[%s7] sm:$0xff]
    %v86 = vld [vmem:[%s7 + $0x8] sm:$0xff]
    %v87 = vld [vmem:[%s3] sm:$0xff]
    %v88 = vld [vmem:[%s3 + $0x8] sm:$0xff]
    %v89 = vld [vmem:[%s3 + $0x10] sm:$0xff]
    %v90 = vld [vmem:[%s3 + $0x18] sm:$0xff]
    %v91 = vlaneseq
    %v92 = vshrl.u32 %v91, 7
    %v93 = vsub.s32 0, %v92
    %v94 = vrot.slane %v85, %v93
    %vm95 = vcmask 261120
    %v97 = vsel %vm95, %v52, 0
    %v100 = vsel %vm95, %v53, 0
    %102 = vmatprep.subr.mxu0 0.0
    %103 = vmatpush1.msra.mxu0 %v87
    %104 = vmatprep.subr.mxu0 0.0
    %105 = vmatpush1.msra.mxu0 %v88
    %106 = vmatprep.subr.mxu0 0.0
    %107 = vmatpush1.msra.mxu0 %v89
    %108 = vmatprep.subr.mxu0 0.0
    %109 = vmatpush1.msra.mxu0 %v90
    %110 = vmatprep.subr.mxu0 0.0
    %111 = vmatpush1.msra.mxu0 0.0
    %112 = vmatprep.subr.mxu0 0.0
    %113 = vmatpush1.msra.mxu0 0.0
    %114 = vmatprep.subr.mxu0 0.0
    %115 = vmatpush1.msra.mxu0 0.0
    %116 = vmatprep.subr.mxu0 0.0
    %117 = vmatpush1.msra.mxu0 0.0
    %118 = vmatprep.subr.mxu0 0.0
    %119 = vmatpush1.msra.mxu0 0.0
    %120 = vmatprep.subr.mxu0 0.0
    %121 = vmatpush1.msra.mxu0 0.0
    %122 = vmatprep.subr.mxu0 0.0
    %123 = vmatpush1.msra.mxu0 0.0
    %124 = vmatprep.subr.mxu0 0.0
    %125 = vmatpush1.msra.mxu0 0.0
    %126 = vmatprep.subr.mxu0 0.0
    %127 = vmatpush1.msra.mxu0 0.0
    %128 = vmatprep.subr.mxu0 0.0
    %129 = vmatpush1.msra.mxu0 0.0
    %130 = vmatprep.subr.mxu0 0.0
    %131 = vmatpush1.msra.mxu0 0.0
    %132 = vmatprep.subr.mxu0 0.0
    %133 = vmatpush1.msra.mxu0 0.0
    %134 = vmatprep.subr.mxu0 0.0
    %135 = vmatpush1.msra.mxu0 0.0
    %136 = vmatprep.subr.mxu0 0.0
    %137 = vmatpush1.msra.mxu0 0.0
    %138 = vmatprep.subr.mxu0 0.0
    %139 = vmatpush1.msra.mxu0 0.0
    %140 = vmatprep.subr.mxu0 0.0
    %141 = vmatpush1.msra.mxu0 0.0
    %142 = vmatprep.subr.mxu0 0.0
    %143 = vmatpush1.msra.mxu0 0.0
    %144 = vmatprep.subr.mxu0 0.0
    %145 = vmatpush1.msra.mxu0 0.0
    %146 = vmatprep.subr.mxu0 0.0
    %147 = vmatpush1.msra.mxu0 0.0
    %148 = vmatprep.subr.mxu0 0.0
    %149 = vmatpush1.msra.mxu0 0.0
    %150 = vmatprep.subr.mxu0 0.0
    %151 = vmatpush1.msra.mxu0 0.0
    %152 = vmatprep.subr.mxu0 0.0
    %153 = vmatpush1.msra.mxu0 0.0
    %154 = vmatprep.subr.mxu0 0.0
    %155 = vmatpush1.msra.mxu0 0.0
    %156 = vmatprep.subr.mxu0 0.0
    %157 = vmatpush1.msra.mxu0 0.0
    %158 = vmatprep.subr.mxu0 0.0
    %159 = vmatpush1.msra.mxu0 0.0
    %160 = vmatprep.subr.mxu0 0.0
    %161 = vmatpush1.msra.mxu0 0.0
    %162 = vmatprep.subr.mxu0 0.0
    %163 = vmatpush1.msra.mxu0 0.0
    %164 = vmatprep.subr.mxu0 0.0
    %165 = vmatpush1.msra.mxu0 0.0
    %166 = vmatprep.mubr.f32.mxu0 0.0
    %167 = vmatmul.mubr.f32.gmra.mrb[0].mxu0 %v97
    %v168 = vpop.f32.mrb[0].mxu0
    %v169 = vadd.f32 %v94, %v168
    %v170 = vpop.f32.mrb[0].mxu0
    %171 = vmatprep.mubr.f32.mxu0 0.0
    %172 = vmatmul.mubr.f32.gmra.mrb[0].mxu0 %v100
    %v173 = vpop.f32.mrb[0].mxu0
    %v174 = vadd.f32 %v94, %v173
    %v175 = vpop.f32.mrb[0].mxu0
    %176 = vdwg.mxu0
    %179 = vrot.lane.b32.xlu0 %v169, 96
    %v180 = vpop.permute.xlu0 %179
    %181 = vrot.lane.b32.xlu0 %v174, 96
    %v182 = vpop.permute.xlu0 %181
    %vm183 = vcmask 64512
    %v184 = vsel %vm183, %v169, 0
    %v186 = vsel %vm183, %v174, 0
    %v188 = vsel %vm183, %v180, 0
    %v190 = vsel %vm183, %v182, 0
    %192 = vmatprep.subr.mxu0 0.0
    %193 = vmatpush1.xpose.msra.mxu0 %v188
    %194 = vmatprep.subr.mxu0 0.0
    %195 = vmatpush1.xpose.msra.mxu0 %v190
    %196 = vmatprep.subr.mxu0 0.0
    %197 = vmatpush1.xpose.msra.mxu0 0.0
    %198 = vmatprep.subr.mxu0 0.0
    %199 = vmatpush1.xpose.msra.mxu0 0.0
    %200 = vmatprep.subr.mxu0 0.0
    %201 = vmatpush1.xpose.msra.mxu0 0.0
    %202 = vmatprep.subr.mxu0 0.0
    %203 = vmatpush1.xpose.msra.mxu0 0.0
    %204 = vmatprep.subr.mxu0 0.0
    %205 = vmatpush1.xpose.msra.mxu0 0.0
    %206 = vmatprep.subr.mxu0 0.0
    %207 = vmatpush1.xpose.msra.mxu0 0.0
    %208 = vmatprep.subr.mxu0 0.0
    %209 = vmatpush1.xpose.msra.mxu0 0.0
    %210 = vmatprep.subr.mxu0 0.0
    %211 = vmatpush1.xpose.msra.mxu0 0.0
    %212 = vmatprep.subr.mxu0 0.0
    %213 = vmatpush1.xpose.msra.mxu0 0.0
    %214 = vmatprep.subr.mxu0 0.0
    %215 = vmatpush1.xpose.msra.mxu0 0.0
    %216 = vmatprep.subr.mxu0 0.0
    %217 = vmatpush1.xpose.msra.mxu0 0.0
    %218 = vmatprep.subr.mxu0 0.0
    %219 = vmatpush1.xpose.msra.mxu0 0.0
    %220 = vmatprep.subr.mxu0 0.0
    %221 = vmatpush1.xpose.msra.mxu0 0.0
    %222 = vmatprep.subr.mxu0 0.0
    %223 = vmatpush1.xpose.msra.mxu0 0.0
    %224 = vmatprep.subr.mxu0 0.0
    %225 = vmatpush1.xpose.msra.mxu0 0.0
    %226 = vmatprep.subr.mxu0 0.0
    %227 = vmatpush1.xpose.msra.mxu0 0.0
    %228 = vmatprep.subr.mxu0 0.0
    %229 = vmatpush1.xpose.msra.mxu0 0.0
    %230 = vmatprep.subr.mxu0 0.0
    %231 = vmatpush1.xpose.msra.mxu0 0.0
    %232 = vmatprep.subr.mxu0 0.0
    %233 = vmatpush1.xpose.msra.mxu0 0.0
    %234 = vmatprep.subr.mxu0 0.0
    %235 = vmatpush1.xpose.msra.mxu0 0.0
    %236 = vmatprep.subr.mxu0 0.0
    %237 = vmatpush1.xpose.msra.mxu0 0.0
    %238 = vmatprep.subr.mxu0 0.0
    %239 = vmatpush1.xpose.msra.mxu0 0.0
    %240 = vmatprep.subr.mxu0 0.0
    %241 = vmatpush1.xpose.msra.mxu0 0.0
    %242 = vmatprep.subr.mxu0 0.0
    %243 = vmatpush1.xpose.msra.mxu0 0.0
    %244 = vmatprep.subr.mxu0 0.0
    %245 = vmatpush1.xpose.msra.mxu0 0.0
    %246 = vmatprep.subr.mxu0 0.0
    %247 = vmatpush1.xpose.msra.mxu0 0.0
    %248 = vmatprep.subr.mxu0 0.0
    %249 = vmatpush1.xpose.msra.mxu0 0.0
    %250 = vmatprep.subr.mxu0 0.0
    %251 = vmatpush1.xpose.msra.mxu0 0.0
    %252 = vmatprep.subr.mxu0 0.0
    %253 = vmatpush1.xpose.msra.mxu0 0.0
    %254 = vmatprep.subr.mxu0 0.0
    %255 = vmatpush1.xpose.msra.mxu0 0.0
    %256 = vmatprep.mubr.f32.mxu0 0.0
    %257 = vmatmul.mubr.f32.gmra.mrb[0].mxu0 %v184
    %v258 = vpop.f32.mrb[0].mxu0
    %v259 = vadd.f32 0.0, %v258
    %v260 = vpop.f32.mrb[0].mxu0
    %261 = vmatprep.mubr.f32.mxu0 0.0
    %262 = vmatmul.mubr.f32.gmra.mrb[0].mxu0 %v186
    %v263 = vpop.f32.mrb[0].mxu0
    %v264 = vadd.f32 0.0, %v263
    %v265 = vpop.f32.mrb[0].mxu0
    %266 = vdwg.mxu0
    %v267 = vmul.f32 %v259, 0.35355338
    %v268 = vmul.f32 %v264, 0.35355338
    %v269 = vadd.f32 %v267, %v83
    %v270 = vadd.f32 %v268, %v84
    %vm271 = vcmask 130048
    %v272 = vsel %vm271, %v269, -inf
    %273 = vmax.xlane.f32.xlu0 %v272
    %v274 = vpop.xlane.xlu0 %273
    %v275 = vsel %vm271, %v270, -inf
    %276 = vmax.xlane.f32.xlu0 %v275
    %v277 = vpop.xlane.xlu0 %276
    %v278 = vsub.f32 %v269, %v274
    %v279 = vsub.f32 %v270, %v277
    %v280 = vmul.f32 %v278, 1.442695
    %v281 = vpow.pop %v280
    %v282 = vmul.f32 %v279, 1.442695
    %v283 = vpow.pop %v282
    %v284 = vsel %vm271, %v281, 0.0
    %285 = vadd.xlane.f32.xlu0 %v284
    %v286 = vpop.xlane.xlu0 %285
    %v287 = vsel %vm271, %v283, 0.0
    %288 = vadd.xlane.f32.xlu0 %v287
    %v289 = vpop.xlane.xlu0 %288
    %v290 = vrcp.pop %v286
    %v291 = vrcp.pop %v289
    %v292 = vmul.f32 %v281, %v290
    %v293 = vmul.f32 %v283, %v291
    %294 = vrot.lane.b32.xlu0 %v169, 64
    %v295 = vpop.permute.xlu0 %294
    %296 = vrot.lane.b32.xlu0 %v174, 64
    %v297 = vpop.permute.xlu0 %296
    %v301 = vsel %vm271, %v292, 0
    %v304 = vsel %vm271, %v293, 0
    %306 = vmatprep.subr.mxu0 0.0
    %307 = vmatpush1.msra.mxu0 %v295
    %308 = vmatprep.subr.mxu0 0.0
    %309 = vmatpush1.msra.mxu0 %v297
    %310 = vmatprep.subr.mxu0 0.0
    %311 = vmatpush1.msra.mxu0 0.0
    %312 = vmatprep.subr.mxu0 0.0
    %313 = vmatpush1.msra.mxu0 0.0
    %314 = vmatprep.subr.mxu0 0.0
    %315 = vmatpush1.msra.mxu0 0.0
    %316 = vmatprep.subr.mxu0 0.0
    %317 = vmatpush1.msra.mxu0 0.0
    %318 = vmatprep.subr.mxu0 0.0
    %319 = vmatpush1.msra.mxu0 0.0
    %320 = vmatprep.subr.mxu0 0.0
    %321 = vmatpush1.msra.mxu0 0.0
    %322 = vmatprep.subr.mxu0 0.0
    %323 = vmatpush1.msra.mxu0 0.0
    %324 = vmatprep.subr.mxu0 0.0
    %325 = vmatpush1.msra.mxu0 0.0
    %326 = vmatprep.subr.mxu0 0.0
    %327 = vmatpush1.msra.mxu0 0.0
    %328 = vmatprep.subr.mxu0 0.0
    %329 = vmatpush1.msra.mxu0 0.0
    %330 = vmatprep.subr.mxu0 0.0
    %331 = vmatpush1.msra.mxu0 0.0
    %332 = vmatprep.subr.mxu0 0.0
    %333 = vmatpush1.msra.mxu0 0.0
    %334 = vmatprep.subr.mxu0 0.0
    %335 = vmatpush1.msra.mxu0 0.0
    %336 = vmatprep.subr.mxu0 0.0
    %337 = vmatpush1.msra.mxu0 0.0
    %338 = vmatprep.subr.mxu0 0.0
    %339 = vmatpush1.msra.mxu0 0.0
    %340 = vmatprep.subr.mxu0 0.0
    %341 = vmatpush1.msra.mxu0 0.0
    %342 = vmatprep.subr.mxu0 0.0
    %343 = vmatpush1.msra.mxu0 0.0
    %344 = vmatprep.subr.mxu0 0.0
    %345 = vmatpush1.msra.mxu0 0.0
    %346 = vmatprep.subr.mxu0 0.0
    %347 = vmatpush1.msra.mxu0 0.0
    %348 = vmatprep.subr.mxu0 0.0
    %349 = vmatpush1.msra.mxu0 0.0
    %350 = vmatprep.subr.mxu0 0.0
    %351 = vmatpush1.msra.mxu0 0.0
    %352 = vmatprep.subr.mxu0 0.0
    %353 = vmatpush1.msra.mxu0 0.0
    %354 = vmatprep.subr.mxu0 0.0
    %355 = vmatpush1.msra.mxu0 0.0
    %356 = vmatprep.subr.mxu0 0.0
    %357 = vmatpush1.msra.mxu0 0.0
    %358 = vmatprep.subr.mxu0 0.0
    %359 = vmatpush1.msra.mxu0 0.0
    %360 = vmatprep.subr.mxu0 0.0
    %361 = vmatpush1.msra.mxu0 0.0
    %362 = vmatprep.subr.mxu0 0.0
    %363 = vmatpush1.msra.mxu0 0.0
    %364 = vmatprep.subr.mxu0 0.0
    %365 = vmatpush1.msra.mxu0 0.0
    %366 = vmatprep.subr.mxu0 0.0
    %367 = vmatpush1.msra.mxu0 0.0
    %368 = vmatprep.subr.mxu0 0.0
    %369 = vmatpush1.msra.mxu0 0.0
    %370 = vmatprep.mubr.f32.mxu0 0.0
    %371 = vmatmul.mubr.f32.gmra.mrb[0].mxu0 %v301
    %v372 = vpop.f32.mrb[0].mxu0
    %v373 = vadd.f32 0.0, %v372
    %v374 = vpop.f32.mrb[0].mxu0
    %375 = vmatprep.mubr.f32.mxu0 0.0
    %376 = vmatmul.mubr.f32.gmra.mrb[0].mxu0 %v304
    %v377 = vpop.f32.mrb[0].mxu0
    %v378 = vadd.f32 0.0, %v377
    %v379 = vpop.f32.mrb[0].mxu0
    %380 = vdwg.mxu0
    %381 = vst.msk [vmem:[#allocation2] sm:$0xff] %vm183, %v373
    %382 = vst.msk [vmem:[#allocation2 + $0x8] sm:$0xff] %vm183, %v378
    %383 = vrot.lane.b32.xlu0 %v169, 120
    %v384 = vpop.permute.xlu0 %383
    %385 = vrot.lane.b32.xlu0 %v174, 120
    %v386 = vpop.permute.xlu0 %385
    %387 = vrot.lane.b32.xlu0 %v169, 88
    %v388 = vpop.permute.xlu0 %387
    %389 = vrot.lane.b32.xlu0 %v174, 88
    %v390 = vpop.permute.xlu0 %389
    %v391 = vsel %vm183, %v384, 0
    %v393 = vsel %vm183, %v386, 0
    %v395 = vsel %vm183, %v388, 0
    %v397 = vsel %vm183, %v390, 0
    %399 = vmatprep.subr.mxu0 0.0
    %400 = vmatpush1.xpose.msra.mxu0 %v395
    %401 = vmatprep.subr.mxu0 0.0
    %402 = vmatpush1.xpose.msra.mxu0 %v397
    %403 = vmatprep.subr.mxu0 0.0
    %404 = vmatpush1.xpose.msra.mxu0 0.0
    %405 = vmatprep.subr.mxu0 0.0
    %406 = vmatpush1.xpose.msra.mxu0 0.0
    %407 = vmatprep.subr.mxu0 0.0
    %408 = vmatpush1.xpose.msra.mxu0 0.0
    %409 = vmatprep.subr.mxu0 0.0
    %410 = vmatpush1.xpose.msra.mxu0 0.0
    %411 = vmatprep.subr.mxu0 0.0
    %412 = vmatpush1.xpose.msra.mxu0 0.0
    %413 = vmatprep.subr.mxu0 0.0
    %414 = vmatpush1.xpose.msra.mxu0 0.0
    %415 = vmatprep.subr.mxu0 0.0
    %416 = vmatpush1.xpose.msra.mxu0 0.0
    %417 = vmatprep.subr.mxu0 0.0
    %418 = vmatpush1.xpose.msra.mxu0 0.0
    %419 = vmatprep.subr.mxu0 0.0
    %420 = vmatpush1.xpose.msra.mxu0 0.0
    %421 = vmatprep.subr.mxu0 0.0
    %422 = vmatpush1.xpose.msra.mxu0 0.0
    %423 = vmatprep.subr.mxu0 0.0
    %424 = vmatpush1.xpose.msra.mxu0 0.0
    %425 = vmatprep.subr.mxu0 0.0
    %426 = vmatpush1.xpose.msra.mxu0 0.0
    %427 = vmatprep.subr.mxu0 0.0
    %428 = vmatpush1.xpose.msra.mxu0 0.0
    %429 = vmatprep.subr.mxu0 0.0
    %430 = vmatpush1.xpose.msra.mxu0 0.0
    %431 = vmatprep.subr.mxu0 0.0
    %432 = vmatpush1.xpose.msra.mxu0 0.0
    %433 = vmatprep.subr.mxu0 0.0
    %434 = vmatpush1.xpose.msra.mxu0 0.0
    %435 = vmatprep.subr.mxu0 0.0
    %436 = vmatpush1.xpose.msra.mxu0 0.0
    %437 = vmatprep.subr.mxu0 0.0
    %438 = vmatpush1.xpose.msra.mxu0 0.0
    %439 = vmatprep.subr.mxu0 0.0
    %440 = vmatpush1.xpose.msra.mxu0 0.0
    %441 = vmatprep.subr.mxu0 0.0
    %442 = vmatpush1.xpose.msra.mxu0 0.0
    %443 = vmatprep.subr.mxu0 0.0
    %444 = vmatpush1.xpose.msra.mxu0 0.0
    %445 = vmatprep.subr.mxu0 0.0
    %446 = vmatpush1.xpose.msra.mxu0 0.0
    %447 = vmatprep.subr.mxu0 0.0
    %448 = vmatpush1.xpose.msra.mxu0 0.0
    %449 = vmatprep.subr.mxu0 0.0
    %450 = vmatpush1.xpose.msra.mxu0 0.0
    %451 = vmatprep.subr.mxu0 0.0
    %452 = vmatpush1.xpose.msra.mxu0 0.0
    %453 = vmatprep.subr.mxu0 0.0
    %454 = vmatpush1.xpose.msra.mxu0 0.0
    %455 = vmatprep.subr.mxu0 0.0
    %456 = vmatpush1.xpose.msra.mxu0 0.0
    %457 = vmatprep.subr.mxu0 0.0
    %458 = vmatpush1.xpose.msra.mxu0 0.0
    %459 = vmatprep.subr.mxu0 0.0
    %460 = vmatpush1.xpose.msra.mxu0 0.0
    %461 = vmatprep.subr.mxu0 0.0
    %462 = vmatpush1.xpose.msra.mxu0 0.0
    %463 = vmatprep.mubr.f32.mxu0 0.0
    %464 = vmatmul.mubr.f32.gmra.mrb[0].mxu0 %v391
    %v465 = vpop.f32.mrb[0].mxu0
    %v466 = vadd.f32 0.0, %v465
    %v467 = vpop.f32.mrb[0].mxu0
    %468 = vmatprep.mubr.f32.mxu0 0.0
    %469 = vmatmul.mubr.f32.gmra.mrb[0].mxu0 %v393
    %v470 = vpop.f32.mrb[0].mxu0
    %v471 = vadd.f32 0.0, %v470
    %v472 = vpop.f32.mrb[0].mxu0
    %473 = vdwg.mxu0
    %v474 = vmul.f32 %v466, 0.35355338
    %v475 = vmul.f32 %v471, 0.35355338
    %v476 = vadd.f32 %v474, %v83
    %v477 = vadd.f32 %v475, %v84
    %v478 = vsel %vm271, %v476, -inf
    %479 = vmax.xlane.f32.xlu0 %v478
    %v480 = vpop.xlane.xlu0 %479
    %v481 = vsel %vm271, %v477, -inf
    %482 = vmax.xlane.f32.xlu0 %v481
    %v483 = vpop.xlane.xlu0 %482
    %v484 = vsub.f32 %v476, %v480
    %v485 = vsub.f32 %v477, %v483
    %v486 = vmul.f32 %v484, 1.442695
    %v487 = vpow.pop %v486
    %v488 = vmul.f32 %v485, 1.442695
    %v489 = vpow.pop %v488
    %v490 = vsel %vm271, %v487, 0.0
    %491 = vadd.xlane.f32.xlu0 %v490
    %v492 = vpop.xlane.xlu0 %491
    %v493 = vsel %vm271, %v489, 0.0
    %494 = vadd.xlane.f32.xlu0 %v493
    %v495 = vpop.xlane.xlu0 %494
    %v496 = vrcp.pop %v492
    %v497 = vrcp.pop %v495
    %v498 = vmul.f32 %v487, %v496
    %v499 = vmul.f32 %v489, %v497
    %500 = vrot.lane.b32.xlu0 %v169, 56
    %v501 = vpop.permute.xlu0 %500
    %502 = vrot.lane.b32.xlu0 %v174, 56
    %v503 = vpop.permute.xlu0 %502
    %v507 = vsel %vm271, %v498, 0
    %v510 = vsel %vm271, %v499, 0
    %512 = vmatprep.subr.mxu0 0.0
    %513 = vmatpush1.msra.mxu0 %v501
    %514 = vmatprep.subr.mxu0 0.0
    %515 = vmatpush1.msra.mxu0 %v503
    %516 = vmatprep.subr.mxu0 0.0
    %517 = vmatpush1.msra.mxu0 0.0
    %518 = vmatprep.subr.mxu0 0.0
    %519 = vmatpush1.msra.mxu0 0.0
    %520 = vmatprep.subr.mxu0 0.0
    %521 = vmatpush1.msra.mxu0 0.0
    %522 = vmatprep.subr.mxu0 0.0
    %523 = vmatpush1.msra.mxu0 0.0
    %524 = vmatprep.subr.mxu0 0.0
    %525 = vmatpush1.msra.mxu0 0.0
    %526 = vmatprep.subr.mxu0 0.0
    %527 = vmatpush1.msra.mxu0 0.0
    %528 = vmatprep.subr.mxu0 0.0
    %529 = vmatpush1.msra.mxu0 0.0
    %530 = vmatprep.subr.mxu0 0.0
    %531 = vmatpush1.msra.mxu0 0.0
    %532 = vmatprep.subr.mxu0 0.0
    %533 = vmatpush1.msra.mxu0 0.0
    %534 = vmatprep.subr.mxu0 0.0
    %535 = vmatpush1.msra.mxu0 0.0
    %536 = vmatprep.subr.mxu0 0.0
    %537 = vmatpush1.msra.mxu0 0.0
    %538 = vmatprep.subr.mxu0 0.0
    %539 = vmatpush1.msra.mxu0 0.0
    %540 = vmatprep.subr.mxu0 0.0
    %541 = vmatpush1.msra.mxu0 0.0
    %542 = vmatprep.subr.mxu0 0.0
    %543 = vmatpush1.msra.mxu0 0.0
    %544 = vmatprep.subr.mxu0 0.0
    %545 = vmatpush1.msra.mxu0 0.0
    %546 = vmatprep.subr.mxu0 0.0
    %547 = vmatpush1.msra.mxu0 0.0
    %548 = vmatprep.subr.mxu0 0.0
    %549 = vmatpush1.msra.mxu0 0.0
    %550 = vmatprep.subr.mxu0 0.0
    %551 = vmatpush1.msra.mxu0 0.0
    %552 = vmatprep.subr.mxu0 0.0
    %553 = vmatpush1.msra.mxu0 0.0
    %554 = vmatprep.subr.mxu0 0.0
    %555 = vmatpush1.msra.mxu0 0.0
    %556 = vmatprep.subr.mxu0 0.0
    %557 = vmatpush1.msra.mxu0 0.0
    %558 = vmatprep.subr.mxu0 0.0
    %559 = vmatpush1.msra.mxu0 0.0
    %560 = vmatprep.subr.mxu0 0.0
    %561 = vmatpush1.msra.mxu0 0.0
    %562 = vmatprep.subr.mxu0 0.0
    %563 = vmatpush1.msra.mxu0 0.0
    %564 = vmatprep.subr.mxu0 0.0
    %565 = vmatpush1.msra.mxu0 0.0
    %566 = vmatprep.subr.mxu0 0.0
    %567 = vmatpush1.msra.mxu0 0.0
    %568 = vmatprep.subr.mxu0 0.0
    %569 = vmatpush1.msra.mxu0 0.0
    %570 = vmatprep.subr.mxu0 0.0
    %571 = vmatpush1.msra.mxu0 0.0
    %572 = vmatprep.subr.mxu0 0.0
    %573 = vmatpush1.msra.mxu0 0.0
    %574 = vmatprep.subr.mxu0 0.0
    %575 = vmatpush1.msra.mxu0 0.0
    %576 = vmatprep.mubr.f32.mxu0 0.0
    %577 = vmatmul.mubr.f32.gmra.mrb[0].mxu0 %v507
    %v578 = vpop.f32.mrb[0].mxu0
    %v579 = vadd.f32 0.0, %v578
    %v580 = vpop.f32.mrb[0].mxu0
    %581 = vmatprep.mubr.f32.mxu0 0.0
    %582 = vmatmul.mubr.f32.gmra.mrb[0].mxu0 %v510
    %v583 = vpop.f32.mrb[0].mxu0
    %v584 = vadd.f32 0.0, %v583
    %v585 = vpop.f32.mrb[0].mxu0
    %586 = vdwg.mxu0
    %589 = vrot.lane.b32.xlu0 %v579, 8
    %v590 = vpop.permute.xlu0 %589
    %591 = vrot.lane.b32.xlu0 %v584, 8
    %v592 = vpop.permute.xlu0 %591
    %vm595 = vcmask 130112
    %596 = vst.msk [vmem:[#allocation2] sm:$0xff] %vm595, %v590
    %597 = vst.msk [vmem:[#allocation2 + $0x8] sm:$0xff] %vm595, %v592
    %598 = vrot.lane.b32.xlu0 %v169, 112
    %v599 = vpop.permute.xlu0 %598
    %600 = vrot.lane.b32.xlu0 %v174, 112
    %v601 = vpop.permute.xlu0 %600
    %602 = vrot.lane.b32.xlu0 %v169, 80
    %v603 = vpop.permute.xlu0 %602
    %604 = vrot.lane.b32.xlu0 %v174, 80
    %v605 = vpop.permute.xlu0 %604
    %v606 = vsel %vm183, %v599, 0
    %v608 = vsel %vm183, %v601, 0
    %v610 = vsel %vm183, %v603, 0
    %v612 = vsel %vm183, %v605, 0
    %614 = vmatprep.subr.mxu0 0.0
    %615 = vmatpush1.xpose.msra.mxu0 %v610
    %616 = vmatprep.subr.mxu0 0.0
    %617 = vmatpush1.xpose.msra.mxu0 %v612
    %618 = vmatprep.subr.mxu0 0.0
    %619 = vmatpush1.xpose.msra.mxu0 0.0
    %620 = vmatprep.subr.mxu0 0.0
    %621 = vmatpush1.xpose.msra.mxu0 0.0
    %622 = vmatprep.subr.mxu0 0.0
    %623 = vmatpush1.xpose.msra.mxu0 0.0
    %624 = vmatprep.subr.mxu0 0.0
    %625 = vmatpush1.xpose.msra.mxu0 0.0
    %626 = vmatprep.subr.mxu0 0.0
    %627 = vmatpush1.xpose.msra.mxu0 0.0
    %628 = vmatprep.subr.mxu0 0.0
    %629 = vmatpush1.xpose.msra.mxu0 0.0
    %630 = vmatprep.subr.mxu0 0.0
    %631 = vmatpush1.xpose.msra.mxu0 0.0
    %632 = vmatprep.subr.mxu0 0.0
    %633 = vmatpush1.xpose.msra.mxu0 0.0
    %634 = vmatprep.subr.mxu0 0.0
    %635 = vmatpush1.xpose.msra.mxu0 0.0
    %636 = vmatprep.subr.mxu0 0.0
    %637 = vmatpush1.xpose.msra.mxu0 0.0
    %638 = vmatprep.subr.mxu0 0.0
    %639 = vmatpush1.xpose.msra.mxu0 0.0
    %640 = vmatprep.subr.mxu0 0.0
    %641 = vmatpush1.xpose.msra.mxu0 0.0
    %642 = vmatprep.subr.mxu0 0.0
    %643 = vmatpush1.xpose.msra.mxu0 0.0
    %644 = vmatprep.subr.mxu0 0.0
    %645 = vmatpush1.xpose.msra.mxu0 0.0
    %646 = vmatprep.subr.mxu0 0.0
    %647 = vmatpush1.xpose.msra.mxu0 0.0
    %648 = vmatprep.subr.mxu0 0.0
    %649 = vmatpush1.xpose.msra.mxu0 0.0
    %650 = vmatprep.subr.mxu0 0.0
    %651 = vmatpush1.xpose.msra.mxu0 0.0
    %652 = vmatprep.subr.mxu0 0.0
    %653 = vmatpush1.xpose.msra.mxu0 0.0
    %654 = vmatprep.subr.mxu0 0.0
    %655 = vmatpush1.xpose.msra.mxu0 0.0
    %656 = vmatprep.subr.mxu0 0.0
    %657 = vmatpush1.xpose.msra.mxu0 0.0
    %658 = vmatprep.subr.mxu0 0.0
    %659 = vmatpush1.xpose.msra.mxu0 0.0
    %660 = vmatprep.subr.mxu0 0.0
    %661 = vmatpush1.xpose.msra.mxu0 0.0
    %662 = vmatprep.subr.mxu0 0.0
    %663 = vmatpush1.xpose.msra.mxu0 0.0
    %664 = vmatprep.subr.mxu0 0.0
    %665 = vmatpush1.xpose.msra.mxu0 0.0
    %666 = vmatprep.subr.mxu0 0.0
    %667 = vmatpush1.xpose.msra.mxu0 0.0
    %668 = vmatprep.subr.mxu0 0.0
    %669 = vmatpush1.xpose.msra.mxu0 0.0
    %670 = vmatprep.subr.mxu0 0.0
    %671 = vmatpush1.xpose.msra.mxu0 0.0
    %672 = vmatprep.subr.mxu0 0.0
    %673 = vmatpush1.xpose.msra.mxu0 0.0
    %674 = vmatprep.subr.mxu0 0.0
    %675 = vmatpush1.xpose.msra.mxu0 0.0
    %676 = vmatprep.subr.mxu0 0.0
    %677 = vmatpush1.xpose.msra.mxu0 0.0
    %678 = vmatprep.mubr.f32.mxu0 0.0
    %679 = vmatmul.mubr.f32.gmra.mrb[0].mxu0 %v606
    %v680 = vpop.f32.mrb[0].mxu0
    %v681 = vadd.f32 0.0, %v680
    %v682 = vpop.f32.mrb[0].mxu0
    %683 = vmatprep.mubr.f32.mxu0 0.0
    %684 = vmatmul.mubr.f32.gmra.mrb[0].mxu0 %v608
    %v685 = vpop.f32.mrb[0].mxu0
    %v686 = vadd.f32 0.0, %v685
    %v687 = vpop.f32.mrb[0].mxu0
    %688 = vdwg.mxu0
    %v689 = vmul.f32 %v681, 0.35355338
    %v690 = vmul.f32 %v686, 0.35355338
    %v691 = vadd.f32 %v689, %v83
    %v692 = vadd.f32 %v690, %v84
    %v693 = vsel %vm271, %v691, -inf
    %694 = vmax.xlane.f32.xlu0 %v693
    %v695 = vpop.xlane.xlu0 %694
    %v696 = vsel %vm271, %v692, -inf
    %697 = vmax.xlane.f32.xlu0 %v696
    %v698 = vpop.xlane.xlu0 %697
    %v699 = vsub.f32 %v691, %v695
    %v700 = vsub.f32 %v692, %v698
    %v701 = vmul.f32 %v699, 1.442695
    %v702 = vpow.pop %v701
    %v703 = vmul.f32 %v700, 1.442695
    %v704 = vpow.pop %v703
    %v705 = vsel %vm271, %v702, 0.0
    %706 = vadd.xlane.f32.xlu0 %v705
    %v707 = vpop.xlane.xlu0 %706
    %v708 = vsel %vm271, %v704, 0.0
    %709 = vadd.xlane.f32.xlu0 %v708
    %v710 = vpop.xlane.xlu0 %709
    %v711 = vrcp.pop %v707
    %v712 = vrcp.pop %v710
    %v713 = vmul.f32 %v702, %v711
    %v714 = vmul.f32 %v704, %v712
    %715 = vrot.lane.b32.xlu0 %v169, 48
    %v716 = vpop.permute.xlu0 %715
    %717 = vrot.lane.b32.xlu0 %v174, 48
    %v718 = vpop.permute.xlu0 %717
    %v722 = vsel %vm271, %v713, 0
    %v725 = vsel %vm271, %v714, 0
    %727 = vmatprep.subr.mxu0 0.0
    %728 = vmatpush1.msra.mxu0 %v716
    %729 = vmatprep.subr.mxu0 0.0
    %730 = vmatpush1.msra.mxu0 %v718
    %731 = vmatprep.subr.mxu0 0.0
    %732 = vmatpush1.msra.mxu0 0.0
    %733 = vmatprep.subr.mxu0 0.0
    %734 = vmatpush1.msra.mxu0 0.0
    %735 = vmatprep.subr.mxu0 0.0
    %736 = vmatpush1.msra.mxu0 0.0
    %737 = vmatprep.subr.mxu0 0.0
    %738 = vmatpush1.msra.mxu0 0.0
    %739 = vmatprep.subr.mxu0 0.0
    %740 = vmatpush1.msra.mxu0 0.0
    %741 = vmatprep.subr.mxu0 0.0
    %742 = vmatpush1.msra.mxu0 0.0
    %743 = vmatprep.subr.mxu0 0.0
    %744 = vmatpush1.msra.mxu0 0.0
    %745 = vmatprep.subr.mxu0 0.0
    %746 = vmatpush1.msra.mxu0 0.0
    %747 = vmatprep.subr.mxu0 0.0
    %748 = vmatpush1.msra.mxu0 0.0
    %749 = vmatprep.subr.mxu0 0.0
    %750 = vmatpush1.msra.mxu0 0.0
    %751 = vmatprep.subr.mxu0 0.0
    %752 = vmatpush1.msra.mxu0 0.0
    %753 = vmatprep.subr.mxu0 0.0
    %754 = vmatpush1.msra.mxu0 0.0
    %755 = vmatprep.subr.mxu0 0.0
    %756 = vmatpush1.msra.mxu0 0.0
    %757 = vmatprep.subr.mxu0 0.0
    %758 = vmatpush1.msra.mxu0 0.0
    %759 = vmatprep.subr.mxu0 0.0
    %760 = vmatpush1.msra.mxu0 0.0
    %761 = vmatprep.subr.mxu0 0.0
    %762 = vmatpush1.msra.mxu0 0.0
    %763 = vmatprep.subr.mxu0 0.0
    %764 = vmatpush1.msra.mxu0 0.0
    %765 = vmatprep.subr.mxu0 0.0
    %766 = vmatpush1.msra.mxu0 0.0
    %767 = vmatprep.subr.mxu0 0.0
    %768 = vmatpush1.msra.mxu0 0.0
    %769 = vmatprep.subr.mxu0 0.0
    %770 = vmatpush1.msra.mxu0 0.0
    %771 = vmatprep.subr.mxu0 0.0
    %772 = vmatpush1.msra.mxu0 0.0
    %773 = vmatprep.subr.mxu0 0.0
    %774 = vmatpush1.msra.mxu0 0.0
    %775 = vmatprep.subr.mxu0 0.0
    %776 = vmatpush1.msra.mxu0 0.0
    %777 = vmatprep.subr.mxu0 0.0
    %778 = vmatpush1.msra.mxu0 0.0
    %779 = vmatprep.subr.mxu0 0.0
    %780 = vmatpush1.msra.mxu0 0.0
    %781 = vmatprep.subr.mxu0 0.0
    %782 = vmatpush1.msra.mxu0 0.0
    %783 = vmatprep.subr.mxu0 0.0
    %784 = vmatpush1.msra.mxu0 0.0
    %785 = vmatprep.subr.mxu0 0.0
    %786 = vmatpush1.msra.mxu0 0.0
    %787 = vmatprep.subr.mxu0 0.0
    %788 = vmatpush1.msra.mxu0 0.0
    %789 = vmatprep.subr.mxu0 0.0
    %790 = vmatpush1.msra.mxu0 0.0
    %791 = vmatprep.mubr.f32.mxu0 0.0
    %792 = vmatmul.mubr.f32.gmra.mrb[0].mxu0 %v722
    %v793 = vpop.f32.mrb[0].mxu0
    %v794 = vadd.f32 0.0, %v793
    %v795 = vpop.f32.mrb[0].mxu0
    %796 = vmatprep.mubr.f32.mxu0 0.0
    %797 = vmatmul.mubr.f32.gmra.mrb[0].mxu0 %v725
    %v798 = vpop.f32.mrb[0].mxu0
    %v799 = vadd.f32 0.0, %v798
    %v800 = vpop.f32.mrb[0].mxu0
    %801 = vdwg.mxu0
    %804 = vrot.lane.b32.xlu0 %v794, 16
    %v805 = vpop.permute.xlu0 %804
    %806 = vrot.lane.b32.xlu0 %v799, 16
    %v807 = vpop.permute.xlu0 %806
    %vm810 = vcmask 195712
    %811 = vst.msk [vmem:[#allocation2] sm:$0xff] %vm810, %v805
    %812 = vst.msk [vmem:[#allocation2 + $0x8] sm:$0xff] %vm810, %v807
    %813 = vrot.lane.b32.xlu0 %v169, 104
    %v814 = vpop.permute.xlu0 %813
    %815 = vrot.lane.b32.xlu0 %v174, 104
    %v816 = vpop.permute.xlu0 %815
    %817 = vrot.lane.b32.xlu0 %v169, 72
    %v818 = vpop.permute.xlu0 %817
    %819 = vrot.lane.b32.xlu0 %v174, 72
    %v820 = vpop.permute.xlu0 %819
    %v821 = vsel %vm183, %v814, 0
    %v823 = vsel %vm183, %v816, 0
    %v825 = vsel %vm183, %v818, 0
    %v827 = vsel %vm183, %v820, 0
    %829 = vmatprep.subr.mxu0 0.0
    %830 = vmatpush1.xpose.msra.mxu0 %v825
    %831 = vmatprep.subr.mxu0 0.0
    %832 = vmatpush1.xpose.msra.mxu0 %v827
    %833 = vmatprep.subr.mxu0 0.0
    %834 = vmatpush1.xpose.msra.mxu0 0.0
    %835 = vmatprep.subr.mxu0 0.0
    %836 = vmatpush1.xpose.msra.mxu0 0.0
    %837 = vmatprep.subr.mxu0 0.0
    %838 = vmatpush1.xpose.msra.mxu0 0.0
    %839 = vmatprep.subr.mxu0 0.0
    %840 = vmatpush1.xpose.msra.mxu0 0.0
    %841 = vmatprep.subr.mxu0 0.0
    %842 = vmatpush1.xpose.msra.mxu0 0.0
    %843 = vmatprep.subr.mxu0 0.0
    %844 = vmatpush1.xpose.msra.mxu0 0.0
    %845 = vmatprep.subr.mxu0 0.0
    %846 = vmatpush1.xpose.msra.mxu0 0.0
    %847 = vmatprep.subr.mxu0 0.0
    %848 = vmatpush1.xpose.msra.mxu0 0.0
    %849 = vmatprep.subr.mxu0 0.0
    %850 = vmatpush1.xpose.msra.mxu0 0.0
    %851 = vmatprep.subr.mxu0 0.0
    %852 = vmatpush1.xpose.msra.mxu0 0.0
    %853 = vmatprep.subr.mxu0 0.0
    %854 = vmatpush1.xpose.msra.mxu0 0.0
    %855 = vmatprep.subr.mxu0 0.0
    %856 = vmatpush1.xpose.msra.mxu0 0.0
    %857 = vmatprep.subr.mxu0 0.0
    %858 = vmatpush1.xpose.msra.mxu0 0.0
    %859 = vmatprep.subr.mxu0 0.0
    %860 = vmatpush1.xpose.msra.mxu0 0.0
    %861 = vmatprep.subr.mxu0 0.0
    %862 = vmatpush1.xpose.msra.mxu0 0.0
    %863 = vmatprep.subr.mxu0 0.0
    %864 = vmatpush1.xpose.msra.mxu0 0.0
    %865 = vmatprep.subr.mxu0 0.0
    %866 = vmatpush1.xpose.msra.mxu0 0.0
    %867 = vmatprep.subr.mxu0 0.0
    %868 = vmatpush1.xpose.msra.mxu0 0.0
    %869 = vmatprep.subr.mxu0 0.0
    %870 = vmatpush1.xpose.msra.mxu0 0.0
    %871 = vmatprep.subr.mxu0 0.0
    %872 = vmatpush1.xpose.msra.mxu0 0.0
    %873 = vmatprep.subr.mxu0 0.0
    %874 = vmatpush1.xpose.msra.mxu0 0.0
    %875 = vmatprep.subr.mxu0 0.0
    %876 = vmatpush1.xpose.msra.mxu0 0.0
    %877 = vmatprep.subr.mxu0 0.0
    %878 = vmatpush1.xpose.msra.mxu0 0.0
    %879 = vmatprep.subr.mxu0 0.0
    %880 = vmatpush1.xpose.msra.mxu0 0.0
    %881 = vmatprep.subr.mxu0 0.0
    %882 = vmatpush1.xpose.msra.mxu0 0.0
    %883 = vmatprep.subr.mxu0 0.0
    %884 = vmatpush1.xpose.msra.mxu0 0.0
    %885 = vmatprep.subr.mxu0 0.0
    %886 = vmatpush1.xpose.msra.mxu0 0.0
    %887 = vmatprep.subr.mxu0 0.0
    %888 = vmatpush1.xpose.msra.mxu0 0.0
    %889 = vmatprep.subr.mxu0 0.0
    %890 = vmatpush1.xpose.msra.mxu0 0.0
    %891 = vmatprep.subr.mxu0 0.0
    %892 = vmatpush1.xpose.msra.mxu0 0.0
    %893 = vmatprep.mubr.f32.mxu0 0.0
    %894 = vmatmul.mubr.f32.gmra.mrb[0].mxu0 %v821
    %v895 = vpop.f32.mrb[0].mxu0
    %v896 = vadd.f32 0.0, %v895
    %v897 = vpop.f32.mrb[0].mxu0
    %898 = vmatprep.mubr.f32.mxu0 0.0
    %899 = vmatmul.mubr.f32.gmra.mrb[0].mxu0 %v823
    %v900 = vpop.f32.mrb[0].mxu0
    %v901 = vadd.f32 0.0, %v900
    %v902 = vpop.f32.mrb[0].mxu0
    %903 = vdwg.mxu0
    %v904 = vmul.f32 %v896, 0.35355338
    %v905 = vmul.f32 %v901, 0.35355338
    %v906 = vadd.f32 %v904, %v83
    %v907 = vadd.f32 %v905, %v84
    %v908 = vsel %vm271, %v906, -inf
    %909 = vmax.xlane.f32.xlu0 %v908
    %v910 = vpop.xlane.xlu0 %909
    %v911 = vsel %vm271, %v907, -inf
    %912 = vmax.xlane.f32.xlu0 %v911
    %v913 = vpop.xlane.xlu0 %912
    %v914 = vsub.f32 %v906, %v910
    %v915 = vsub.f32 %v907, %v913
    %v916 = vmul.f32 %v914, 1.442695
    %v917 = vpow.pop %v916
    %v918 = vmul.f32 %v915, 1.442695
    %v919 = vpow.pop %v918
    %v920 = vsel %vm271, %v917, 0.0
    %921 = vadd.xlane.f32.xlu0 %v920
    %v922 = vpop.xlane.xlu0 %921
    %v923 = vsel %vm271, %v919, 0.0
    %924 = vadd.xlane.f32.xlu0 %v923
    %v925 = vpop.xlane.xlu0 %924
    %v926 = vrcp.pop %v922
    %v927 = vrcp.pop %v925
    %v928 = vmul.f32 %v917, %v926
    %v929 = vmul.f32 %v919, %v927
    %930 = vrot.lane.b32.xlu0 %v169, 40
    %v931 = vpop.permute.xlu0 %930
    %932 = vrot.lane.b32.xlu0 %v174, 40
    %v933 = vpop.permute.xlu0 %932
    %v937 = vsel %vm271, %v928, 0
    %v940 = vsel %vm271, %v929, 0
    %942 = vmatprep.subr.mxu0 0.0
    %943 = vmatpush1.msra.mxu0 %v931
    %944 = vmatprep.subr.mxu0 0.0
    %945 = vmatpush1.msra.mxu0 %v933
    %946 = vmatprep.subr.mxu0 0.0
    %947 = vmatpush1.msra.mxu0 0.0
    %948 = vmatprep.subr.mxu0 0.0
    %949 = vmatpush1.msra.mxu0 0.0
    %950 = vmatprep.subr.mxu0 0.0
    %951 = vmatpush1.msra.mxu0 0.0
    %952 = vmatprep.subr.mxu0 0.0
    %953 = vmatpush1.msra.mxu0 0.0
    %954 = vmatprep.subr.mxu0 0.0
    %955 = vmatpush1.msra.mxu0 0.0
    %956 = vmatprep.subr.mxu0 0.0
    %957 = vmatpush1.msra.mxu0 0.0
    %958 = vmatprep.subr.mxu0 0.0
    %959 = vmatpush1.msra.mxu0 0.0
    %960 = vmatprep.subr.mxu0 0.0
    %961 = vmatpush1.msra.mxu0 0.0
    %962 = vmatprep.subr.mxu0 0.0
    %963 = vmatpush1.msra.mxu0 0.0
    %964 = vmatprep.subr.mxu0 0.0
    %965 = vmatpush1.msra.mxu0 0.0
    %966 = vmatprep.subr.mxu0 0.0
    %967 = vmatpush1.msra.mxu0 0.0
    %968 = vmatprep.subr.mxu0 0.0
    %969 = vmatpush1.msra.mxu0 0.0
    %970 = vmatprep.subr.mxu0 0.0
    %971 = vmatpush1.msra.mxu0 0.0
    %972 = vmatprep.subr.mxu0 0.0
    %973 = vmatpush1.msra.mxu0 0.0
    %974 = vmatprep.subr.mxu0 0.0
    %975 = vmatpush1.msra.mxu0 0.0
    %976 = vmatprep.subr.mxu0 0.0
    %977 = vmatpush1.msra.mxu0 0.0
    %978 = vmatprep.subr.mxu0 0.0
    %979 = vmatpush1.msra.mxu0 0.0
    %980 = vmatprep.subr.mxu0 0.0
    %981 = vmatpush1.msra.mxu0 0.0
    %982 = vmatprep.subr.mxu0 0.0
    %983 = vmatpush1.msra.mxu0 0.0
    %984 = vmatprep.subr.mxu0 0.0
    %985 = vmatpush1.msra.mxu0 0.0
    %986 = vmatprep.subr.mxu0 0.0
    %987 = vmatpush1.msra.mxu0 0.0
    %988 = vmatprep.subr.mxu0 0.0
    %989 = vmatpush1.msra.mxu0 0.0
    %990 = vmatprep.subr.mxu0 0.0
    %991 = vmatpush1.msra.mxu0 0.0
    %992 = vmatprep.subr.mxu0 0.0
    %993 = vmatpush1.msra.mxu0 0.0
    %994 = vmatprep.subr.mxu0 0.0
    %995 = vmatpush1.msra.mxu0 0.0
    %996 = vmatprep.subr.mxu0 0.0
    %997 = vmatpush1.msra.mxu0 0.0
    %998 = vmatprep.subr.mxu0 0.0
    %999 = vmatpush1.msra.mxu0 0.0
    %1000 = vmatprep.subr.mxu0 0.0
    %1001 = vmatpush1.msra.mxu0 0.0
    %1002 = vmatprep.subr.mxu0 0.0
    %1003 = vmatpush1.msra.mxu0 0.0
    %1004 = vmatprep.subr.mxu0 0.0
    %1005 = vmatpush1.msra.mxu0 0.0
    %1006 = vmatprep.mubr.f32.mxu0 0.0
    %1007 = vmatmul.mubr.f32.gmra.mrb[0].mxu0 %v937
    %v1008 = vpop.f32.mrb[0].mxu0
    %v1009 = vadd.f32 0.0, %v1008
    %v1010 = vpop.f32.mrb[0].mxu0
    %1011 = vmatprep.mubr.f32.mxu0 0.0
    %1012 = vmatmul.mubr.f32.gmra.mrb[0].mxu0 %v940
    %v1013 = vpop.f32.mrb[0].mxu0
    %v1014 = vadd.f32 0.0, %v1013
    %v1015 = vpop.f32.mrb[0].mxu0
    %1016 = vdwg.mxu0
    %1019 = vrot.lane.b32.xlu0 %v1009, 24
    %v1020 = vpop.permute.xlu0 %1019
    %1021 = vrot.lane.b32.xlu0 %v1014, 24
    %v1022 = vpop.permute.xlu0 %1021
    %vm1025 = vcmask 261312
    %1026 = vst.msk [vmem:[#allocation2] sm:$0xff] %vm1025, %v1020
    %1027 = vst.msk [vmem:[#allocation2 + $0x8] sm:$0xff] %vm1025, %v1022
    %v1028 = vld [vmem:[#allocation2] sm:$0xff]
    %v1029 = vld [vmem:[#allocation2 + $0x8] sm:$0xff]
    %v1030 = vld [vmem:[%s4] sm:$0xff]
    %v1031 = vld [vmem:[%s4 + $0x8] sm:$0xff]
    %v1032 = vld [vmem:[%s4 + $0x10] sm:$0xff]
    %v1033 = vld [vmem:[%s4 + $0x18] sm:$0xff]
    %v1034 = vlaneseq
    %v1035 = vshrl.u32 %v1034, 7
    %v1036 = vsub.s32 1, %v1035
    %v1037 = vrot.slane %v85, %v1036
    %v1039 = vsel %vm95, %v1028, 0
    %v1042 = vsel %vm95, %v1029, 0
    %1044 = vmatprep.subr.mxu0 0.0
    %1045 = vmatpush1.msra.mxu0 %v1030
    %1046 = vmatprep.subr.mxu0 0.0
    %1047 = vmatpush1.msra.mxu0 %v1031
    %1048 = vmatprep.subr.mxu0 0.0
    %1049 = vmatpush1.msra.mxu0 %v1032
    %1050 = vmatprep.subr.mxu0 0.0
    %1051 = vmatpush1.msra.mxu0 %v1033
    %1052 = vmatprep.subr.mxu0 0.0
    %1053 = vmatpush1.msra.mxu0 0.0
    %1054 = vmatprep.subr.mxu0 0.0
    %1055 = vmatpush1.msra.mxu0 0.0
    %1056 = vmatprep.subr.mxu0 0.0
    %1057 = vmatpush1.msra.mxu0 0.0
    %1058 = vmatprep.subr.mxu0 0.0
    %1059 = vmatpush1.msra.mxu0 0.0
    %1060 = vmatprep.subr.mxu0 0.0
    %1061 = vmatpush1.msra.mxu0 0.0
    %1062 = vmatprep.subr.mxu0 0.0
    %1063 = vmatpush1.msra.mxu0 0.0
    %1064 = vmatprep.subr.mxu0 0.0
    %1065 = vmatpush1.msra.mxu0 0.0
    %1066 = vmatprep.subr.mxu0 0.0
    %1067 = vmatpush1.msra.mxu0 0.0
    %1068 = vmatprep.subr.mxu0 0.0
    %1069 = vmatpush1.msra.mxu0 0.0
    %1070 = vmatprep.subr.mxu0 0.0
    %1071 = vmatpush1.msra.mxu0 0.0
    %1072 = vmatprep.subr.mxu0 0.0
    %1073 = vmatpush1.msra.mxu0 0.0
    %1074 = vmatprep.subr.mxu0 0.0
    %1075 = vmatpush1.msra.mxu0 0.0
    %1076 = vmatprep.subr.mxu0 0.0
    %1077 = vmatpush1.msra.mxu0 0.0
    %1078 = vmatprep.subr.mxu0 0.0
    %1079 = vmatpush1.msra.mxu0 0.0
    %1080 = vmatprep.subr.mxu0 0.0
    %1081 = vmatpush1.msra.mxu0 0.0
    %1082 = vmatprep.subr.mxu0 0.0
    %1083 = vmatpush1.msra.mxu0 0.0
    %1084 = vmatprep.subr.mxu0 0.0
    %1085 = vmatpush1.msra.mxu0 0.0
    %1086 = vmatprep.subr.mxu0 0.0
    %1087 = vmatpush1.msra.mxu0 0.0
    %1088 = vmatprep.subr.mxu0 0.0
    %1089 = vmatpush1.msra.mxu0 0.0
    %1090 = vmatprep.subr.mxu0 0.0
    %1091 = vmatpush1.msra.mxu0 0.0
    %1092 = vmatprep.subr.mxu0 0.0
    %1093 = vmatpush1.msra.mxu0 0.0
    %1094 = vmatprep.subr.mxu0 0.0
    %1095 = vmatpush1.msra.mxu0 0.0
    %1096 = vmatprep.subr.mxu0 0.0
    %1097 = vmatpush1.msra.mxu0 0.0
    %1098 = vmatprep.subr.mxu0 0.0
    %1099 = vmatpush1.msra.mxu0 0.0
    %1100 = vmatprep.subr.mxu0 0.0
    %1101 = vmatpush1.msra.mxu0 0.0
    %1102 = vmatprep.subr.mxu0 0.0
    %1103 = vmatpush1.msra.mxu0 0.0
    %1104 = vmatprep.subr.mxu0 0.0
    %1105 = vmatpush1.msra.mxu0 0.0
    %1106 = vmatprep.subr.mxu0 0.0
    %1107 = vmatpush1.msra.mxu0 0.0
    %1108 = vmatprep.mubr.f32.mxu0 0.0
    %1109 = vmatmul.mubr.f32.gmra.mrb[0].mxu0 %v1039
    %v1110 = vpop.f32.mrb[0].mxu0
    %v1111 = vadd.f32 %v1037, %v1110
    %v1112 = vpop.f32.mrb[0].mxu0
    %1113 = vmatprep.mubr.f32.mxu0 0.0
    %1114 = vmatmul.mubr.f32.gmra.mrb[0].mxu0 %v1042
    %v1115 = vpop.f32.mrb[0].mxu0
    %v1116 = vadd.f32 %v1037, %v1115
    %v1117 = vpop.f32.mrb[0].mxu0
    %1118 = vdwg.mxu0
    %v1119 = vadd.f32 %v52, %v1111
    %v1120 = vadd.f32 %v53, %v1116
    %v1121 = vsel %vm95, %v1119, 0.0
    %1122 = vadd.xlane.f32.xlu0 %v1121
    %v1123 = vpop.xlane.xlu0 %1122
    %v1124 = vsel %vm95, %v1120, 0.0
    %1125 = vadd.xlane.f32.xlu0 %v1124
    %v1126 = vpop.xlane.xlu0 %1125
    %v1127 = vrcp.pop 32.0
    %v1128 = vmul.f32 %v1123, %v1127
    %v1129 = vmul.f32 %v1126, %v1127
    %v1130 = vsub.f32 %v1119, %v1128
    %v1131 = vsub.f32 %v1120, %v1129
    %v1132 = vmul.f32 %v1130, %v1130
    %v1133 = vmul.f32 %v1131, %v1131
    %v1134 = vsel %vm95, %v1132, 0.0
    %1135 = vadd.xlane.f32.xlu0 %v1134
    %v1136 = vpop.xlane.xlu0 %1135
    %v1137 = vsel %vm95, %v1133, 0.0
    %1138 = vadd.xlane.f32.xlu0 %v1137
    %v1139 = vpop.xlane.xlu0 %1138
    %v1140 = vmul.f32 %v1136, %v1127
    %v1141 = vmul.f32 %v1139, %v1127
    %v1142 = vadd.f32 %v1140, 1e-05
    %v1143 = vadd.f32 %v1141, 1e-05
    %v1144 = vrsqrt.pop %v1142
    %v1145 = vrsqrt.pop %v1143
    %v1146 = vmul.f32 %v1130, %v1144
    %v1147 = vmul.f32 %v1131, %v1145
    %v1148 = vlaneseq
    %v1149 = vshrl.u32 %v1148, 7
    %v1150 = vsub.s32 4, %v1149
    %v1151 = vrot.slane %v85, %v1150
    %v1152 = vmul.f32 %v1146, %v1151
    %v1153 = vmul.f32 %v1147, %v1151
    %v1154 = vlaneseq
    %v1155 = vshrl.u32 %v1154, 7
    %v1156 = vsub.s32 5, %v1155
    %v1157 = vrot.slane %v85, %v1156
    %v1158 = vadd.f32 %v1152, %v1157
    %v1159 = vadd.f32 %v1153, %v1157
    %v1160 = vld [vmem:[%s5] sm:$0xff]
    %v1161 = vld [vmem:[%s5 + $0x8] sm:$0xff]
    %v1162 = vld [vmem:[%s5 + $0x10] sm:$0xff]
    %v1163 = vld [vmem:[%s5 + $0x18] sm:$0xff]
    %v1164 = vld [vmem:[%s5 + $0x20] sm:$0xff]
    %v1165 = vld [vmem:[%s5 + $0x28] sm:$0xff]
    %v1166 = vld [vmem:[%s5 + $0x30] sm:$0xff]
    %v1167 = vld [vmem:[%s5 + $0x38] sm:$0xff]
    %v1168 = vlaneseq
    %v1169 = vshrl.u32 %v1168, 7
    %v1170 = vsub.s32 2, %v1169
    %v1171 = vrot.slane %v85, %v1170
    %v1172 = vlaneseq
    %v1173 = vshrl.u32 %v1172, 7
    %v1174 = vsub.s32 2, %v1173
    %v1175 = vrot.slane %v86, %v1174
    %v1177 = vsel %vm95, %v1158, 0
    %v1180 = vsel %vm95, %v1159, 0
    %1182 = vmatprep.subr.mxu0 %v1161
    %1183 = vmatpush1.msra.mxu0 %v1160
    %1184 = vmatprep.subr.mxu0 %v1163
    %1185 = vmatpush1.msra.mxu0 %v1162
    %1186 = vmatprep.subr.mxu0 %v1165
    %1187 = vmatpush1.msra.mxu0 %v1164
    %1188 = vmatprep.subr.mxu0 %v1167
    %1189 = vmatpush1.msra.mxu0 %v1166
    %1190 = vmatprep.subr.mxu0 0.0
    %1191 = vmatpush1.msra.mxu0 0.0
    %1192 = vmatprep.subr.mxu0 0.0
    %1193 = vmatpush1.msra.mxu0 0.0
    %1194 = vmatprep.subr.mxu0 0.0
    %1195 = vmatpush1.msra.mxu0 0.0
    %1196 = vmatprep.subr.mxu0 0.0
    %1197 = vmatpush1.msra.mxu0 0.0
    %1198 = vmatprep.subr.mxu0 0.0
    %1199 = vmatpush1.msra.mxu0 0.0
    %1200 = vmatprep.subr.mxu0 0.0
    %1201 = vmatpush1.msra.mxu0 0.0
    %1202 = vmatprep.subr.mxu0 0.0
    %1203 = vmatpush1.msra.mxu0 0.0
    %1204 = vmatprep.subr.mxu0 0.0
    %1205 = vmatpush1.msra.mxu0 0.0
    %1206 = vmatprep.subr.mxu0 0.0
    %1207 = vmatpush1.msra.mxu0 0.0
    %1208 = vmatprep.subr.mxu0 0.0
    %1209 = vmatpush1.msra.mxu0 0.0
    %1210 = vmatprep.subr.mxu0 0.0
    %1211 = vmatpush1.msra.mxu0 0.0
    %1212 = vmatprep.subr.mxu0 0.0
    %1213 = vmatpush1.msra.mxu0 0.0
    %1214 = vmatprep.subr.mxu0 0.0
    %1215 = vmatpush1.msra.mxu0 0.0
    %1216 = vmatprep.subr.mxu0 0.0
    %1217 = vmatpush1.msra.mxu0 0.0
    %1218 = vmatprep.subr.mxu0 0.0
    %1219 = vmatpush1.msra.mxu0 0.0
    %1220 = vmatprep.subr.mxu0 0.0
    %1221 = vmatpush1.msra.mxu0 0.0
    %1222 = vmatprep.subr.mxu0 0.0
    %1223 = vmatpush1.msra.mxu0 0.0
    %1224 = vmatprep.subr.mxu0 0.0
    %1225 = vmatpush1.msra.mxu0 0.0
    %1226 = vmatprep.subr.mxu0 0.0
    %1227 = vmatpush1.msra.mxu0 0.0
    %1228 = vmatprep.subr.mxu0 0.0
    %1229 = vmatpush1.msra.mxu0 0.0
    %1230 = vmatprep.subr.mxu0 0.0
    %1231 = vmatpush1.msra.mxu0 0.0
    %1232 = vmatprep.subr.mxu0 0.0
    %1233 = vmatpush1.msra.mxu0 0.0
    %1234 = vmatprep.subr.mxu0 0.0
    %1235 = vmatpush1.msra.mxu0 0.0
    %1236 = vmatprep.subr.mxu0 0.0
    %1237 = vmatpush1.msra.mxu0 0.0
    %1238 = vmatprep.subr.mxu0 0.0
    %1239 = vmatpush1.msra.mxu0 0.0
    %1240 = vmatprep.subr.mxu0 0.0
    %1241 = vmatpush1.msra.mxu0 0.0
    %1242 = vmatprep.subr.mxu0 0.0
    %1243 = vmatpush1.msra.mxu0 0.0
    %1244 = vmatprep.subr.mxu0 0.0
    %1245 = vmatpush1.msra.mxu0 0.0
    %1246 = vmatprep.mubr.f32.mxu0 0.0
    %1247 = vmatmul.mubr.f32.gmra.mrb[0].mxu0 %v1177
    %v1248 = vpop.f32.mrb[0].mxu0
    %v1249 = vadd.f32 %v1171, %v1248
    %v1250 = vpop.f32.mrb[0].mxu0
    %v1251 = vadd.f32 %v1175, %v1250
    %1252 = vmatprep.mubr.f32.mxu0 0.0
    %1253 = vmatmul.mubr.f32.gmra.mrb[0].mxu0 %v1180
    %v1254 = vpop.f32.mrb[0].mxu0
    %v1255 = vadd.f32 %v1171, %v1254
    %v1256 = vpop.f32.mrb[0].mxu0
    %v1257 = vadd.f32 %v1175, %v1256
    %1258 = vdwg.mxu0
    %v1259 = vmax.f32 %v1249, 0.0
    %v1260 = vmax.f32 %v1251, 0.0
    %v1261 = vmax.f32 %v1255, 0.0
    %v1262 = vmax.f32 %v1257, 0.0
    %v1263 = vld [vmem:[%s6] sm:$0xff]
    %v1264 = vld [vmem:[%s6 + $0x8] sm:$0xff]
    %v1265 = vld [vmem:[%s6 + $0x10] sm:$0xff]
    %v1266 = vld [vmem:[%s6 + $0x18] sm:$0xff]
    %v1267 = vld [vmem:[%s6 + $0x20] sm:$0xff]
    %v1268 = vld [vmem:[%s6 + $0x28] sm:$0xff]
    %v1269 = vld [vmem:[%s6 + $0x30] sm:$0xff]
    %v1270 = vld [vmem:[%s6 + $0x38] sm:$0xff]
    %v1271 = vld [vmem:[%s6 + $0x40] sm:$0xff]
    %v1272 = vld [vmem:[%s6 + $0x48] sm:$0xff]
    %v1273 = vld [vmem:[%s6 + $0x50] sm:$0xff]
    %v1274 = vld [vmem:[%s6 + $0x58] sm:$0xff]
    %v1275 = vld [vmem:[%s6 + $0x60] sm:$0xff]
    %v1276 = vld [vmem:[%s6 + $0x68] sm:$0xff]
    %v1277 = vld [vmem:[%s6 + $0x70] sm:$0xff]
    %v1278 = vld [vmem:[%s6 + $0x78] sm:$0xff]
    %v1279 = vld [vmem:[%s6 + $0x80] sm:$0xff]
    %v1280 = vld [vmem:[%s6 + $0x88] sm:$0xff]
    %v1281 = vld [vmem:[%s6 + $0x90] sm:$0xff]
    %v1282 = vld [vmem:[%s6 + $0x98] sm:$0xff]
    %v1283 = vld [vmem:[%s6 + $0xa0] sm:$0xff]
    %v1284 = vld [vmem:[%s6 + $0xa8] sm:$0xff]
    %v1285 = vld [vmem:[%s6 + $0xb0] sm:$0xff]
    %v1286 = vld [vmem:[%s6 + $0xb8] sm:$0xff]
    %v1287 = vld [vmem:[%s6 + $0xc0] sm:$0xff]
    %v1288 = vld [vmem:[%s6 + $0xc8] sm:$0xff]
    %v1289 = vld [vmem:[%s6 + $0xd0] sm:$0xff]
    %v1290 = vld [vmem:[%s6 + $0xd8] sm:$0xff]
    %v1291 = vld [vmem:[%s6 + $0xe0] sm:$0xff]
    %v1292 = vld [vmem:[%s6 + $0xe8] sm:$0xff]
    %v1293 = vld [vmem:[%s6 + $0xf0] sm:$0xff]
    %v1294 = vld [vmem:[%s6 + $0xf8] sm:$0xff]
    %v1295 = vlaneseq
    %v1296 = vshrl.u32 %v1295, 7
    %v1297 = vsub.s32 3, %v1296
    %v1298 = vrot.slane %v85, %v1297
    %1299 = vmatprep.subr.mxu0 0.0
    %1300 = vmatpush1.msra.mxu0 %v1263
    %1301 = vmatprep.subr.mxu0 0.0
    %1302 = vmatpush1.msra.mxu0 %v1264
    %1303 = vmatprep.subr.mxu0 0.0
    %1304 = vmatpush1.msra.mxu0 %v1265
    %1305 = vmatprep.subr.mxu0 0.0
    %1306 = vmatpush1.msra.mxu0 %v1266
    %1307 = vmatprep.subr.mxu0 0.0
    %1308 = vmatpush1.msra.mxu0 %v1267
    %1309 = vmatprep.subr.mxu0 0.0
    %1310 = vmatpush1.msra.mxu0 %v1268
    %1311 = vmatprep.subr.mxu0 0.0
    %1312 = vmatpush1.msra.mxu0 %v1269
    %1313 = vmatprep.subr.mxu0 0.0
    %1314 = vmatpush1.msra.mxu0 %v1270
    %1315 = vmatprep.subr.mxu0 0.0
    %1316 = vmatpush1.msra.mxu0 %v1271
    %1317 = vmatprep.subr.mxu0 0.0
    %1318 = vmatpush1.msra.mxu0 %v1272
    %1319 = vmatprep.subr.mxu0 0.0
    %1320 = vmatpush1.msra.mxu0 %v1273
    %1321 = vmatprep.subr.mxu0 0.0
    %1322 = vmatpush1.msra.mxu0 %v1274
    %1323 = vmatprep.subr.mxu0 0.0
    %1324 = vmatpush1.msra.mxu0 %v1275
    %1325 = vmatprep.subr.mxu0 0.0
    %1326 = vmatpush1.msra.mxu0 %v1276
    %1327 = vmatprep.subr.mxu0 0.0
    %1328 = vmatpush1.msra.mxu0 %v1277
    %1329 = vmatprep.subr.mxu0 0.0
    %1330 = vmatpush1.msra.mxu0 %v1278
    %1331 = vmatprep.subr.mxu0 0.0
    %1332 = vmatpush1.msra.mxu0 %v1279
    %1333 = vmatprep.subr.mxu0 0.0
    %1334 = vmatpush1.msra.mxu0 %v1280
    %1335 = vmatprep.subr.mxu0 0.0
    %1336 = vmatpush1.msra.mxu0 %v1281
    %1337 = vmatprep.subr.mxu0 0.0
    %1338 = vmatpush1.msra.mxu0 %v1282
    %1339 = vmatprep.subr.mxu0 0.0
    %1340 = vmatpush1.msra.mxu0 %v1283
    %1341 = vmatprep.subr.mxu0 0.0
    %1342 = vmatpush1.msra.mxu0 %v1284
    %1343 = vmatprep.subr.mxu0 0.0
    %1344 = vmatpush1.msra.mxu0 %v1285
    %1345 = vmatprep.subr.mxu0 0.0
    %1346 = vmatpush1.msra.mxu0 %v1286
    %1347 = vmatprep.subr.mxu0 0.0
    %1348 = vmatpush1.msra.mxu0 %v1287
    %1349 = vmatprep.subr.mxu0 0.0
    %1350 = vmatpush1.msra.mxu0 %v1288
    %1351 = vmatprep.subr.mxu0 0.0
    %1352 = vmatpush1.msra.mxu0 %v1289
    %1353 = vmatprep.subr.mxu0 0.0
    %1354 = vmatpush1.msra.mxu0 %v1290
    %1355 = vmatprep.subr.mxu0 0.0
    %1356 = vmatpush1.msra.mxu0 %v1291
    %1357 = vmatprep.subr.mxu0 0.0
    %1358 = vmatpush1.msra.mxu0 %v1292
    %1359 = vmatprep.subr.mxu0 0.0
    %1360 = vmatpush1.msra.mxu0 %v1293
    %1361 = vmatprep.subr.mxu0 0.0
    %1362 = vmatpush1.msra.mxu0 %v1294
    %1363 = vmatprep.mubr.f32.mxu0 %v1260
    %1364 = vmatmul.mubr.f32.gmra.mrb[0].mxu0 %v1259
    %v1365 = vpop.f32.mrb[0].mxu0
    %v1366 = vadd.f32 %v1298, %v1365
    %v1367 = vpop.f32.mrb[0].mxu0
    %1368 = vmatprep.mubr.f32.mxu0 %v1262
    %1369 = vmatmul.mubr.f32.gmra.mrb[0].mxu0 %v1261
    %v1370 = vpop.f32.mrb[0].mxu0
    %v1371 = vadd.f32 %v1298, %v1370
    %v1372 = vpop.f32.mrb[0].mxu0
    %1373 = vdwg.mxu0
    %v1374 = vadd.f32 %v1158, %v1366
    %v1375 = vadd.f32 %v1159, %v1371
    %v1376 = vsel %vm95, %v1374, 0.0
    %1377 = vadd.xlane.f32.xlu0 %v1376
    %v1378 = vpop.xlane.xlu0 %1377
    %v1379 = vsel %vm95, %v1375, 0.0
    %1380 = vadd.xlane.f32.xlu0 %v1379
    %v1381 = vpop.xlane.xlu0 %1380
    %v1382 = vmul.f32 %v1378, %v1127
    %v1383 = vmul.f32 %v1381, %v1127
    %v1384 = vsub.f32 %v1374, %v1382
    %v1385 = vsub.f32 %v1375, %v1383
    %v1386 = vmul.f32 %v1384, %v1384
    %v1387 = vmul.f32 %v1385, %v1385
    %v1388 = vsel %vm95, %v1386, 0.0
    %1389 = vadd.xlane.f32.xlu0 %v1388
    %v1390 = vpop.xlane.xlu0 %1389
    %v1391 = vsel %vm95, %v1387, 0.0
    %1392 = vadd.xlane.f32.xlu0 %v1391
    %v1393 = vpop.xlane.xlu0 %1392
    %v1394 = vmul.f32 %v1390, %v1127
    %v1395 = vmul.f32 %v1393, %v1127
    %v1396 = vadd.f32 %v1394, 1e-05
    %v1397 = vadd.f32 %v1395, 1e-05
    %v1398 = vrsqrt.pop %v1396
    %v1399 = vrsqrt.pop %v1397
    %v1400 = vmul.f32 %v1384, %v1398
    %v1401 = vmul.f32 %v1385, %v1399
    %v1402 = vlaneseq
    %v1403 = vshrl.u32 %v1402, 7
    %v1404 = vsub.s32 6, %v1403
    %v1405 = vrot.slane %v85, %v1404
    %v1406 = vmul.f32 %v1400, %v1405
    %v1407 = vmul.f32 %v1401, %v1405
    %v1408 = vlaneseq
    %v1409 = vshrl.u32 %v1408, 7
    %v1410 = vsub.s32 7, %v1409
    %v1411 = vrot.slane %v85, %v1410
    %v1412 = vadd.f32 %v1406, %v1411
    %v1413 = vadd.f32 %v1407, %v1411
    %s1414 = scalar_lea.vmem %s7, 16
    %v1415 = vld [vmem:[%s1414] sm:$0xff]
    %v1416 = vld [vmem:[%s1414 + $0x8] sm:$0xff]
    %s1417 = scalar_lea.vmem %s3, 32
    %v1418 = vld [vmem:[%s1417] sm:$0xff]
    %v1419 = vld [vmem:[%s1417 + $0x8] sm:$0xff]
    %v1420 = vld [vmem:[%s1417 + $0x10] sm:$0xff]
    %v1421 = vld [vmem:[%s1417 + $0x18] sm:$0xff]
    %v1422 = vlaneseq
    %v1423 = vshrl.u32 %v1422, 7
    %v1424 = vsub.s32 0, %v1423
    %v1425 = vrot.slane %v1415, %v1424
    %v1427 = vsel %vm95, %v1412, 0
    %v1430 = vsel %vm95, %v1413, 0
    %1432 = vmatprep.subr.mxu0 0.0
    %1433 = vmatpush1.msra.mxu0 %v1418
    %1434 = vmatprep.subr.mxu0 0.0
    %1435 = vmatpush1.msra.mxu0 %v1419
    %1436 = vmatprep.subr.mxu0 0.0
    %1437 = vmatpush1.msra.mxu0 %v1420
    %1438 = vmatprep.subr.mxu0 0.0
    %1439 = vmatpush1.msra.mxu0 %v1421
    %1440 = vmatprep.subr.mxu0 0.0
    %1441 = vmatpush1.msra.mxu0 0.0
    %1442 = vmatprep.subr.mxu0 0.0
    %1443 = vmatpush1.msra.mxu0 0.0
    %1444 = vmatprep.subr.mxu0 0.0
    %1445 = vmatpush1.msra.mxu0 0.0
    %1446 = vmatprep.subr.mxu0 0.0
    %1447 = vmatpush1.msra.mxu0 0.0
    %1448 = vmatprep.subr.mxu0 0.0
    %1449 = vmatpush1.msra.mxu0 0.0
    %1450 = vmatprep.subr.mxu0 0.0
    %1451 = vmatpush1.msra.mxu0 0.0
    %1452 = vmatprep.subr.mxu0 0.0
    %1453 = vmatpush1.msra.mxu0 0.0
    %1454 = vmatprep.subr.mxu0 0.0
    %1455 = vmatpush1.msra.mxu0 0.0
    %1456 = vmatprep.subr.mxu0 0.0
    %1457 = vmatpush1.msra.mxu0 0.0
    %1458 = vmatprep.subr.mxu0 0.0
    %1459 = vmatpush1.msra.mxu0 0.0
    %1460 = vmatprep.subr.mxu0 0.0
    %1461 = vmatpush1.msra.mxu0 0.0
    %1462 = vmatprep.subr.mxu0 0.0
    %1463 = vmatpush1.msra.mxu0 0.0
    %1464 = vmatprep.subr.mxu0 0.0
    %1465 = vmatpush1.msra.mxu0 0.0
    %1466 = vmatprep.subr.mxu0 0.0
    %1467 = vmatpush1.msra.mxu0 0.0
    %1468 = vmatprep.subr.mxu0 0.0
    %1469 = vmatpush1.msra.mxu0 0.0
    %1470 = vmatprep.subr.mxu0 0.0
    %1471 = vmatpush1.msra.mxu0 0.0
    %1472 = vmatprep.subr.mxu0 0.0
    %1473 = vmatpush1.msra.mxu0 0.0
    %1474 = vmatprep.subr.mxu0 0.0
    %1475 = vmatpush1.msra.mxu0 0.0
    %1476 = vmatprep.subr.mxu0 0.0
    %1477 = vmatpush1.msra.mxu0 0.0
    %1478 = vmatprep.subr.mxu0 0.0
    %1479 = vmatpush1.msra.mxu0 0.0
    %1480 = vmatprep.subr.mxu0 0.0
    %1481 = vmatpush1.msra.mxu0 0.0
    %1482 = vmatprep.subr.mxu0 0.0
    %1483 = vmatpush1.msra.mxu0 0.0
    %1484 = vmatprep.subr.mxu0 0.0
    %1485 = vmatpush1.msra.mxu0 0.0
    %1486 = vmatprep.subr.mxu0 0.0
    %1487 = vmatpush1.msra.mxu0 0.0
    %1488 = vmatprep.subr.mxu0 0.0
    %1489 = vmatpush1.msra.mxu0 0.0
    %1490 = vmatprep.subr.mxu0 0.0
    %1491 = vmatpush1.msra.mxu0 0.0
    %1492 = vmatprep.subr.mxu0 0.0
    %1493 = vmatpush1.msra.mxu0 0.0
    %1494 = vmatprep.subr.mxu0 0.0
    %1495 = vmatpush1.msra.mxu0 0.0
    %1496 = vmatprep.mubr.f32.mxu0 0.0
    %1497 = vmatmul.mubr.f32.gmra.mrb[0].mxu0 %v1427
    %v1498 = vpop.f32.mrb[0].mxu0
    %v1499 = vadd.f32 %v1425, %v1498
    %v1500 = vpop.f32.mrb[0].mxu0
    %1501 = vmatprep.mubr.f32.mxu0 0.0
    %1502 = vmatmul.mubr.f32.gmra.mrb[0].mxu0 %v1430
    %v1503 = vpop.f32.mrb[0].mxu0
    %v1504 = vadd.f32 %v1425, %v1503
    %v1505 = vpop.f32.mrb[0].mxu0
    %1506 = vdwg.mxu0
    %1509 = vrot.lane.b32.xlu0 %v1499, 96
    %v1510 = vpop.permute.xlu0 %1509
    %1511 = vrot.lane.b32.xlu0 %v1504, 96
    %v1512 = vpop.permute.xlu0 %1511
    %v1513 = vsel %vm183, %v1499, 0
    %v1515 = vsel %vm183, %v1504, 0
    %v1517 = vsel %vm183, %v1510, 0
    %v1519 = vsel %vm183, %v1512, 0
    %1521 = vmatprep.subr.mxu0 0.0
    %1522 = vmatpush1.xpose.msra.mxu0 %v1517
    %1523 = vmatprep.subr.mxu0 0.0
    %1524 = vmatpush1.xpose.msra.mxu0 %v1519
    %1525 = vmatprep.subr.mxu0 0.0
    %1526 = vmatpush1.xpose.msra.mxu0 0.0
    %1527 = vmatprep.subr.mxu0 0.0
    %1528 = vmatpush1.xpose.msra.mxu0 0.0
    %1529 = vmatprep.subr.mxu0 0.0
    %1530 = vmatpush1.xpose.msra.mxu0 0.0
    %1531 = vmatprep.subr.mxu0 0.0
    %1532 = vmatpush1.xpose.msra.mxu0 0.0
    %1533 = vmatprep.subr.mxu0 0.0
    %1534 = vmatpush1.xpose.msra.mxu0 0.0
    %1535 = vmatprep.subr.mxu0 0.0
    %1536 = vmatpush1.xpose.msra.mxu0 0.0
    %1537 = vmatprep.subr.mxu0 0.0
    %1538 = vmatpush1.xpose.msra.mxu0 0.0
    %1539 = vmatprep.subr.mxu0 0.0
    %1540 = vmatpush1.xpose.msra.mxu0 0.0
    %1541 = vmatprep.subr.mxu0 0.0
    %1542 = vmatpush1.xpose.msra.mxu0 0.0
    %1543 = vmatprep.subr.mxu0 0.0
    %1544 = vmatpush1.xpose.msra.mxu0 0.0
    %1545 = vmatprep.subr.mxu0 0.0
    %1546 = vmatpush1.xpose.msra.mxu0 0.0
    %1547 = vmatprep.subr.mxu0 0.0
    %1548 = vmatpush1.xpose.msra.mxu0 0.0
    %1549 = vmatprep.subr.mxu0 0.0
    %1550 = vmatpush1.xpose.msra.mxu0 0.0
    %1551 = vmatprep.subr.mxu0 0.0
    %1552 = vmatpush1.xpose.msra.mxu0 0.0
    %1553 = vmatprep.subr.mxu0 0.0
    %1554 = vmatpush1.xpose.msra.mxu0 0.0
    %1555 = vmatprep.subr.mxu0 0.0
    %1556 = vmatpush1.xpose.msra.mxu0 0.0
    %1557 = vmatprep.subr.mxu0 0.0
    %1558 = vmatpush1.xpose.msra.mxu0 0.0
    %1559 = vmatprep.subr.mxu0 0.0
    %1560 = vmatpush1.xpose.msra.mxu0 0.0
    %1561 = vmatprep.subr.mxu0 0.0
    %1562 = vmatpush1.xpose.msra.mxu0 0.0
    %1563 = vmatprep.subr.mxu0 0.0
    %1564 = vmatpush1.xpose.msra.mxu0 0.0
    %1565 = vmatprep.subr.mxu0 0.0
    %1566 = vmatpush1.xpose.msra.mxu0 0.0
    %1567 = vmatprep.subr.mxu0 0.0
    %1568 = vmatpush1.xpose.msra.mxu0 0.0
    %1569 = vmatprep.subr.mxu0 0.0
    %1570 = vmatpush1.xpose.msra.mxu0 0.0
    %1571 = vmatprep.subr.mxu0 0.0
    %1572 = vmatpush1.xpose.msra.mxu0 0.0
    %1573 = vmatprep.subr.mxu0 0.0
    %1574 = vmatpush1.xpose.msra.mxu0 0.0
    %1575 = vmatprep.subr.mxu0 0.0
    %1576 = vmatpush1.xpose.msra.mxu0 0.0
    %1577 = vmatprep.subr.mxu0 0.0
    %1578 = vmatpush1.xpose.msra.mxu0 0.0
    %1579 = vmatprep.subr.mxu0 0.0
    %1580 = vmatpush1.xpose.msra.mxu0 0.0
    %1581 = vmatprep.subr.mxu0 0.0
    %1582 = vmatpush1.xpose.msra.mxu0 0.0
    %1583 = vmatprep.subr.mxu0 0.0
    %1584 = vmatpush1.xpose.msra.mxu0 0.0
    %1585 = vmatprep.mubr.f32.mxu0 0.0
    %1586 = vmatmul.mubr.f32.gmra.mrb[0].mxu0 %v1513
    %v1587 = vpop.f32.mrb[0].mxu0
    %v1588 = vadd.f32 0.0, %v1587
    %v1589 = vpop.f32.mrb[0].mxu0
    %1590 = vmatprep.mubr.f32.mxu0 0.0
    %1591 = vmatmul.mubr.f32.gmra.mrb[0].mxu0 %v1515
    %v1592 = vpop.f32.mrb[0].mxu0
    %v1593 = vadd.f32 0.0, %v1592
    %v1594 = vpop.f32.mrb[0].mxu0
    %1595 = vdwg.mxu0
    %v1596 = vmul.f32 %v1588, 0.35355338
    %v1597 = vmul.f32 %v1593, 0.35355338
    %v1598 = vadd.f32 %v1596, %v83
    %v1599 = vadd.f32 %v1597, %v84
    %v1600 = vsel %vm271, %v1598, -inf
    %1601 = vmax.xlane.f32.xlu0 %v1600
    %v1602 = vpop.xlane.xlu0 %1601
    %v1603 = vsel %vm271, %v1599, -inf
    %1604 = vmax.xlane.f32.xlu0 %v1603
    %v1605 = vpop.xlane.xlu0 %1604
    %v1606 = vsub.f32 %v1598, %v1602
    %v1607 = vsub.f32 %v1599, %v1605
    %v1608 = vmul.f32 %v1606, 1.442695
    %v1609 = vpow.pop %v1608
    %v1610 = vmul.f32 %v1607, 1.442695
    %v1611 = vpow.pop %v1610
    %v1612 = vsel %vm271, %v1609, 0.0
    %1613 = vadd.xlane.f32.xlu0 %v1612
    %v1614 = vpop.xlane.xlu0 %1613
    %v1615 = vsel %vm271, %v1611, 0.0
    %1616 = vadd.xlane.f32.xlu0 %v1615
    %v1617 = vpop.xlane.xlu0 %1616
    %v1618 = vrcp.pop %v1614
    %v1619 = vrcp.pop %v1617
    %v1620 = vmul.f32 %v1609, %v1618
    %v1621 = vmul.f32 %v1611, %v1619
    %1622 = vrot.lane.b32.xlu0 %v1499, 64
    %v1623 = vpop.permute.xlu0 %1622
    %1624 = vrot.lane.b32.xlu0 %v1504, 64
    %v1625 = vpop.permute.xlu0 %1624
    %v1629 = vsel %vm271, %v1620, 0
    %v1632 = vsel %vm271, %v1621, 0
    %1634 = vmatprep.subr.mxu0 0.0
    %1635 = vmatpush1.msra.mxu0 %v1623
    %1636 = vmatprep.subr.mxu0 0.0
    %1637 = vmatpush1.msra.mxu0 %v1625
    %1638 = vmatprep.subr.mxu0 0.0
    %1639 = vmatpush1.msra.mxu0 0.0
    %1640 = vmatprep.subr.mxu0 0.0
    %1641 = vmatpush1.msra.mxu0 0.0
    %1642 = vmatprep.subr.mxu0 0.0
    %1643 = vmatpush1.msra.mxu0 0.0
    %1644 = vmatprep.subr.mxu0 0.0
    %1645 = vmatpush1.msra.mxu0 0.0
    %1646 = vmatprep.subr.mxu0 0.0
    %1647 = vmatpush1.msra.mxu0 0.0
    %1648 = vmatprep.subr.mxu0 0.0
    %1649 = vmatpush1.msra.mxu0 0.0
    %1650 = vmatprep.subr.mxu0 0.0
    %1651 = vmatpush1.msra.mxu0 0.0
    %1652 = vmatprep.subr.mxu0 0.0
    %1653 = vmatpush1.msra.mxu0 0.0
    %1654 = vmatprep.subr.mxu0 0.0
    %1655 = vmatpush1.msra.mxu0 0.0
    %1656 = vmatprep.subr.mxu0 0.0
    %1657 = vmatpush1.msra.mxu0 0.0
    %1658 = vmatprep.subr.mxu0 0.0
    %1659 = vmatpush1.msra.mxu0 0.0
    %1660 = vmatprep.subr.mxu0 0.0
    %1661 = vmatpush1.msra.mxu0 0.0
    %1662 = vmatprep.subr.mxu0 0.0
    %1663 = vmatpush1.msra.mxu0 0.0
    %1664 = vmatprep.subr.mxu0 0.0
    %1665 = vmatpush1.msra.mxu0 0.0
    %1666 = vmatprep.subr.mxu0 0.0
    %1667 = vmatpush1.msra.mxu0 0.0
    %1668 = vmatprep.subr.mxu0 0.0
    %1669 = vmatpush1.msra.mxu0 0.0
    %1670 = vmatprep.subr.mxu0 0.0
    %1671 = vmatpush1.msra.mxu0 0.0
    %1672 = vmatprep.subr.mxu0 0.0
    %1673 = vmatpush1.msra.mxu0 0.0
    %1674 = vmatprep.subr.mxu0 0.0
    %1675 = vmatpush1.msra.mxu0 0.0
    %1676 = vmatprep.subr.mxu0 0.0
    %1677 = vmatpush1.msra.mxu0 0.0
    %1678 = vmatprep.subr.mxu0 0.0
    %1679 = vmatpush1.msra.mxu0 0.0
    %1680 = vmatprep.subr.mxu0 0.0
    %1681 = vmatpush1.msra.mxu0 0.0
    %1682 = vmatprep.subr.mxu0 0.0
    %1683 = vmatpush1.msra.mxu0 0.0
    %1684 = vmatprep.subr.mxu0 0.0
    %1685 = vmatpush1.msra.mxu0 0.0
    %1686 = vmatprep.subr.mxu0 0.0
    %1687 = vmatpush1.msra.mxu0 0.0
    %1688 = vmatprep.subr.mxu0 0.0
    %1689 = vmatpush1.msra.mxu0 0.0
    %1690 = vmatprep.subr.mxu0 0.0
    %1691 = vmatpush1.msra.mxu0 0.0
    %1692 = vmatprep.subr.mxu0 0.0
    %1693 = vmatpush1.msra.mxu0 0.0
    %1694 = vmatprep.subr.mxu0 0.0
    %1695 = vmatpush1.msra.mxu0 0.0
    %1696 = vmatprep.subr.mxu0 0.0
    %1697 = vmatpush1.msra.mxu0 0.0
    %1698 = vmatprep.mubr.f32.mxu0 0.0
    %1699 = vmatmul.mubr.f32.gmra.mrb[0].mxu0 %v1629
    %v1700 = vpop.f32.mrb[0].mxu0
    %v1701 = vadd.f32 0.0, %v1700
    %v1702 = vpop.f32.mrb[0].mxu0
    %1703 = vmatprep.mubr.f32.mxu0 0.0
    %1704 = vmatmul.mubr.f32.gmra.mrb[0].mxu0 %v1632
    %v1705 = vpop.f32.mrb[0].mxu0
    %v1706 = vadd.f32 0.0, %v1705
    %v1707 = vpop.f32.mrb[0].mxu0
    %1708 = vdwg.mxu0
    %1709 = vst.msk [vmem:[#allocation2] sm:$0xff] %vm183, %v1701
    %1710 = vst.msk [vmem:[#allocation2 + $0x8] sm:$0xff] %vm183, %v1706
    %1711 = vrot.lane.b32.xlu0 %v1499, 120
    %v1712 = vpop.permute.xlu0 %1711
    %1713 = vrot.lane.b32.xlu0 %v1504, 120
    %v1714 = vpop.permute.xlu0 %1713
    %1715 = vrot.lane.b32.xlu0 %v1499, 88
    %v1716 = vpop.permute.xlu0 %1715
    %1717 = vrot.lane.b32.xlu0 %v1504, 88
    %v1718 = vpop.permute.xlu0 %1717
    %v1719 = vsel %vm183, %v1712, 0
    %v1721 = vsel %vm183, %v1714, 0
    %v1723 = vsel %vm183, %v1716, 0
    %v1725 = vsel %vm183, %v1718, 0
    %1727 = vmatprep.subr.mxu0 0.0
    %1728 = vmatpush1.xpose.msra.mxu0 %v1723
    %1729 = vmatprep.subr.mxu0 0.0
    %1730 = vmatpush1.xpose.msra.mxu0 %v1725
    %1731 = vmatprep.subr.mxu0 0.0
    %1732 = vmatpush1.xpose.msra.mxu0 0.0
    %1733 = vmatprep.subr.mxu0 0.0
    %1734 = vmatpush1.xpose.msra.mxu0 0.0
    %1735 = vmatprep.subr.mxu0 0.0
    %1736 = vmatpush1.xpose.msra.mxu0 0.0
    %1737 = vmatprep.subr.mxu0 0.0
    %1738 = vmatpush1.xpose.msra.mxu0 0.0
    %1739 = vmatprep.subr.mxu0 0.0
    %1740 = vmatpush1.xpose.msra.mxu0 0.0
    %1741 = vmatprep.subr.mxu0 0.0
    %1742 = vmatpush1.xpose.msra.mxu0 0.0
    %1743 = vmatprep.subr.mxu0 0.0
    %1744 = vmatpush1.xpose.msra.mxu0 0.0
    %1745 = vmatprep.subr.mxu0 0.0
    %1746 = vmatpush1.xpose.msra.mxu0 0.0
    %1747 = vmatprep.subr.mxu0 0.0
    %1748 = vmatpush1.xpose.msra.mxu0 0.0
    %1749 = vmatprep.subr.mxu0 0.0
    %1750 = vmatpush1.xpose.msra.mxu0 0.0
    %1751 = vmatprep.subr.mxu0 0.0
    %1752 = vmatpush1.xpose.msra.mxu0 0.0
    %1753 = vmatprep.subr.mxu0 0.0
    %1754 = vmatpush1.xpose.msra.mxu0 0.0
    %1755 = vmatprep.subr.mxu0 0.0
    %1756 = vmatpush1.xpose.msra.mxu0 0.0
    %1757 = vmatprep.subr.mxu0 0.0
    %1758 = vmatpush1.xpose.msra.mxu0 0.0
    %1759 = vmatprep.subr.mxu0 0.0
    %1760 = vmatpush1.xpose.msra.mxu0 0.0
    %1761 = vmatprep.subr.mxu0 0.0
    %1762 = vmatpush1.xpose.msra.mxu0 0.0
    %1763 = vmatprep.subr.mxu0 0.0
    %1764 = vmatpush1.xpose.msra.mxu0 0.0
    %1765 = vmatprep.subr.mxu0 0.0
    %1766 = vmatpush1.xpose.msra.mxu0 0.0
    %1767 = vmatprep.subr.mxu0 0.0
    %1768 = vmatpush1.xpose.msra.mxu0 0.0
    %1769 = vmatprep.subr.mxu0 0.0
    %1770 = vmatpush1.xpose.msra.mxu0 0.0
    %1771 = vmatprep.subr.mxu0 0.0
    %1772 = vmatpush1.xpose.msra.mxu0 0.0
    %1773 = vmatprep.subr.mxu0 0.0
    %1774 = vmatpush1.xpose.msra.mxu0 0.0
    %1775 = vmatprep.subr.mxu0 0.0
    %1776 = vmatpush1.xpose.msra.mxu0 0.0
    %1777 = vmatprep.subr.mxu0 0.0
    %1778 = vmatpush1.xpose.msra.mxu0 0.0
    %1779 = vmatprep.subr.mxu0 0.0
    %1780 = vmatpush1.xpose.msra.mxu0 0.0
    %1781 = vmatprep.subr.mxu0 0.0
    %1782 = vmatpush1.xpose.msra.mxu0 0.0
    %1783 = vmatprep.subr.mxu0 0.0
    %1784 = vmatpush1.xpose.msra.mxu0 0.0
    %1785 = vmatprep.subr.mxu0 0.0
    %1786 = vmatpush1.xpose.msra.mxu0 0.0
    %1787 = vmatprep.subr.mxu0 0.0
    %1788 = vmatpush1.xpose.msra.mxu0 0.0
    %1789 = vmatprep.subr.mxu0 0.0
    %1790 = vmatpush1.xpose.msra.mxu0 0.0
    %1791 = vmatprep.mubr.f32.mxu0 0.0
    %1792 = vmatmul.mubr.f32.gmra.mrb[0].mxu0 %v1719
    %v1793 = vpop.f32.mrb[0].mxu0
    %v1794 = vadd.f32 0.0, %v1793
    %v1795 = vpop.f32.mrb[0].mxu0
    %1796 = vmatprep.mubr.f32.mxu0 0.0
    %1797 = vmatmul.mubr.f32.gmra.mrb[0].mxu0 %v1721
    %v1798 = vpop.f32.mrb[0].mxu0
    %v1799 = vadd.f32 0.0, %v1798
    %v1800 = vpop.f32.mrb[0].mxu0
    %1801 = vdwg.mxu0
    %v1802 = vmul.f32 %v1794, 0.35355338
    %v1803 = vmul.f32 %v1799, 0.35355338
    %v1804 = vadd.f32 %v1802, %v83
    %v1805 = vadd.f32 %v1803, %v84
    %v1806 = vsel %vm271, %v1804, -inf
    %1807 = vmax.xlane.f32.xlu0 %v1806
    %v1808 = vpop.xlane.xlu0 %1807
    %v1809 = vsel %vm271, %v1805, -inf
    %1810 = vmax.xlane.f32.xlu0 %v1809
    %v1811 = vpop.xlane.xlu0 %1810
    %v1812 = vsub.f32 %v1804, %v1808
    %v1813 = vsub.f32 %v1805, %v1811
    %v1814 = vmul.f32 %v1812, 1.442695
    %v1815 = vpow.pop %v1814
    %v1816 = vmul.f32 %v1813, 1.442695
    %v1817 = vpow.pop %v1816
    %v1818 = vsel %vm271, %v1815, 0.0
    %1819 = vadd.xlane.f32.xlu0 %v1818
    %v1820 = vpop.xlane.xlu0 %1819
    %v1821 = vsel %vm271, %v1817, 0.0
    %1822 = vadd.xlane.f32.xlu0 %v1821
    %v1823 = vpop.xlane.xlu0 %1822
    %v1824 = vrcp.pop %v1820
    %v1825 = vrcp.pop %v1823
    %v1826 = vmul.f32 %v1815, %v1824
    %v1827 = vmul.f32 %v1817, %v1825
    %1828 = vrot.lane.b32.xlu0 %v1499, 56
    %v1829 = vpop.permute.xlu0 %1828
    %1830 = vrot.lane.b32.xlu0 %v1504, 56
    %v1831 = vpop.permute.xlu0 %1830
    %v1835 = vsel %vm271, %v1826, 0
    %v1838 = vsel %vm271, %v1827, 0
    %1840 = vmatprep.subr.mxu0 0.0
    %1841 = vmatpush1.msra.mxu0 %v1829
    %1842 = vmatprep.subr.mxu0 0.0
    %1843 = vmatpush1.msra.mxu0 %v1831
    %1844 = vmatprep.subr.mxu0 0.0
    %1845 = vmatpush1.msra.mxu0 0.0
    %1846 = vmatprep.subr.mxu0 0.0
    %1847 = vmatpush1.msra.mxu0 0.0
    %1848 = vmatprep.subr.mxu0 0.0
    %1849 = vmatpush1.msra.mxu0 0.0
    %1850 = vmatprep.subr.mxu0 0.0
    %1851 = vmatpush1.msra.mxu0 0.0
    %1852 = vmatprep.subr.mxu0 0.0
    %1853 = vmatpush1.msra.mxu0 0.0
    %1854 = vmatprep.subr.mxu0 0.0
    %1855 = vmatpush1.msra.mxu0 0.0
    %1856 = vmatprep.subr.mxu0 0.0
    %1857 = vmatpush1.msra.mxu0 0.0
    %1858 = vmatprep.subr.mxu0 0.0
    %1859 = vmatpush1.msra.mxu0 0.0
    %1860 = vmatprep.subr.mxu0 0.0
    %1861 = vmatpush1.msra.mxu0 0.0
    %1862 = vmatprep.subr.mxu0 0.0
    %1863 = vmatpush1.msra.mxu0 0.0
    %1864 = vmatprep.subr.mxu0 0.0
    %1865 = vmatpush1.msra.mxu0 0.0
    %1866 = vmatprep.subr.mxu0 0.0
    %1867 = vmatpush1.msra.mxu0 0.0
    %1868 = vmatprep.subr.mxu0 0.0
    %1869 = vmatpush1.msra.mxu0 0.0
    %1870 = vmatprep.subr.mxu0 0.0
    %1871 = vmatpush1.msra.mxu0 0.0
    %1872 = vmatprep.subr.mxu0 0.0
    %1873 = vmatpush1.msra.mxu0 0.0
    %1874 = vmatprep.subr.mxu0 0.0
    %1875 = vmatpush1.msra.mxu0 0.0
    %1876 = vmatprep.subr.mxu0 0.0
    %1877 = vmatpush1.msra.mxu0 0.0
    %1878 = vmatprep.subr.mxu0 0.0
    %1879 = vmatpush1.msra.mxu0 0.0
    %1880 = vmatprep.subr.mxu0 0.0
    %1881 = vmatpush1.msra.mxu0 0.0
    %1882 = vmatprep.subr.mxu0 0.0
    %1883 = vmatpush1.msra.mxu0 0.0
    %1884 = vmatprep.subr.mxu0 0.0
    %1885 = vmatpush1.msra.mxu0 0.0
    %1886 = vmatprep.subr.mxu0 0.0
    %1887 = vmatpush1.msra.mxu0 0.0
    %1888 = vmatprep.subr.mxu0 0.0
    %1889 = vmatpush1.msra.mxu0 0.0
    %1890 = vmatprep.subr.mxu0 0.0
    %1891 = vmatpush1.msra.mxu0 0.0
    %1892 = vmatprep.subr.mxu0 0.0
    %1893 = vmatpush1.msra.mxu0 0.0
    %1894 = vmatprep.subr.mxu0 0.0
    %1895 = vmatpush1.msra.mxu0 0.0
    %1896 = vmatprep.subr.mxu0 0.0
    %1897 = vmatpush1.msra.mxu0 0.0
    %1898 = vmatprep.subr.mxu0 0.0
    %1899 = vmatpush1.msra.mxu0 0.0
    %1900 = vmatprep.subr.mxu0 0.0
    %1901 = vmatpush1.msra.mxu0 0.0
    %1902 = vmatprep.subr.mxu0 0.0
    %1903 = vmatpush1.msra.mxu0 0.0
    %1904 = vmatprep.mubr.f32.mxu0 0.0
    %1905 = vmatmul.mubr.f32.gmra.mrb[0].mxu0 %v1835
    %v1906 = vpop.f32.mrb[0].mxu0
    %v1907 = vadd.f32 0.0, %v1906
    %v1908 = vpop.f32.mrb[0].mxu0
    %1909 = vmatprep.mubr.f32.mxu0 0.0
    %1910 = vmatmul.mubr.f32.gmra.mrb[0].mxu0 %v1838
    %v1911 = vpop.f32.mrb[0].mxu0
    %v1912 = vadd.f32 0.0, %v1911
    %v1913 = vpop.f32.mrb[0].mxu0
    %1914 = vdwg.mxu0
    %1917 = vrot.lane.b32.xlu0 %v1907, 8
    %v1918 = vpop.permute.xlu0 %1917
    %1919 = vrot.lane.b32.xlu0 %v1912, 8
    %v1920 = vpop.permute.xlu0 %1919
    %1923 = vst.msk [vmem:[#allocation2] sm:$0xff] %vm595, %v1918
    %1924 = vst.msk [vmem:[#allocation2 + $0x8] sm:$0xff] %vm595, %v1920
    %1925 = vrot.lane.b32.xlu0 %v1499, 112
    %v1926 = vpop.permute.xlu0 %1925
    %1927 = vrot.lane.b32.xlu0 %v1504, 112
    %v1928 = vpop.permute.xlu0 %1927
    %1929 = vrot.lane.b32.xlu0 %v1499, 80
    %v1930 = vpop.permute.xlu0 %1929
    %1931 = vrot.lane.b32.xlu0 %v1504, 80
    %v1932 = vpop.permute.xlu0 %1931
    %v1933 = vsel %vm183, %v1926, 0
    %v1935 = vsel %vm183, %v1928, 0
    %v1937 = vsel %vm183, %v1930, 0
    %v1939 = vsel %vm183, %v1932, 0
    %1941 = vmatprep.subr.mxu0 0.0
    %1942 = vmatpush1.xpose.msra.mxu0 %v1937
    %1943 = vmatprep.subr.mxu0 0.0
    %1944 = vmatpush1.xpose.msra.mxu0 %v1939
    %1945 = vmatprep.subr.mxu0 0.0
    %1946 = vmatpush1.xpose.msra.mxu0 0.0
    %1947 = vmatprep.subr.mxu0 0.0
    %1948 = vmatpush1.xpose.msra.mxu0 0.0
    %1949 = vmatprep.subr.mxu0 0.0
    %1950 = vmatpush1.xpose.msra.mxu0 0.0
    %1951 = vmatprep.subr.mxu0 0.0
    %1952 = vmatpush1.xpose.msra.mxu0 0.0
    %1953 = vmatprep.subr.mxu0 0.0
    %1954 = vmatpush1.xpose.msra.mxu0 0.0
    %1955 = vmatprep.subr.mxu0 0.0
    %1956 = vmatpush1.xpose.msra.mxu0 0.0
    %1957 = vmatprep.subr.mxu0 0.0
    %1958 = vmatpush1.xpose.msra.mxu0 0.0
    %1959 = vmatprep.subr.mxu0 0.0
    %1960 = vmatpush1.xpose.msra.mxu0 0.0
    %1961 = vmatprep.subr.mxu0 0.0
    %1962 = vmatpush1.xpose.msra.mxu0 0.0
    %1963 = vmatprep.subr.mxu0 0.0
    %1964 = vmatpush1.xpose.msra.mxu0 0.0
    %1965 = vmatprep.subr.mxu0 0.0
    %1966 = vmatpush1.xpose.msra.mxu0 0.0
    %1967 = vmatprep.subr.mxu0 0.0
    %1968 = vmatpush1.xpose.msra.mxu0 0.0
    %1969 = vmatprep.subr.mxu0 0.0
    %1970 = vmatpush1.xpose.msra.mxu0 0.0
    %1971 = vmatprep.subr.mxu0 0.0
    %1972 = vmatpush1.xpose.msra.mxu0 0.0
    %1973 = vmatprep.subr.mxu0 0.0
    %1974 = vmatpush1.xpose.msra.mxu0 0.0
    %1975 = vmatprep.subr.mxu0 0.0
    %1976 = vmatpush1.xpose.msra.mxu0 0.0
    %1977 = vmatprep.subr.mxu0 0.0
    %1978 = vmatpush1.xpose.msra.mxu0 0.0
    %1979 = vmatprep.subr.mxu0 0.0
    %1980 = vmatpush1.xpose.msra.mxu0 0.0
    %1981 = vmatprep.subr.mxu0 0.0
    %1982 = vmatpush1.xpose.msra.mxu0 0.0
    %1983 = vmatprep.subr.mxu0 0.0
    %1984 = vmatpush1.xpose.msra.mxu0 0.0
    %1985 = vmatprep.subr.mxu0 0.0
    %1986 = vmatpush1.xpose.msra.mxu0 0.0
    %1987 = vmatprep.subr.mxu0 0.0
    %1988 = vmatpush1.xpose.msra.mxu0 0.0
    %1989 = vmatprep.subr.mxu0 0.0
    %1990 = vmatpush1.xpose.msra.mxu0 0.0
    %1991 = vmatprep.subr.mxu0 0.0
    %1992 = vmatpush1.xpose.msra.mxu0 0.0
    %1993 = vmatprep.subr.mxu0 0.0
    %1994 = vmatpush1.xpose.msra.mxu0 0.0
    %1995 = vmatprep.subr.mxu0 0.0
    %1996 = vmatpush1.xpose.msra.mxu0 0.0
    %1997 = vmatprep.subr.mxu0 0.0
    %1998 = vmatpush1.xpose.msra.mxu0 0.0
    %1999 = vmatprep.subr.mxu0 0.0
    %2000 = vmatpush1.xpose.msra.mxu0 0.0
    %2001 = vmatprep.subr.mxu0 0.0
    %2002 = vmatpush1.xpose.msra.mxu0 0.0
    %2003 = vmatprep.subr.mxu0 0.0
    %2004 = vmatpush1.xpose.msra.mxu0 0.0
    %2005 = vmatprep.mubr.f32.mxu0 0.0
    %2006 = vmatmul.mubr.f32.gmra.mrb[0].mxu0 %v1933
    %v2007 = vpop.f32.mrb[0].mxu0
    %v2008 = vadd.f32 0.0, %v2007
    %v2009 = vpop.f32.mrb[0].mxu0
    %2010 = vmatprep.mubr.f32.mxu0 0.0
    %2011 = vmatmul.mubr.f32.gmra.mrb[0].mxu0 %v1935
    %v2012 = vpop.f32.mrb[0].mxu0
    %v2013 = vadd.f32 0.0, %v2012
    %v2014 = vpop.f32.mrb[0].mxu0
    %2015 = vdwg.mxu0
    %v2016 = vmul.f32 %v2008, 0.35355338
    %v2017 = vmul.f32 %v2013, 0.35355338
    %v2018 = vadd.f32 %v2016, %v83
    %v2019 = vadd.f32 %v2017, %v84
    %v2020 = vsel %vm271, %v2018, -inf
    %2021 = vmax.xlane.f32.xlu0 %v2020
    %v2022 = vpop.xlane.xlu0 %2021
    %v2023 = vsel %vm271, %v2019, -inf
    %2024 = vmax.xlane.f32.xlu0 %v2023
    %v2025 = vpop.xlane.xlu0 %2024
    %v2026 = vsub.f32 %v2018, %v2022
    %v2027 = vsub.f32 %v2019, %v2025
    %v2028 = vmul.f32 %v2026, 1.442695
    %v2029 = vpow.pop %v2028
    %v2030 = vmul.f32 %v2027, 1.442695
    %v2031 = vpow.pop %v2030
    %v2032 = vsel %vm271, %v2029, 0.0
    %2033 = vadd.xlane.f32.xlu0 %v2032
    %v2034 = vpop.xlane.xlu0 %2033
    %v2035 = vsel %vm271, %v2031, 0.0
    %2036 = vadd.xlane.f32.xlu0 %v2035
    %v2037 = vpop.xlane.xlu0 %2036
    %v2038 = vrcp.pop %v2034
    %v2039 = vrcp.pop %v2037
    %v2040 = vmul.f32 %v2029, %v2038
    %v2041 = vmul.f32 %v2031, %v2039
    %2042 = vrot.lane.b32.xlu0 %v1499, 48
    %v2043 = vpop.permute.xlu0 %2042
    %2044 = vrot.lane.b32.xlu0 %v1504, 48
    %v2045 = vpop.permute.xlu0 %2044
    %v2049 = vsel %vm271, %v2040, 0
    %v2052 = vsel %vm271, %v2041, 0
    %2054 = vmatprep.subr.mxu0 0.0
    %2055 = vmatpush1.msra.mxu0 %v2043
    %2056 = vmatprep.subr.mxu0 0.0
    %2057 = vmatpush1.msra.mxu0 %v2045
    %2058 = vmatprep.subr.mxu0 0.0
    %2059 = vmatpush1.msra.mxu0 0.0
    %2060 = vmatprep.subr.mxu0 0.0
    %2061 = vmatpush1.msra.mxu0 0.0
    %2062 = vmatprep.subr.mxu0 0.0
    %2063 = vmatpush1.msra.mxu0 0.0
    %2064 = vmatprep.subr.mxu0 0.0
    %2065 = vmatpush1.msra.mxu0 0.0
    %2066 = vmatprep.subr.mxu0 0.0
    %2067 = vmatpush1.msra.mxu0 0.0
    %2068 = vmatprep.subr.mxu0 0.0
    %2069 = vmatpush1.msra.mxu0 0.0
    %2070 = vmatprep.subr.mxu0 0.0
    %2071 = vmatpush1.msra.mxu0 0.0
    %2072 = vmatprep.subr.mxu0 0.0
    %2073 = vmatpush1.msra.mxu0 0.0
    %2074 = vmatprep.subr.mxu0 0.0
    %2075 = vmatpush1.msra.mxu0 0.0
    %2076 = vmatprep.subr.mxu0 0.0
    %2077 = vmatpush1.msra.mxu0 0.0
    %2078 = vmatprep.subr.mxu0 0.0
    %2079 = vmatpush1.msra.mxu0 0.0
    %2080 = vmatprep.subr.mxu0 0.0
    %2081 = vmatpush1.msra.mxu0 0.0
    %2082 = vmatprep.subr.mxu0 0.0
    %2083 = vmatpush1.msra.mxu0 0.0
    %2084 = vmatprep.subr.mxu0 0.0
    %2085 = vmatpush1.msra.mxu0 0.0
    %2086 = vmatprep.subr.mxu0 0.0
    %2087 = vmatpush1.msra.mxu0 0.0
    %2088 = vmatprep.subr.mxu0 0.0
    %2089 = vmatpush1.msra.mxu0 0.0
    %2090 = vmatprep.subr.mxu0 0.0
    %2091 = vmatpush1.msra.mxu0 0.0
    %2092 = vmatprep.subr.mxu0 0.0
    %2093 = vmatpush1.msra.mxu0 0.0
    %2094 = vmatprep.subr.mxu0 0.0
    %2095 = vmatpush1.msra.mxu0 0.0
    %2096 = vmatprep.subr.mxu0 0.0
    %2097 = vmatpush1.msra.mxu0 0.0
    %2098 = vmatprep.subr.mxu0 0.0
    %2099 = vmatpush1.msra.mxu0 0.0
    %2100 = vmatprep.subr.mxu0 0.0
    %2101 = vmatpush1.msra.mxu0 0.0
    %2102 = vmatprep.subr.mxu0 0.0
    %2103 = vmatpush1.msra.mxu0 0.0
    %2104 = vmatprep.subr.mxu0 0.0
    %2105 = vmatpush1.msra.mxu0 0.0
    %2106 = vmatprep.subr.mxu0 0.0
    %2107 = vmatpush1.msra.mxu0 0.0
    %2108 = vmatprep.subr.mxu0 0.0
    %2109 = vmatpush1.msra.mxu0 0.0
    %2110 = vmatprep.subr.mxu0 0.0
    %2111 = vmatpush1.msra.mxu0 0.0
    %2112 = vmatprep.subr.mxu0 0.0
    %2113 = vmatpush1.msra.mxu0 0.0
    %2114 = vmatprep.subr.mxu0 0.0
    %2115 = vmatpush1.msra.mxu0 0.0
    %2116 = vmatprep.subr.mxu0 0.0
    %2117 = vmatpush1.msra.mxu0 0.0
    %2118 = vmatprep.mubr.f32.mxu0 0.0
    %2119 = vmatmul.mubr.f32.gmra.mrb[0].mxu0 %v2049
    %v2120 = vpop.f32.mrb[0].mxu0
    %v2121 = vadd.f32 0.0, %v2120
    %v2122 = vpop.f32.mrb[0].mxu0
    %2123 = vmatprep.mubr.f32.mxu0 0.0
    %2124 = vmatmul.mubr.f32.gmra.mrb[0].mxu0 %v2052
    %v2125 = vpop.f32.mrb[0].mxu0
    %v2126 = vadd.f32 0.0, %v2125
    %v2127 = vpop.f32.mrb[0].mxu0
    %2128 = vdwg.mxu0
    %2131 = vrot.lane.b32.xlu0 %v2121, 16
    %v2132 = vpop.permute.xlu0 %2131
    %2133 = vrot.lane.b32.xlu0 %v2126, 16
    %v2134 = vpop.permute.xlu0 %2133
    %2137 = vst.msk [vmem:[#allocation2] sm:$0xff] %vm810, %v2132
    %2138 = vst.msk [vmem:[#allocation2 + $0x8] sm:$0xff] %vm810, %v2134
    %2139 = vrot.lane.b32.xlu0 %v1499, 104
    %v2140 = vpop.permute.xlu0 %2139
    %2141 = vrot.lane.b32.xlu0 %v1504, 104
    %v2142 = vpop.permute.xlu0 %2141
    %2143 = vrot.lane.b32.xlu0 %v1499, 72
    %v2144 = vpop.permute.xlu0 %2143
    %2145 = vrot.lane.b32.xlu0 %v1504, 72
    %v2146 = vpop.permute.xlu0 %2145
    %v2147 = vsel %vm183, %v2140, 0
    %v2149 = vsel %vm183, %v2142, 0
    %v2151 = vsel %vm183, %v2144, 0
    %v2153 = vsel %vm183, %v2146, 0
    %2155 = vmatprep.subr.mxu0 0.0
    %2156 = vmatpush1.xpose.msra.mxu0 %v2151
    %2157 = vmatprep.subr.mxu0 0.0
    %2158 = vmatpush1.xpose.msra.mxu0 %v2153
    %2159 = vmatprep.subr.mxu0 0.0
    %2160 = vmatpush1.xpose.msra.mxu0 0.0
    %2161 = vmatprep.subr.mxu0 0.0
    %2162 = vmatpush1.xpose.msra.mxu0 0.0
    %2163 = vmatprep.subr.mxu0 0.0
    %2164 = vmatpush1.xpose.msra.mxu0 0.0
    %2165 = vmatprep.subr.mxu0 0.0
    %2166 = vmatpush1.xpose.msra.mxu0 0.0
    %2167 = vmatprep.subr.mxu0 0.0
    %2168 = vmatpush1.xpose.msra.mxu0 0.0
    %2169 = vmatprep.subr.mxu0 0.0
    %2170 = vmatpush1.xpose.msra.mxu0 0.0
    %2171 = vmatprep.subr.mxu0 0.0
    %2172 = vmatpush1.xpose.msra.mxu0 0.0
    %2173 = vmatprep.subr.mxu0 0.0
    %2174 = vmatpush1.xpose.msra.mxu0 0.0
    %2175 = vmatprep.subr.mxu0 0.0
    %2176 = vmatpush1.xpose.msra.mxu0 0.0
    %2177 = vmatprep.subr.mxu0 0.0
    %2178 = vmatpush1.xpose.msra.mxu0 0.0
    %2179 = vmatprep.subr.mxu0 0.0
    %2180 = vmatpush1.xpose.msra.mxu0 0.0
    %2181 = vmatprep.subr.mxu0 0.0
    %2182 = vmatpush1.xpose.msra.mxu0 0.0
    %2183 = vmatprep.subr.mxu0 0.0
    %2184 = vmatpush1.xpose.msra.mxu0 0.0
    %2185 = vmatprep.subr.mxu0 0.0
    %2186 = vmatpush1.xpose.msra.mxu0 0.0
    %2187 = vmatprep.subr.mxu0 0.0
    %2188 = vmatpush1.xpose.msra.mxu0 0.0
    %2189 = vmatprep.subr.mxu0 0.0
    %2190 = vmatpush1.xpose.msra.mxu0 0.0
    %2191 = vmatprep.subr.mxu0 0.0
    %2192 = vmatpush1.xpose.msra.mxu0 0.0
    %2193 = vmatprep.subr.mxu0 0.0
    %2194 = vmatpush1.xpose.msra.mxu0 0.0
    %2195 = vmatprep.subr.mxu0 0.0
    %2196 = vmatpush1.xpose.msra.mxu0 0.0
    %2197 = vmatprep.subr.mxu0 0.0
    %2198 = vmatpush1.xpose.msra.mxu0 0.0
    %2199 = vmatprep.subr.mxu0 0.0
    %2200 = vmatpush1.xpose.msra.mxu0 0.0
    %2201 = vmatprep.subr.mxu0 0.0
    %2202 = vmatpush1.xpose.msra.mxu0 0.0
    %2203 = vmatprep.subr.mxu0 0.0
    %2204 = vmatpush1.xpose.msra.mxu0 0.0
    %2205 = vmatprep.subr.mxu0 0.0
    %2206 = vmatpush1.xpose.msra.mxu0 0.0
    %2207 = vmatprep.subr.mxu0 0.0
    %2208 = vmatpush1.xpose.msra.mxu0 0.0
    %2209 = vmatprep.subr.mxu0 0.0
    %2210 = vmatpush1.xpose.msra.mxu0 0.0
    %2211 = vmatprep.subr.mxu0 0.0
    %2212 = vmatpush1.xpose.msra.mxu0 0.0
    %2213 = vmatprep.subr.mxu0 0.0
    %2214 = vmatpush1.xpose.msra.mxu0 0.0
    %2215 = vmatprep.subr.mxu0 0.0
    %2216 = vmatpush1.xpose.msra.mxu0 0.0
    %2217 = vmatprep.subr.mxu0 0.0
    %2218 = vmatpush1.xpose.msra.mxu0 0.0
    %2219 = vmatprep.mubr.f32.mxu0 0.0
    %2220 = vmatmul.mubr.f32.gmra.mrb[0].mxu0 %v2147
    %v2221 = vpop.f32.mrb[0].mxu0
    %v2222 = vadd.f32 0.0, %v2221
    %v2223 = vpop.f32.mrb[0].mxu0
    %2224 = vmatprep.mubr.f32.mxu0 0.0
    %2225 = vmatmul.mubr.f32.gmra.mrb[0].mxu0 %v2149
    %v2226 = vpop.f32.mrb[0].mxu0
    %v2227 = vadd.f32 0.0, %v2226
    %v2228 = vpop.f32.mrb[0].mxu0
    %2229 = vdwg.mxu0
    %v2230 = vmul.f32 %v2222, 0.35355338
    %v2231 = vmul.f32 %v2227, 0.35355338
    %v2232 = vadd.f32 %v2230, %v83
    %v2233 = vadd.f32 %v2231, %v84
    %v2234 = vsel %vm271, %v2232, -inf
    %2235 = vmax.xlane.f32.xlu0 %v2234
    %v2236 = vpop.xlane.xlu0 %2235
    %v2237 = vsel %vm271, %v2233, -inf
    %2238 = vmax.xlane.f32.xlu0 %v2237
    %v2239 = vpop.xlane.xlu0 %2238
    %v2240 = vsub.f32 %v2232, %v2236
    %v2241 = vsub.f32 %v2233, %v2239
    %v2242 = vmul.f32 %v2240, 1.442695
    %v2243 = vpow.pop %v2242
    %v2244 = vmul.f32 %v2241, 1.442695
    %v2245 = vpow.pop %v2244
    %v2246 = vsel %vm271, %v2243, 0.0
    %2247 = vadd.xlane.f32.xlu0 %v2246
    %v2248 = vpop.xlane.xlu0 %2247
    %v2249 = vsel %vm271, %v2245, 0.0
    %2250 = vadd.xlane.f32.xlu0 %v2249
    %v2251 = vpop.xlane.xlu0 %2250
    %v2252 = vrcp.pop %v2248
    %v2253 = vrcp.pop %v2251
    %v2254 = vmul.f32 %v2243, %v2252
    %v2255 = vmul.f32 %v2245, %v2253
    %2256 = vrot.lane.b32.xlu0 %v1499, 40
    %v2257 = vpop.permute.xlu0 %2256
    %2258 = vrot.lane.b32.xlu0 %v1504, 40
    %v2259 = vpop.permute.xlu0 %2258
    %v2263 = vsel %vm271, %v2254, 0
    %v2266 = vsel %vm271, %v2255, 0
    %2268 = vmatprep.subr.mxu0 0.0
    %2269 = vmatpush1.msra.mxu0 %v2257
    %2270 = vmatprep.subr.mxu0 0.0
    %2271 = vmatpush1.msra.mxu0 %v2259
    %2272 = vmatprep.subr.mxu0 0.0
    %2273 = vmatpush1.msra.mxu0 0.0
    %2274 = vmatprep.subr.mxu0 0.0
    %2275 = vmatpush1.msra.mxu0 0.0
    %2276 = vmatprep.subr.mxu0 0.0
    %2277 = vmatpush1.msra.mxu0 0.0
    %2278 = vmatprep.subr.mxu0 0.0
    %2279 = vmatpush1.msra.mxu0 0.0
    %2280 = vmatprep.subr.mxu0 0.0
    %2281 = vmatpush1.msra.mxu0 0.0
    %2282 = vmatprep.subr.mxu0 0.0
    %2283 = vmatpush1.msra.mxu0 0.0
    %2284 = vmatprep.subr.mxu0 0.0
    %2285 = vmatpush1.msra.mxu0 0.0
    %2286 = vmatprep.subr.mxu0 0.0
    %2287 = vmatpush1.msra.mxu0 0.0
    %2288 = vmatprep.subr.mxu0 0.0
    %2289 = vmatpush1.msra.mxu0 0.0
    %2290 = vmatprep.subr.mxu0 0.0
    %2291 = vmatpush1.msra.mxu0 0.0
    %2292 = vmatprep.subr.mxu0 0.0
    %2293 = vmatpush1.msra.mxu0 0.0
    %2294 = vmatprep.subr.mxu0 0.0
    %2295 = vmatpush1.msra.mxu0 0.0
    %2296 = vmatprep.subr.mxu0 0.0
    %2297 = vmatpush1.msra.mxu0 0.0
    %2298 = vmatprep.subr.mxu0 0.0
    %2299 = vmatpush1.msra.mxu0 0.0
    %2300 = vmatprep.subr.mxu0 0.0
    %2301 = vmatpush1.msra.mxu0 0.0
    %2302 = vmatprep.subr.mxu0 0.0
    %2303 = vmatpush1.msra.mxu0 0.0
    %2304 = vmatprep.subr.mxu0 0.0
    %2305 = vmatpush1.msra.mxu0 0.0
    %2306 = vmatprep.subr.mxu0 0.0
    %2307 = vmatpush1.msra.mxu0 0.0
    %2308 = vmatprep.subr.mxu0 0.0
    %2309 = vmatpush1.msra.mxu0 0.0
    %2310 = vmatprep.subr.mxu0 0.0
    %2311 = vmatpush1.msra.mxu0 0.0
    %2312 = vmatprep.subr.mxu0 0.0
    %2313 = vmatpush1.msra.mxu0 0.0
    %2314 = vmatprep.subr.mxu0 0.0
    %2315 = vmatpush1.msra.mxu0 0.0
    %2316 = vmatprep.subr.mxu0 0.0
    %2317 = vmatpush1.msra.mxu0 0.0
    %2318 = vmatprep.subr.mxu0 0.0
    %2319 = vmatpush1.msra.mxu0 0.0
    %2320 = vmatprep.subr.mxu0 0.0
    %2321 = vmatpush1.msra.mxu0 0.0
    %2322 = vmatprep.subr.mxu0 0.0
    %2323 = vmatpush1.msra.mxu0 0.0
    %2324 = vmatprep.subr.mxu0 0.0
    %2325 = vmatpush1.msra.mxu0 0.0
    %2326 = vmatprep.subr.mxu0 0.0
    %2327 = vmatpush1.msra.mxu0 0.0
    %2328 = vmatprep.subr.mxu0 0.0
    %2329 = vmatpush1.msra.mxu0 0.0
    %2330 = vmatprep.subr.mxu0 0.0
    %2331 = vmatpush1.msra.mxu0 0.0
    %2332 = vmatprep.mubr.f32.mxu0 0.0
    %2333 = vmatmul.mubr.f32.gmra.mrb[0].mxu0 %v2263
    %v2334 = vpop.f32.mrb[0].mxu0
    %v2335 = vadd.f32 0.0, %v2334
    %v2336 = vpop.f32.mrb[0].mxu0
    %2337 = vmatprep.mubr.f32.mxu0 0.0
    %2338 = vmatmul.mubr.f32.gmra.mrb[0].mxu0 %v2266
    %v2339 = vpop.f32.mrb[0].mxu0
    %v2340 = vadd.f32 0.0, %v2339
    %v2341 = vpop.f32.mrb[0].mxu0
    %2342 = vdwg.mxu0
    %2345 = vrot.lane.b32.xlu0 %v2335, 24
    %v2346 = vpop.permute.xlu0 %2345
    %2347 = vrot.lane.b32.xlu0 %v2340, 24
    %v2348 = vpop.permute.xlu0 %2347
    %2351 = vst.msk [vmem:[#allocation2] sm:$0xff] %vm1025, %v2346
    %2352 = vst.msk [vmem:[#allocation2 + $0x8] sm:$0xff] %vm1025, %v2348
    %v2353 = vld [vmem:[#allocation2] sm:$0xff]
    %v2354 = vld [vmem:[#allocation2 + $0x8] sm:$0xff]
    %s2355 = scalar_lea.vmem %s4, 32
    %v2356 = vld [vmem:[%s2355] sm:$0xff]
    %v2357 = vld [vmem:[%s2355 + $0x8] sm:$0xff]
    %v2358 = vld [vmem:[%s2355 + $0x10] sm:$0xff]
    %v2359 = vld [vmem:[%s2355 + $0x18] sm:$0xff]
    %v2360 = vlaneseq
    %v2361 = vshrl.u32 %v2360, 7
    %v2362 = vsub.s32 1, %v2361
    %v2363 = vrot.slane %v1415, %v2362
    %v2365 = vsel %vm95, %v2353, 0
    %v2368 = vsel %vm95, %v2354, 0
    %2370 = vmatprep.subr.mxu0 0.0
    %2371 = vmatpush1.msra.mxu0 %v2356
    %2372 = vmatprep.subr.mxu0 0.0
    %2373 = vmatpush1.msra.mxu0 %v2357
    %2374 = vmatprep.subr.mxu0 0.0
    %2375 = vmatpush1.msra.mxu0 %v2358
    %2376 = vmatprep.subr.mxu0 0.0
    %2377 = vmatpush1.msra.mxu0 %v2359
    %2378 = vmatprep.subr.mxu0 0.0
    %2379 = vmatpush1.msra.mxu0 0.0
    %2380 = vmatprep.subr.mxu0 0.0
    %2381 = vmatpush1.msra.mxu0 0.0
    %2382 = vmatprep.subr.mxu0 0.0
    %2383 = vmatpush1.msra.mxu0 0.0
    %2384 = vmatprep.subr.mxu0 0.0
    %2385 = vmatpush1.msra.mxu0 0.0
    %2386 = vmatprep.subr.mxu0 0.0
    %2387 = vmatpush1.msra.mxu0 0.0
    %2388 = vmatprep.subr.mxu0 0.0
    %2389 = vmatpush1.msra.mxu0 0.0
    %2390 = vmatprep.subr.mxu0 0.0
    %2391 = vmatpush1.msra.mxu0 0.0
    %2392 = vmatprep.subr.mxu0 0.0
    %2393 = vmatpush1.msra.mxu0 0.0
    %2394 = vmatprep.subr.mxu0 0.0
    %2395 = vmatpush1.msra.mxu0 0.0
    %2396 = vmatprep.subr.mxu0 0.0
    %2397 = vmatpush1.msra.mxu0 0.0
    %2398 = vmatprep.subr.mxu0 0.0
    %2399 = vmatpush1.msra.mxu0 0.0
    %2400 = vmatprep.subr.mxu0 0.0
    %2401 = vmatpush1.msra.mxu0 0.0
    %2402 = vmatprep.subr.mxu0 0.0
    %2403 = vmatpush1.msra.mxu0 0.0
    %2404 = vmatprep.subr.mxu0 0.0
    %2405 = vmatpush1.msra.mxu0 0.0
    %2406 = vmatprep.subr.mxu0 0.0
    %2407 = vmatpush1.msra.mxu0 0.0
    %2408 = vmatprep.subr.mxu0 0.0
    %2409 = vmatpush1.msra.mxu0 0.0
    %2410 = vmatprep.subr.mxu0 0.0
    %2411 = vmatpush1.msra.mxu0 0.0
    %2412 = vmatprep.subr.mxu0 0.0
    %2413 = vmatpush1.msra.mxu0 0.0
    %2414 = vmatprep.subr.mxu0 0.0
    %2415 = vmatpush1.msra.mxu0 0.0
    %2416 = vmatprep.subr.mxu0 0.0
    %2417 = vmatpush1.msra.mxu0 0.0
    %2418 = vmatprep.subr.mxu0 0.0
    %2419 = vmatpush1.msra.mxu0 0.0
    %2420 = vmatprep.subr.mxu0 0.0
    %2421 = vmatpush1.msra.mxu0 0.0
    %2422 = vmatprep.subr.mxu0 0.0
    %2423 = vmatpush1.msra.mxu0 0.0
    %2424 = vmatprep.subr.mxu0 0.0
    %2425 = vmatpush1.msra.mxu0 0.0
    %2426 = vmatprep.subr.mxu0 0.0
    %2427 = vmatpush1.msra.mxu0 0.0
    %2428 = vmatprep.subr.mxu0 0.0
    %2429 = vmatpush1.msra.mxu0 0.0
    %2430 = vmatprep.subr.mxu0 0.0
    %2431 = vmatpush1.msra.mxu0 0.0
    %2432 = vmatprep.subr.mxu0 0.0
    %2433 = vmatpush1.msra.mxu0 0.0
    %2434 = vmatprep.mubr.f32.mxu0 0.0
    %2435 = vmatmul.mubr.f32.gmra.mrb[0].mxu0 %v2365
    %v2436 = vpop.f32.mrb[0].mxu0
    %v2437 = vadd.f32 %v2363, %v2436
    %v2438 = vpop.f32.mrb[0].mxu0
    %2439 = vmatprep.mubr.f32.mxu0 0.0
    %2440 = vmatmul.mubr.f32.gmra.mrb[0].mxu0 %v2368
    %v2441 = vpop.f32.mrb[0].mxu0
    %v2442 = vadd.f32 %v2363, %v2441
    %v2443 = vpop.f32.mrb[0].mxu0
    %2444 = vdwg.mxu0
    %v2445 = vadd.f32 %v1412, %v2437
    %v2446 = vadd.f32 %v1413, %v2442
    %v2447 = vsel %vm95, %v2445, 0.0
    %2448 = vadd.xlane.f32.xlu0 %v2447
    %v2449 = vpop.xlane.xlu0 %2448
    %v2450 = vsel %vm95, %v2446, 0.0
    %2451 = vadd.xlane.f32.xlu0 %v2450
    %v2452 = vpop.xlane.xlu0 %2451
    %v2453 = vmul.f32 %v2449, %v1127
    %v2454 = vmul.f32 %v2452, %v1127
    %v2455 = vsub.f32 %v2445, %v2453
    %v2456 = vsub.f32 %v2446, %v2454
    %v2457 = vmul.f32 %v2455, %v2455
    %v2458 = vmul.f32 %v2456, %v2456
    %v2459 = vsel %vm95, %v2457, 0.0
    %2460 = vadd.xlane.f32.xlu0 %v2459
    %v2461 = vpop.xlane.xlu0 %2460
    %v2462 = vsel %vm95, %v2458, 0.0
    %2463 = vadd.xlane.f32.xlu0 %v2462
    %v2464 = vpop.xlane.xlu0 %2463
    %v2465 = vmul.f32 %v2461, %v1127
    %v2466 = vmul.f32 %v2464, %v1127
    %v2467 = vadd.f32 %v2465, 1e-05
    %v2468 = vadd.f32 %v2466, 1e-05
    %v2469 = vrsqrt.pop %v2467
    %v2470 = vrsqrt.pop %v2468
    %v2471 = vmul.f32 %v2455, %v2469
    %v2472 = vmul.f32 %v2456, %v2470
    %v2473 = vlaneseq
    %v2474 = vshrl.u32 %v2473, 7
    %v2475 = vsub.s32 4, %v2474
    %v2476 = vrot.slane %v1415, %v2475
    %v2477 = vmul.f32 %v2471, %v2476
    %v2478 = vmul.f32 %v2472, %v2476
    %v2479 = vlaneseq
    %v2480 = vshrl.u32 %v2479, 7
    %v2481 = vsub.s32 5, %v2480
    %v2482 = vrot.slane %v1415, %v2481
    %v2483 = vadd.f32 %v2477, %v2482
    %v2484 = vadd.f32 %v2478, %v2482
    %s2485 = scalar_lea.vmem %s5, 64
    %v2486 = vld [vmem:[%s2485] sm:$0xff]
    %v2487 = vld [vmem:[%s2485 + $0x8] sm:$0xff]
    %v2488 = vld [vmem:[%s2485 + $0x10] sm:$0xff]
    %v2489 = vld [vmem:[%s2485 + $0x18] sm:$0xff]
    %v2490 = vld [vmem:[%s2485 + $0x20] sm:$0xff]
    %v2491 = vld [vmem:[%s2485 + $0x28] sm:$0xff]
    %v2492 = vld [vmem:[%s2485 + $0x30] sm:$0xff]
    %v2493 = vld [vmem:[%s2485 + $0x38] sm:$0xff]
    %v2494 = vlaneseq
    %v2495 = vshrl.u32 %v2494, 7
    %v2496 = vsub.s32 2, %v2495
    %v2497 = vrot.slane %v1415, %v2496
    %v2498 = vlaneseq
    %v2499 = vshrl.u32 %v2498, 7
    %v2500 = vsub.s32 2, %v2499
    %v2501 = vrot.slane %v1416, %v2500
    %v2503 = vsel %vm95, %v2483, 0
    %v2506 = vsel %vm95, %v2484, 0
    %2508 = vmatprep.subr.mxu0 %v2487
    %2509 = vmatpush1.msra.mxu0 %v2486
    %2510 = vmatprep.subr.mxu0 %v2489
    %2511 = vmatpush1.msra.mxu0 %v2488
    %2512 = vmatprep.subr.mxu0 %v2491
    %2513 = vmatpush1.msra.mxu0 %v2490
    %2514 = vmatprep.subr.mxu0 %v2493
    %2515 = vmatpush1.msra.mxu0 %v2492
    %2516 = vmatprep.subr.mxu0 0.0
    %2517 = vmatpush1.msra.mxu0 0.0
    %2518 = vmatprep.subr.mxu0 0.0
    %2519 = vmatpush1.msra.mxu0 0.0
    %2520 = vmatprep.subr.mxu0 0.0
    %2521 = vmatpush1.msra.mxu0 0.0
    %2522 = vmatprep.subr.mxu0 0.0
    %2523 = vmatpush1.msra.mxu0 0.0
    %2524 = vmatprep.subr.mxu0 0.0
    %2525 = vmatpush1.msra.mxu0 0.0
    %2526 = vmatprep.subr.mxu0 0.0
    %2527 = vmatpush1.msra.mxu0 0.0
    %2528 = vmatprep.subr.mxu0 0.0
    %2529 = vmatpush1.msra.mxu0 0.0
    %2530 = vmatprep.subr.mxu0 0.0
    %2531 = vmatpush1.msra.mxu0 0.0
    %2532 = vmatprep.subr.mxu0 0.0
    %2533 = vmatpush1.msra.mxu0 0.0
    %2534 = vmatprep.subr.mxu0 0.0
    %2535 = vmatpush1.msra.mxu0 0.0
    %2536 = vmatprep.subr.mxu0 0.0
    %2537 = vmatpush1.msra.mxu0 0.0
    %2538 = vmatprep.subr.mxu0 0.0
    %2539 = vmatpush1.msra.mxu0 0.0
    %2540 = vmatprep.subr.mxu0 0.0
    %2541 = vmatpush1.msra.mxu0 0.0
    %2542 = vmatprep.subr.mxu0 0.0
    %2543 = vmatpush1.msra.mxu0 0.0
    %2544 = vmatprep.subr.mxu0 0.0
    %2545 = vmatpush1.msra.mxu0 0.0
    %2546 = vmatprep.subr.mxu0 0.0
    %2547 = vmatpush1.msra.mxu0 0.0
    %2548 = vmatprep.subr.mxu0 0.0
    %2549 = vmatpush1.msra.mxu0 0.0
    %2550 = vmatprep.subr.mxu0 0.0
    %2551 = vmatpush1.msra.mxu0 0.0
    %2552 = vmatprep.subr.mxu0 0.0
    %2553 = vmatpush1.msra.mxu0 0.0
    %2554 = vmatprep.subr.mxu0 0.0
    %2555 = vmatpush1.msra.mxu0 0.0
    %2556 = vmatprep.subr.mxu0 0.0
    %2557 = vmatpush1.msra.mxu0 0.0
    %2558 = vmatprep.subr.mxu0 0.0
    %2559 = vmatpush1.msra.mxu0 0.0
    %2560 = vmatprep.subr.mxu0 0.0
    %2561 = vmatpush1.msra.mxu0 0.0
    %2562 = vmatprep.subr.mxu0 0.0
    %2563 = vmatpush1.msra.mxu0 0.0
    %2564 = vmatprep.subr.mxu0 0.0
    %2565 = vmatpush1.msra.mxu0 0.0
    %2566 = vmatprep.subr.mxu0 0.0
    %2567 = vmatpush1.msra.mxu0 0.0
    %2568 = vmatprep.subr.mxu0 0.0
    %2569 = vmatpush1.msra.mxu0 0.0
    %2570 = vmatprep.subr.mxu0 0.0
    %2571 = vmatpush1.msra.mxu0 0.0
    %2572 = vmatprep.mubr.f32.mxu0 0.0
    %2573 = vmatmul.mubr.f32.gmra.mrb[0].mxu0 %v2503
    %v2574 = vpop.f32.mrb[0].mxu0
    %v2575 = vadd.f32 %v2497, %v2574
    %v2576 = vpop.f32.mrb[0].mxu0
    %v2577 = vadd.f32 %v2501, %v2576
    %2578 = vmatprep.mubr.f32.mxu0 0.0
    %2579 = vmatmul.mubr.f32.gmra.mrb[0].mxu0 %v2506
    %v2580 = vpop.f32.mrb[0].mxu0
    %v2581 = vadd.f32 %v2497, %v2580
    %v2582 = vpop.f32.mrb[0].mxu0
    %v2583 = vadd.f32 %v2501, %v2582
    %2584 = vdwg.mxu0
    %v2585 = vmax.f32 %v2575, 0.0
    %v2586 = vmax.f32 %v2577, 0.0
    %v2587 = vmax.f32 %v2581, 0.0
    %v2588 = vmax.f32 %v2583, 0.0
    %s2589 = scalar_lea.vmem %s6, 256
    %v2590 = vld [vmem:[%s2589] sm:$0xff]
    %v2591 = vld [vmem:[%s2589 + $0x8] sm:$0xff]
    %v2592 = vld [vmem:[%s2589 + $0x10] sm:$0xff]
    %v2593 = vld [vmem:[%s2589 + $0x18] sm:$0xff]
    %v2594 = vld [vmem:[%s2589 + $0x20] sm:$0xff]
    %v2595 = vld [vmem:[%s2589 + $0x28] sm:$0xff]
    %v2596 = vld [vmem:[%s2589 + $0x30] sm:$0xff]
    %v2597 = vld [vmem:[%s2589 + $0x38] sm:$0xff]
    %v2598 = vld [vmem:[%s2589 + $0x40] sm:$0xff]
    %v2599 = vld [vmem:[%s2589 + $0x48] sm:$0xff]
    %v2600 = vld [vmem:[%s2589 + $0x50] sm:$0xff]
    %v2601 = vld [vmem:[%s2589 + $0x58] sm:$0xff]
    %v2602 = vld [vmem:[%s2589 + $0x60] sm:$0xff]
    %v2603 = vld [vmem:[%s2589 + $0x68] sm:$0xff]
    %v2604 = vld [vmem:[%s2589 + $0x70] sm:$0xff]
    %v2605 = vld [vmem:[%s2589 + $0x78] sm:$0xff]
    %v2606 = vld [vmem:[%s2589 + $0x80] sm:$0xff]
    %v2607 = vld [vmem:[%s2589 + $0x88] sm:$0xff]
    %v2608 = vld [vmem:[%s2589 + $0x90] sm:$0xff]
    %v2609 = vld [vmem:[%s2589 + $0x98] sm:$0xff]
    %v2610 = vld [vmem:[%s2589 + $0xa0] sm:$0xff]
    %v2611 = vld [vmem:[%s2589 + $0xa8] sm:$0xff]
    %v2612 = vld [vmem:[%s2589 + $0xb0] sm:$0xff]
    %v2613 = vld [vmem:[%s2589 + $0xb8] sm:$0xff]
    %v2614 = vld [vmem:[%s2589 + $0xc0] sm:$0xff]
    %v2615 = vld [vmem:[%s2589 + $0xc8] sm:$0xff]
    %v2616 = vld [vmem:[%s2589 + $0xd0] sm:$0xff]
    %v2617 = vld [vmem:[%s2589 + $0xd8] sm:$0xff]
    %v2618 = vld [vmem:[%s2589 + $0xe0] sm:$0xff]
    %v2619 = vld [vmem:[%s2589 + $0xe8] sm:$0xff]
    %v2620 = vld [vmem:[%s2589 + $0xf0] sm:$0xff]
    %v2621 = vld [vmem:[%s2589 + $0xf8] sm:$0xff]
    %v2622 = vlaneseq
    %v2623 = vshrl.u32 %v2622, 7
    %v2624 = vsub.s32 3, %v2623
    %v2625 = vrot.slane %v1415, %v2624
    %2626 = vmatprep.subr.mxu0 0.0
    %2627 = vmatpush1.msra.mxu0 %v2590
    %2628 = vmatprep.subr.mxu0 0.0
    %2629 = vmatpush1.msra.mxu0 %v2591
    %2630 = vmatprep.subr.mxu0 0.0
    %2631 = vmatpush1.msra.mxu0 %v2592
    %2632 = vmatprep.subr.mxu0 0.0
    %2633 = vmatpush1.msra.mxu0 %v2593
    %2634 = vmatprep.subr.mxu0 0.0
    %2635 = vmatpush1.msra.mxu0 %v2594
    %2636 = vmatprep.subr.mxu0 0.0
    %2637 = vmatpush1.msra.mxu0 %v2595
    %2638 = vmatprep.subr.mxu0 0.0
    %2639 = vmatpush1.msra.mxu0 %v2596
    %2640 = vmatprep.subr.mxu0 0.0
    %2641 = vmatpush1.msra.mxu0 %v2597
    %2642 = vmatprep.subr.mxu0 0.0
    %2643 = vmatpush1.msra.mxu0 %v2598
    %2644 = vmatprep.subr.mxu0 0.0
    %2645 = vmatpush1.msra.mxu0 %v2599
    %2646 = vmatprep.subr.mxu0 0.0
    %2647 = vmatpush1.msra.mxu0 %v2600
    %2648 = vmatprep.subr.mxu0 0.0
    %2649 = vmatpush1.msra.mxu0 %v2601
    %2650 = vmatprep.subr.mxu0 0.0
    %2651 = vmatpush1.msra.mxu0 %v2602
    %2652 = vmatprep.subr.mxu0 0.0
    %2653 = vmatpush1.msra.mxu0 %v2603
    %2654 = vmatprep.subr.mxu0 0.0
    %2655 = vmatpush1.msra.mxu0 %v2604
    %2656 = vmatprep.subr.mxu0 0.0
    %2657 = vmatpush1.msra.mxu0 %v2605
    %2658 = vmatprep.subr.mxu0 0.0
    %2659 = vmatpush1.msra.mxu0 %v2606
    %2660 = vmatprep.subr.mxu0 0.0
    %2661 = vmatpush1.msra.mxu0 %v2607
    %2662 = vmatprep.subr.mxu0 0.0
    %2663 = vmatpush1.msra.mxu0 %v2608
    %2664 = vmatprep.subr.mxu0 0.0
    %2665 = vmatpush1.msra.mxu0 %v2609
    %2666 = vmatprep.subr.mxu0 0.0
    %2667 = vmatpush1.msra.mxu0 %v2610
    %2668 = vmatprep.subr.mxu0 0.0
    %2669 = vmatpush1.msra.mxu0 %v2611
    %2670 = vmatprep.subr.mxu0 0.0
    %2671 = vmatpush1.msra.mxu0 %v2612
    %2672 = vmatprep.subr.mxu0 0.0
    %2673 = vmatpush1.msra.mxu0 %v2613
    %2674 = vmatprep.subr.mxu0 0.0
    %2675 = vmatpush1.msra.mxu0 %v2614
    %2676 = vmatprep.subr.mxu0 0.0
    %2677 = vmatpush1.msra.mxu0 %v2615
    %2678 = vmatprep.subr.mxu0 0.0
    %2679 = vmatpush1.msra.mxu0 %v2616
    %2680 = vmatprep.subr.mxu0 0.0
    %2681 = vmatpush1.msra.mxu0 %v2617
    %2682 = vmatprep.subr.mxu0 0.0
    %2683 = vmatpush1.msra.mxu0 %v2618
    %2684 = vmatprep.subr.mxu0 0.0
    %2685 = vmatpush1.msra.mxu0 %v2619
    %2686 = vmatprep.subr.mxu0 0.0
    %2687 = vmatpush1.msra.mxu0 %v2620
    %2688 = vmatprep.subr.mxu0 0.0
    %2689 = vmatpush1.msra.mxu0 %v2621
    %2690 = vmatprep.mubr.f32.mxu0 %v2586
    %2691 = vmatmul.mubr.f32.gmra.mrb[0].mxu0 %v2585
    %v2692 = vpop.f32.mrb[0].mxu0
    %v2693 = vadd.f32 %v2625, %v2692
    %v2694 = vpop.f32.mrb[0].mxu0
    %2695 = vmatprep.mubr.f32.mxu0 %v2588
    %2696 = vmatmul.mubr.f32.gmra.mrb[0].mxu0 %v2587
    %v2697 = vpop.f32.mrb[0].mxu0
    %v2698 = vadd.f32 %v2625, %v2697
    %v2699 = vpop.f32.mrb[0].mxu0
    %2700 = vdwg.mxu0
    %v2701 = vadd.f32 %v2483, %v2693
    %v2702 = vadd.f32 %v2484, %v2698
    %v2703 = vsel %vm95, %v2701, 0.0
    %2704 = vadd.xlane.f32.xlu0 %v2703
    %v2705 = vpop.xlane.xlu0 %2704
    %v2706 = vsel %vm95, %v2702, 0.0
    %2707 = vadd.xlane.f32.xlu0 %v2706
    %v2708 = vpop.xlane.xlu0 %2707
    %v2709 = vmul.f32 %v2705, %v1127
    %v2710 = vmul.f32 %v2708, %v1127
    %v2711 = vsub.f32 %v2701, %v2709
    %v2712 = vsub.f32 %v2702, %v2710
    %v2713 = vmul.f32 %v2711, %v2711
    %v2714 = vmul.f32 %v2712, %v2712
    %v2715 = vsel %vm95, %v2713, 0.0
    %2716 = vadd.xlane.f32.xlu0 %v2715
    %v2717 = vpop.xlane.xlu0 %2716
    %v2718 = vsel %vm95, %v2714, 0.0
    %2719 = vadd.xlane.f32.xlu0 %v2718
    %v2720 = vpop.xlane.xlu0 %2719
    %v2721 = vmul.f32 %v2717, %v1127
    %v2722 = vmul.f32 %v2720, %v1127
    %v2723 = vadd.f32 %v2721, 1e-05
    %v2724 = vadd.f32 %v2722, 1e-05
    %v2725 = vrsqrt.pop %v2723
    %v2726 = vrsqrt.pop %v2724
    %v2727 = vmul.f32 %v2711, %v2725
    %v2728 = vmul.f32 %v2712, %v2726
    %v2729 = vlaneseq
    %v2730 = vshrl.u32 %v2729, 7
    %v2731 = vsub.s32 6, %v2730
    %v2732 = vrot.slane %v1415, %v2731
    %v2733 = vmul.f32 %v2727, %v2732
    %v2734 = vmul.f32 %v2728, %v2732
    %v2735 = vlaneseq
    %v2736 = vshrl.u32 %v2735, 7
    %v2737 = vsub.s32 7, %v2736
    %v2738 = vrot.slane %v1415, %v2737
    %v2739 = vadd.f32 %v2733, %v2738
    %v2740 = vadd.f32 %v2734, %v2738
    %v2741 = vmul.u32 %v55, 8
    %vm2742 = vcmp.ge.s32.totalorder %v58, %v2741
    %v2743 = vadd.s32 %v55, 1
    %v2744 = vmul.u32 %v2743, 8
    %vm2745 = vcmp.lt.s32.totalorder %v58, %v2744
    %vm2746 = vmand %vm2742, %vm2745
    %v2747 = vsel %vm2746, 0.125, 0.0
    %v2749 = vsel %vm271, %v2747, 0
    %2751 = vmatprep.subr.mxu0 0.0
    %2752 = vmatpush1.msra.mxu0 %v2739
    %2753 = vmatprep.subr.mxu0 0.0
    %2754 = vmatpush1.msra.mxu0 %v2740
    %2755 = vmatprep.subr.mxu0 0.0
    %2756 = vmatpush1.msra.mxu0 0.0
    %2757 = vmatprep.subr.mxu0 0.0
    %2758 = vmatpush1.msra.mxu0 0.0
    %2759 = vmatprep.subr.mxu0 0.0
    %2760 = vmatpush1.msra.mxu0 0.0
    %2761 = vmatprep.subr.mxu0 0.0
    %2762 = vmatpush1.msra.mxu0 0.0
    %2763 = vmatprep.subr.mxu0 0.0
    %2764 = vmatpush1.msra.mxu0 0.0
    %2765 = vmatprep.subr.mxu0 0.0
    %2766 = vmatpush1.msra.mxu0 0.0
    %2767 = vmatprep.subr.mxu0 0.0
    %2768 = vmatpush1.msra.mxu0 0.0
    %2769 = vmatprep.subr.mxu0 0.0
    %2770 = vmatpush1.msra.mxu0 0.0
    %2771 = vmatprep.subr.mxu0 0.0
    %2772 = vmatpush1.msra.mxu0 0.0
    %2773 = vmatprep.subr.mxu0 0.0
    %2774 = vmatpush1.msra.mxu0 0.0
    %2775 = vmatprep.subr.mxu0 0.0
    %2776 = vmatpush1.msra.mxu0 0.0
    %2777 = vmatprep.subr.mxu0 0.0
    %2778 = vmatpush1.msra.mxu0 0.0
    %2779 = vmatprep.subr.mxu0 0.0
    %2780 = vmatpush1.msra.mxu0 0.0
    %2781 = vmatprep.subr.mxu0 0.0
    %2782 = vmatpush1.msra.mxu0 0.0
    %2783 = vmatprep.subr.mxu0 0.0
    %2784 = vmatpush1.msra.mxu0 0.0
    %2785 = vmatprep.subr.mxu0 0.0
    %2786 = vmatpush1.msra.mxu0 0.0
    %2787 = vmatprep.subr.mxu0 0.0
    %2788 = vmatpush1.msra.mxu0 0.0
    %2789 = vmatprep.subr.mxu0 0.0
    %2790 = vmatpush1.msra.mxu0 0.0
    %2791 = vmatprep.subr.mxu0 0.0
    %2792 = vmatpush1.msra.mxu0 0.0
    %2793 = vmatprep.subr.mxu0 0.0
    %2794 = vmatpush1.msra.mxu0 0.0
    %2795 = vmatprep.subr.mxu0 0.0
    %2796 = vmatpush1.msra.mxu0 0.0
    %2797 = vmatprep.subr.mxu0 0.0
    %2798 = vmatpush1.msra.mxu0 0.0
    %2799 = vmatprep.subr.mxu0 0.0
    %2800 = vmatpush1.msra.mxu0 0.0
    %2801 = vmatprep.subr.mxu0 0.0
    %2802 = vmatpush1.msra.mxu0 0.0
    %2803 = vmatprep.subr.mxu0 0.0
    %2804 = vmatpush1.msra.mxu0 0.0
    %2805 = vmatprep.subr.mxu0 0.0
    %2806 = vmatpush1.msra.mxu0 0.0
    %2807 = vmatprep.subr.mxu0 0.0
    %2808 = vmatpush1.msra.mxu0 0.0
    %2809 = vmatprep.subr.mxu0 0.0
    %2810 = vmatpush1.msra.mxu0 0.0
    %2811 = vmatprep.subr.mxu0 0.0
    %2812 = vmatpush1.msra.mxu0 0.0
    %2813 = vmatprep.subr.mxu0 0.0
    %2814 = vmatpush1.msra.mxu0 0.0
    %2815 = vmatprep.mubr.f32.mxu0 0.0
    %2816 = vmatmul.mubr.f32.gmra.mrb[0].mxu0 %v2749
    %v2817 = vpop.f32.mrb[0].mxu0
    %v2818 = vadd.f32 0.0, %v2817
    %v2819 = vpop.f32.mrb[0].mxu0
    %2820 = vdwg.mxu0
    %v2821 = vld [vmem:[%s13] sm:$0xff]
    %v2822 = vld [vmem:[%s13 + $0x8] sm:$0xff]
    %v2823 = vld [vmem:[%s2] sm:$0x3]
    %v2824 = vld [vmem:[%s8] sm:$0x3f]
    %v2825 = vld [vmem:[%s8 + $0x8] sm:$0x3f]
    %v2826 = vlaneseq
    %v2827 = vshrl.u32 %v2826, 7
    %v2828 = vsub.s32 0, %v2827
    %v2829 = vrot.slane %v2821, %v2828
    %v2830 = vlaneseq
    %v2831 = vshrl.u32 %v2830, 7
    %v2832 = vsub.s32 0, %v2831
    %v2833 = vrot.slane %v2822, %v2832
    %vm2834 = vcmask 48128
    %v2836 = vsel %vm2834, %v2823, 0
    %vm2838 = vcmask 1045504
    %v2840 = vsel %vm2838, %v2824, 0
    %v2843 = vsel %vm2838, %v2825, 0
    %2845 = vmatprep.subr.mxu0 %v2843
    %2846 = vmatpush1.msra.mxu0 %v2840
    %2847 = vmatprep.subr.mxu0 0.0
    %2848 = vmatpush1.msra.mxu0 0.0
    %2849 = vmatprep.subr.mxu0 0.0
    %2850 = vmatpush1.msra.mxu0 0.0
    %2851 = vmatprep.subr.mxu0 0.0
    %2852 = vmatpush1.msra.mxu0 0.0
    %2853 = vmatprep.subr.mxu0 0.0
    %2854 = vmatpush1.msra.mxu0 0.0
    %2855 = vmatprep.subr.mxu0 0.0
    %2856 = vmatpush1.msra.mxu0 0.0
    %2857 = vmatprep.subr.mxu0 0.0
    %2858 = vmatpush1.msra.mxu0 0.0
    %2859 = vmatprep.subr.mxu0 0.0
    %2860 = vmatpush1.msra.mxu0 0.0
    %2861 = vmatprep.subr.mxu0 0.0
    %2862 = vmatpush1.msra.mxu0 0.0
    %2863 = vmatprep.subr.mxu0 0.0
    %2864 = vmatpush1.msra.mxu0 0.0
    %2865 = vmatprep.subr.mxu0 0.0
    %2866 = vmatpush1.msra.mxu0 0.0
    %2867 = vmatprep.subr.mxu0 0.0
    %2868 = vmatpush1.msra.mxu0 0.0
    %2869 = vmatprep.subr.mxu0 0.0
    %2870 = vmatpush1.msra.mxu0 0.0
    %2871 = vmatprep.subr.mxu0 0.0
    %2872 = vmatpush1.msra.mxu0 0.0
    %2873 = vmatprep.subr.mxu0 0.0
    %2874 = vmatpush1.msra.mxu0 0.0
    %2875 = vmatprep.subr.mxu0 0.0
    %2876 = vmatpush1.msra.mxu0 0.0
    %2877 = vmatprep.subr.mxu0 0.0
    %2878 = vmatpush1.msra.mxu0 0.0
    %2879 = vmatprep.subr.mxu0 0.0
    %2880 = vmatpush1.msra.mxu0 0.0
    %2881 = vmatprep.subr.mxu0 0.0
    %2882 = vmatpush1.msra.mxu0 0.0
    %2883 = vmatprep.subr.mxu0 0.0
    %2884 = vmatpush1.msra.mxu0 0.0
    %2885 = vmatprep.subr.mxu0 0.0
    %2886 = vmatpush1.msra.mxu0 0.0
    %2887 = vmatprep.subr.mxu0 0.0
    %2888 = vmatpush1.msra.mxu0 0.0
    %2889 = vmatprep.subr.mxu0 0.0
    %2890 = vmatpush1.msra.mxu0 0.0
    %2891 = vmatprep.subr.mxu0 0.0
    %2892 = vmatpush1.msra.mxu0 0.0
    %2893 = vmatprep.subr.mxu0 0.0
    %2894 = vmatpush1.msra.mxu0 0.0
    %2895 = vmatprep.subr.mxu0 0.0
    %2896 = vmatpush1.msra.mxu0 0.0
    %2897 = vmatprep.subr.mxu0 0.0
    %2898 = vmatpush1.msra.mxu0 0.0
    %2899 = vmatprep.subr.mxu0 0.0
    %2900 = vmatpush1.msra.mxu0 0.0
    %2901 = vmatprep.subr.mxu0 0.0
    %2902 = vmatpush1.msra.mxu0 0.0
    %2903 = vmatprep.subr.mxu0 0.0
    %2904 = vmatpush1.msra.mxu0 0.0
    %2905 = vmatprep.subr.mxu0 0.0
    %2906 = vmatpush1.msra.mxu0 0.0
    %2907 = vmatprep.subr.mxu0 0.0
    %2908 = vmatpush1.msra.mxu0 0.0
    %2909 = vmatprep.mubr.f32.mxu0 0.0
    %2910 = vmatmul.mubr.f32.gmra.mrb[0].mxu0 %v2836
    %v2911 = vpop.f32.mrb[0].mxu0
    %v2912 = vadd.f32 %v2829, %v2911
    %v2913 = vpop.f32.mrb[0].mxu0
    %v2914 = vadd.f32 %v2833, %v2913
    %2915 = vdwg.mxu0
    %v2916 = vmax.f32 %v2912, 0.0
    %v2917 = vmax.f32 %v2914, 0.0
    %v2918 = vld [vmem:[%s9] sm:$0xff]
    %v2919 = vld [vmem:[%s9 + $0x8] sm:$0xff]
    %v2920 = vld [vmem:[%s9 + $0x10] sm:$0xff]
    %v2921 = vld [vmem:[%s9 + $0x18] sm:$0xff]
    %v2922 = vld [vmem:[%s9 + $0x20] sm:$0xff]
    %v2923 = vld [vmem:[%s9 + $0x28] sm:$0xff]
    %v2924 = vld [vmem:[%s9 + $0x30] sm:$0xff]
    %v2925 = vld [vmem:[%s9 + $0x38] sm:$0xff]
    %v2926 = vld [vmem:[%s9 + $0x40] sm:$0xff]
    %v2927 = vld [vmem:[%s9 + $0x48] sm:$0xff]
    %v2928 = vld [vmem:[%s9 + $0x50] sm:$0xff]
    %v2929 = vld [vmem:[%s9 + $0x58] sm:$0xff]
    %v2930 = vld [vmem:[%s9 + $0x60] sm:$0xff]
    %v2931 = vld [vmem:[%s9 + $0x68] sm:$0xff]
    %v2932 = vld [vmem:[%s9 + $0x70] sm:$0xff]
    %v2933 = vld [vmem:[%s9 + $0x78] sm:$0xff]
    %v2934 = vld [vmem:[%s9 + $0x80] sm:$0xff]
    %v2935 = vld [vmem:[%s9 + $0x88] sm:$0xff]
    %v2936 = vld [vmem:[%s9 + $0x90] sm:$0xff]
    %v2937 = vld [vmem:[%s9 + $0x98] sm:$0xff]
    %v2938 = vld [vmem:[%s9 + $0xa0] sm:$0xff]
    %v2939 = vld [vmem:[%s9 + $0xa8] sm:$0xff]
    %v2940 = vld [vmem:[%s9 + $0xb0] sm:$0xff]
    %v2941 = vld [vmem:[%s9 + $0xb8] sm:$0xff]
    %v2942 = vld [vmem:[%s9 + $0xc0] sm:$0xff]
    %v2943 = vld [vmem:[%s9 + $0xc8] sm:$0xff]
    %v2944 = vld [vmem:[%s9 + $0xd0] sm:$0xff]
    %v2945 = vld [vmem:[%s9 + $0xd8] sm:$0xff]
    %v2946 = vld [vmem:[%s9 + $0xe0] sm:$0xff]
    %v2947 = vld [vmem:[%s9 + $0xe8] sm:$0xff]
    %v2948 = vld [vmem:[%s9 + $0xf0] sm:$0xff]
    %v2949 = vld [vmem:[%s9 + $0xf8] sm:$0xff]
    %v2950 = vlaneseq
    %v2951 = vshrl.u32 %v2950, 7
    %v2952 = vsub.s32 1, %v2951
    %v2953 = vrot.slane %v2821, %v2952
    %2954 = vmatprep.subr.mxu0 0.0
    %2955 = vmatpush1.msra.mxu0 %v2918
    %2956 = vmatprep.subr.mxu0 0.0
    %2957 = vmatpush1.msra.mxu0 %v2919
    %2958 = vmatprep.subr.mxu0 0.0
    %2959 = vmatpush1.msra.mxu0 %v2920
    %2960 = vmatprep.subr.mxu0 0.0
    %2961 = vmatpush1.msra.mxu0 %v2921
    %2962 = vmatprep.subr.mxu0 0.0
    %2963 = vmatpush1.msra.mxu0 %v2922
    %2964 = vmatprep.subr.mxu0 0.0
    %2965 = vmatpush1.msra.mxu0 %v2923
    %2966 = vmatprep.subr.mxu0 0.0
    %2967 = vmatpush1.msra.mxu0 %v2924
    %2968 = vmatprep.subr.mxu0 0.0
    %2969 = vmatpush1.msra.mxu0 %v2925
    %2970 = vmatprep.subr.mxu0 0.0
    %2971 = vmatpush1.msra.mxu0 %v2926
    %2972 = vmatprep.subr.mxu0 0.0
    %2973 = vmatpush1.msra.mxu0 %v2927
    %2974 = vmatprep.subr.mxu0 0.0
    %2975 = vmatpush1.msra.mxu0 %v2928
    %2976 = vmatprep.subr.mxu0 0.0
    %2977 = vmatpush1.msra.mxu0 %v2929
    %2978 = vmatprep.subr.mxu0 0.0
    %2979 = vmatpush1.msra.mxu0 %v2930
    %2980 = vmatprep.subr.mxu0 0.0
    %2981 = vmatpush1.msra.mxu0 %v2931
    %2982 = vmatprep.subr.mxu0 0.0
    %2983 = vmatpush1.msra.mxu0 %v2932
    %2984 = vmatprep.subr.mxu0 0.0
    %2985 = vmatpush1.msra.mxu0 %v2933
    %2986 = vmatprep.subr.mxu0 0.0
    %2987 = vmatpush1.msra.mxu0 %v2934
    %2988 = vmatprep.subr.mxu0 0.0
    %2989 = vmatpush1.msra.mxu0 %v2935
    %2990 = vmatprep.subr.mxu0 0.0
    %2991 = vmatpush1.msra.mxu0 %v2936
    %2992 = vmatprep.subr.mxu0 0.0
    %2993 = vmatpush1.msra.mxu0 %v2937
    %2994 = vmatprep.subr.mxu0 0.0
    %2995 = vmatpush1.msra.mxu0 %v2938
    %2996 = vmatprep.subr.mxu0 0.0
    %2997 = vmatpush1.msra.mxu0 %v2939
    %2998 = vmatprep.subr.mxu0 0.0
    %2999 = vmatpush1.msra.mxu0 %v2940
    %3000 = vmatprep.subr.mxu0 0.0
    %3001 = vmatpush1.msra.mxu0 %v2941
    %3002 = vmatprep.subr.mxu0 0.0
    %3003 = vmatpush1.msra.mxu0 %v2942
    %3004 = vmatprep.subr.mxu0 0.0
    %3005 = vmatpush1.msra.mxu0 %v2943
    %3006 = vmatprep.subr.mxu0 0.0
    %3007 = vmatpush1.msra.mxu0 %v2944
    %3008 = vmatprep.subr.mxu0 0.0
    %3009 = vmatpush1.msra.mxu0 %v2945
    %3010 = vmatprep.subr.mxu0 0.0
    %3011 = vmatpush1.msra.mxu0 %v2946
    %3012 = vmatprep.subr.mxu0 0.0
    %3013 = vmatpush1.msra.mxu0 %v2947
    %3014 = vmatprep.subr.mxu0 0.0
    %3015 = vmatpush1.msra.mxu0 %v2948
    %3016 = vmatprep.subr.mxu0 0.0
    %3017 = vmatpush1.msra.mxu0 %v2949
    %3018 = vmatprep.mubr.f32.mxu0 %v2917
    %3019 = vmatmul.mubr.f32.gmra.mrb[0].mxu0 %v2916
    %v3020 = vpop.f32.mrb[0].mxu0
    %v3021 = vadd.f32 %v2953, %v3020
    %v3022 = vpop.f32.mrb[0].mxu0
    %3023 = vdwg.mxu0
    %v3024 = vld [vmem:[%s10] sm:$0xff]
    %v3025 = vld [vmem:[%s10 + $0x8] sm:$0xff]
    %v3026 = vld [vmem:[%s10 + $0x10] sm:$0xff]
    %v3027 = vld [vmem:[%s10 + $0x18] sm:$0xff]
    %v3028 = vld [vmem:[%s10 + $0x20] sm:$0xff]
    %v3029 = vld [vmem:[%s10 + $0x28] sm:$0xff]
    %v3030 = vld [vmem:[%s10 + $0x30] sm:$0xff]
    %v3031 = vld [vmem:[%s10 + $0x38] sm:$0xff]
    %v3032 = vld [vmem:[%s11] sm:$0xff]
    %v3033 = vld [vmem:[%s11 + $0x8] sm:$0xff]
    %v3034 = vld [vmem:[%s11 + $0x10] sm:$0xff]
    %v3035 = vld [vmem:[%s11 + $0x18] sm:$0xff]
    %v3036 = vld [vmem:[%s11 + $0x20] sm:$0xff]
    %v3037 = vld [vmem:[%s11 + $0x28] sm:$0xff]
    %v3038 = vld [vmem:[%s11 + $0x30] sm:$0xff]
    %v3039 = vld [vmem:[%s11 + $0x38] sm:$0xff]
    %v3041 = vsel %vm95, %v3021, 0
    %3043 = vmatprep.subr.mxu0 %v3033
    %3044 = vmatpush1.msra.mxu0 %v3032
    %3045 = vmatprep.subr.mxu0 %v3035
    %3046 = vmatpush1.msra.mxu0 %v3034
    %3047 = vmatprep.subr.mxu0 %v3037
    %3048 = vmatpush1.msra.mxu0 %v3036
    %3049 = vmatprep.subr.mxu0 %v3039
    %3050 = vmatpush1.msra.mxu0 %v3038
    %3051 = vmatprep.subr.mxu0 0.0
    %3052 = vmatpush1.msra.mxu0 0.0
    %3053 = vmatprep.subr.mxu0 0.0
    %3054 = vmatpush1.msra.mxu0 0.0
    %3055 = vmatprep.subr.mxu0 0.0
    %3056 = vmatpush1.msra.mxu0 0.0
    %3057 = vmatprep.subr.mxu0 0.0
    %3058 = vmatpush1.msra.mxu0 0.0
    %3059 = vmatprep.subr.mxu0 0.0
    %3060 = vmatpush1.msra.mxu0 0.0
    %3061 = vmatprep.subr.mxu0 0.0
    %3062 = vmatpush1.msra.mxu0 0.0
    %3063 = vmatprep.subr.mxu0 0.0
    %3064 = vmatpush1.msra.mxu0 0.0
    %3065 = vmatprep.subr.mxu0 0.0
    %3066 = vmatpush1.msra.mxu0 0.0
    %3067 = vmatprep.subr.mxu0 0.0
    %3068 = vmatpush1.msra.mxu0 0.0
    %3069 = vmatprep.subr.mxu0 0.0
    %3070 = vmatpush1.msra.mxu0 0.0
    %3071 = vmatprep.subr.mxu0 0.0
    %3072 = vmatpush1.msra.mxu0 0.0
    %3073 = vmatprep.subr.mxu0 0.0
    %3074 = vmatpush1.msra.mxu0 0.0
    %3075 = vmatprep.subr.mxu0 0.0
    %3076 = vmatpush1.msra.mxu0 0.0
    %3077 = vmatprep.subr.mxu0 0.0
    %3078 = vmatpush1.msra.mxu0 0.0
    %3079 = vmatprep.subr.mxu0 0.0
    %3080 = vmatpush1.msra.mxu0 0.0
    %3081 = vmatprep.subr.mxu0 0.0
    %3082 = vmatpush1.msra.mxu0 0.0
    %3083 = vmatprep.subr.mxu0 0.0
    %3084 = vmatpush1.msra.mxu0 0.0
    %3085 = vmatprep.subr.mxu0 0.0
    %3086 = vmatpush1.msra.mxu0 0.0
    %3087 = vmatprep.subr.mxu0 0.0
    %3088 = vmatpush1.msra.mxu0 0.0
    %3089 = vmatprep.subr.mxu0 0.0
    %3090 = vmatpush1.msra.mxu0 0.0
    %3091 = vmatprep.subr.mxu0 0.0
    %3092 = vmatpush1.msra.mxu0 0.0
    %3093 = vmatprep.subr.mxu0 0.0
    %3094 = vmatpush1.msra.mxu0 0.0
    %3095 = vmatprep.subr.mxu0 0.0
    %3096 = vmatpush1.msra.mxu0 0.0
    %3097 = vmatprep.subr.mxu0 0.0
    %3098 = vmatpush1.msra.mxu0 0.0
    %3099 = vmatprep.subr.mxu0 0.0
    %3100 = vmatpush1.msra.mxu0 0.0
    %3101 = vmatprep.subr.mxu0 0.0
    %3102 = vmatpush1.msra.mxu0 0.0
    %3103 = vmatprep.subr.mxu0 0.0
    %3104 = vmatpush1.msra.mxu0 0.0
    %3105 = vmatprep.subr.mxu0 0.0
    %3106 = vmatpush1.msra.mxu0 0.0
    %3107 = vmatprep.mubr.f32.mxu0 0.0
    %3108 = vmatmul.mubr.f32.gmra.mrb[0].mxu0 %v3041
    %v3109 = vpop.f32.mrb[0].mxu0
    %v3110 = vadd.f32 0.0, %v3109
    %v3111 = vpop.f32.mrb[0].mxu0
    %v3112 = vadd.f32 0.0, %v3111
    %3113 = vdwg.mxu0
    %v3115 = vsel %vm95, %v2818, 0
    %3117 = vmatprep.subr.mxu0 %v3025
    %3118 = vmatpush1.msra.mxu0 %v3024
    %3119 = vmatprep.subr.mxu0 %v3027
    %3120 = vmatpush1.msra.mxu0 %v3026
    %3121 = vmatprep.subr.mxu0 %v3029
    %3122 = vmatpush1.msra.mxu0 %v3028
    %3123 = vmatprep.subr.mxu0 %v3031
    %3124 = vmatpush1.msra.mxu0 %v3030
    %3125 = vmatprep.subr.mxu0 0.0
    %3126 = vmatpush1.msra.mxu0 0.0
    %3127 = vmatprep.subr.mxu0 0.0
    %3128 = vmatpush1.msra.mxu0 0.0
    %3129 = vmatprep.subr.mxu0 0.0
    %3130 = vmatpush1.msra.mxu0 0.0
    %3131 = vmatprep.subr.mxu0 0.0
    %3132 = vmatpush1.msra.mxu0 0.0
    %3133 = vmatprep.subr.mxu0 0.0
    %3134 = vmatpush1.msra.mxu0 0.0
    %3135 = vmatprep.subr.mxu0 0.0
    %3136 = vmatpush1.msra.mxu0 0.0
    %3137 = vmatprep.subr.mxu0 0.0
    %3138 = vmatpush1.msra.mxu0 0.0
    %3139 = vmatprep.subr.mxu0 0.0
    %3140 = vmatpush1.msra.mxu0 0.0
    %3141 = vmatprep.subr.mxu0 0.0
    %3142 = vmatpush1.msra.mxu0 0.0
    %3143 = vmatprep.subr.mxu0 0.0
    %3144 = vmatpush1.msra.mxu0 0.0
    %3145 = vmatprep.subr.mxu0 0.0
    %3146 = vmatpush1.msra.mxu0 0.0
    %3147 = vmatprep.subr.mxu0 0.0
    %3148 = vmatpush1.msra.mxu0 0.0
    %3149 = vmatprep.subr.mxu0 0.0
    %3150 = vmatpush1.msra.mxu0 0.0
    %3151 = vmatprep.subr.mxu0 0.0
    %3152 = vmatpush1.msra.mxu0 0.0
    %3153 = vmatprep.subr.mxu0 0.0
    %3154 = vmatpush1.msra.mxu0 0.0
    %3155 = vmatprep.subr.mxu0 0.0
    %3156 = vmatpush1.msra.mxu0 0.0
    %3157 = vmatprep.subr.mxu0 0.0
    %3158 = vmatpush1.msra.mxu0 0.0
    %3159 = vmatprep.subr.mxu0 0.0
    %3160 = vmatpush1.msra.mxu0 0.0
    %3161 = vmatprep.subr.mxu0 0.0
    %3162 = vmatpush1.msra.mxu0 0.0
    %3163 = vmatprep.subr.mxu0 0.0
    %3164 = vmatpush1.msra.mxu0 0.0
    %3165 = vmatprep.subr.mxu0 0.0
    %3166 = vmatpush1.msra.mxu0 0.0
    %3167 = vmatprep.subr.mxu0 0.0
    %3168 = vmatpush1.msra.mxu0 0.0
    %3169 = vmatprep.subr.mxu0 0.0
    %3170 = vmatpush1.msra.mxu0 0.0
    %3171 = vmatprep.subr.mxu0 0.0
    %3172 = vmatpush1.msra.mxu0 0.0
    %3173 = vmatprep.subr.mxu0 0.0
    %3174 = vmatpush1.msra.mxu0 0.0
    %3175 = vmatprep.subr.mxu0 0.0
    %3176 = vmatpush1.msra.mxu0 0.0
    %3177 = vmatprep.subr.mxu0 0.0
    %3178 = vmatpush1.msra.mxu0 0.0
    %3179 = vmatprep.subr.mxu0 0.0
    %3180 = vmatpush1.msra.mxu0 0.0
    %3181 = vmatprep.mubr.f32.mxu0 0.0
    %3182 = vmatmul.mubr.f32.gmra.mrb[0].mxu0 %v3115
    %v3183 = vpop.f32.mrb[0].mxu0
    %v3184 = vadd.f32 %v3110, %v3183
    %v3185 = vpop.f32.mrb[0].mxu0
    %v3186 = vadd.f32 %v3112, %v3185
    %3187 = vdwg.mxu0
    %v3188 = vlaneseq
    %v3189 = vshrl.u32 %v3188, 7
    %v3190 = vsub.s32 2, %v3189
    %v3191 = vrot.slane %v2821, %v3190
    %v3192 = vlaneseq
    %v3193 = vshrl.u32 %v3192, 7
    %v3194 = vsub.s32 2, %v3193
    %v3195 = vrot.slane %v2822, %v3194
    %v3196 = vadd.f32 %v3184, %v3191
    %v3197 = vadd.f32 %v3186, %v3195
    %v3198 = vmax.f32 %v3196, 0.0
    %v3199 = vmax.f32 %v3197, 0.0
    %v3200 = vld [vmem:[%s12] sm:$0xff]
    %v3201 = vld [vmem:[%s12 + $0x8] sm:$0xff]
    %v3202 = vld [vmem:[%s12 + $0x10] sm:$0xff]
    %v3203 = vld [vmem:[%s12 + $0x18] sm:$0xff]
    %v3204 = vld [vmem:[%s12 + $0x20] sm:$0xff]
    %v3205 = vld [vmem:[%s12 + $0x28] sm:$0xff]
    %v3206 = vld [vmem:[%s12 + $0x30] sm:$0xff]
    %v3207 = vld [vmem:[%s12 + $0x38] sm:$0xff]
    %v3208 = vld [vmem:[%s12 + $0x40] sm:$0xff]
    %v3209 = vld [vmem:[%s12 + $0x48] sm:$0xff]
    %v3210 = vld [vmem:[%s12 + $0x50] sm:$0xff]
    %v3211 = vld [vmem:[%s12 + $0x58] sm:$0xff]
    %v3212 = vld [vmem:[%s12 + $0x60] sm:$0xff]
    %v3213 = vld [vmem:[%s12 + $0x68] sm:$0xff]
    %v3214 = vld [vmem:[%s12 + $0x70] sm:$0xff]
    %v3215 = vld [vmem:[%s12 + $0x78] sm:$0xff]
    %v3216 = vld [vmem:[%s12 + $0x80] sm:$0xff]
    %v3217 = vld [vmem:[%s12 + $0x88] sm:$0xff]
    %v3218 = vld [vmem:[%s12 + $0x90] sm:$0xff]
    %v3219 = vld [vmem:[%s12 + $0x98] sm:$0xff]
    %v3220 = vld [vmem:[%s12 + $0xa0] sm:$0xff]
    %v3221 = vld [vmem:[%s12 + $0xa8] sm:$0xff]
    %v3222 = vld [vmem:[%s12 + $0xb0] sm:$0xff]
    %v3223 = vld [vmem:[%s12 + $0xb8] sm:$0xff]
    %v3224 = vld [vmem:[%s12 + $0xc0] sm:$0xff]
    %v3225 = vld [vmem:[%s12 + $0xc8] sm:$0xff]
    %v3226 = vld [vmem:[%s12 + $0xd0] sm:$0xff]
    %v3227 = vld [vmem:[%s12 + $0xd8] sm:$0xff]
    %v3228 = vld [vmem:[%s12 + $0xe0] sm:$0xff]
    %v3229 = vld [vmem:[%s12 + $0xe8] sm:$0xff]
    %v3230 = vld [vmem:[%s12 + $0xf0] sm:$0xff]
    %v3231 = vld [vmem:[%s12 + $0xf8] sm:$0xff]
    %v3232 = vlaneseq
    %v3233 = vshrl.u32 %v3232, 7
    %v3234 = vsub.s32 3, %v3233
    %v3235 = vrot.slane %v2821, %v3234
    %3236 = vmatprep.subr.mxu0 0.0
    %3237 = vmatpush1.msra.mxu0 %v3200
    %3238 = vmatprep.subr.mxu0 0.0
    %3239 = vmatpush1.msra.mxu0 %v3201
    %3240 = vmatprep.subr.mxu0 0.0
    %3241 = vmatpush1.msra.mxu0 %v3202
    %3242 = vmatprep.subr.mxu0 0.0
    %3243 = vmatpush1.msra.mxu0 %v3203
    %3244 = vmatprep.subr.mxu0 0.0
    %3245 = vmatpush1.msra.mxu0 %v3204
    %3246 = vmatprep.subr.mxu0 0.0
    %3247 = vmatpush1.msra.mxu0 %v3205
    %3248 = vmatprep.subr.mxu0 0.0
    %3249 = vmatpush1.msra.mxu0 %v3206
    %3250 = vmatprep.subr.mxu0 0.0
    %3251 = vmatpush1.msra.mxu0 %v3207
    %3252 = vmatprep.subr.mxu0 0.0
    %3253 = vmatpush1.msra.mxu0 %v3208
    %3254 = vmatprep.subr.mxu0 0.0
    %3255 = vmatpush1.msra.mxu0 %v3209
    %3256 = vmatprep.subr.mxu0 0.0
    %3257 = vmatpush1.msra.mxu0 %v3210
    %3258 = vmatprep.subr.mxu0 0.0
    %3259 = vmatpush1.msra.mxu0 %v3211
    %3260 = vmatprep.subr.mxu0 0.0
    %3261 = vmatpush1.msra.mxu0 %v3212
    %3262 = vmatprep.subr.mxu0 0.0
    %3263 = vmatpush1.msra.mxu0 %v3213
    %3264 = vmatprep.subr.mxu0 0.0
    %3265 = vmatpush1.msra.mxu0 %v3214
    %3266 = vmatprep.subr.mxu0 0.0
    %3267 = vmatpush1.msra.mxu0 %v3215
    %3268 = vmatprep.subr.mxu0 0.0
    %3269 = vmatpush1.msra.mxu0 %v3216
    %3270 = vmatprep.subr.mxu0 0.0
    %3271 = vmatpush1.msra.mxu0 %v3217
    %3272 = vmatprep.subr.mxu0 0.0
    %3273 = vmatpush1.msra.mxu0 %v3218
    %3274 = vmatprep.subr.mxu0 0.0
    %3275 = vmatpush1.msra.mxu0 %v3219
    %3276 = vmatprep.subr.mxu0 0.0
    %3277 = vmatpush1.msra.mxu0 %v3220
    %3278 = vmatprep.subr.mxu0 0.0
    %3279 = vmatpush1.msra.mxu0 %v3221
    %3280 = vmatprep.subr.mxu0 0.0
    %3281 = vmatpush1.msra.mxu0 %v3222
    %3282 = vmatprep.subr.mxu0 0.0
    %3283 = vmatpush1.msra.mxu0 %v3223
    %3284 = vmatprep.subr.mxu0 0.0
    %3285 = vmatpush1.msra.mxu0 %v3224
    %3286 = vmatprep.subr.mxu0 0.0
    %3287 = vmatpush1.msra.mxu0 %v3225
    %3288 = vmatprep.subr.mxu0 0.0
    %3289 = vmatpush1.msra.mxu0 %v3226
    %3290 = vmatprep.subr.mxu0 0.0
    %3291 = vmatpush1.msra.mxu0 %v3227
    %3292 = vmatprep.subr.mxu0 0.0
    %3293 = vmatpush1.msra.mxu0 %v3228
    %3294 = vmatprep.subr.mxu0 0.0
    %3295 = vmatpush1.msra.mxu0 %v3229
    %3296 = vmatprep.subr.mxu0 0.0
    %3297 = vmatpush1.msra.mxu0 %v3230
    %3298 = vmatprep.subr.mxu0 0.0
    %3299 = vmatpush1.msra.mxu0 %v3231
    %3300 = vmatprep.mubr.f32.mxu0 %v3199
    %3301 = vmatmul.mubr.f32.gmra.mrb[0].mxu0 %v3198
    %v3302 = vpop.f32.mrb[0].mxu0
    %v3303 = vadd.f32 %v3235, %v3302
    %v3304 = vpop.f32.mrb[0].mxu0
    %3305 = vdwg.mxu0
    %3306 = vst [vmem:[#allocation3] sm:$0x3] %v3303
    // Predicated region
    $region58: #{tpu_custom_call.1} parent=1 // pred_check
      _
    $region59: #{tpu_custom_call.1} parent=1 // pred_check_branch
      %3308 = sbr.rel (0) target = $region61
    $region60: #{tpu_custom_call.1} parent=1 // pred_region
      %s3310 = ssub.s32 32, 32
      %3311 = vsyncadd [#allocation4], %s3310
      %s3313 = sshll.u32 [#allocation3], 4
      %s3314 = int_to_ptr.vmem [resolvable:$true] %s3313
      %3316 = dma.vmem_to_hbm [thread:$0]  %s3314, 32, %s14, [#allocation4]
    $region61: #{tpu_custom_call.1} parent=1 // pred_fallthru
      _
    // Predicated region
    $region62: #{tpu_custom_call.1} parent=1 // pred_check
      _
    $region63: #{tpu_custom_call.1} parent=1 // pred_check_branch
      %3318 = sbr.rel (0) target = $region65
    $region64: #{tpu_custom_call.1} parent=1 // pred_region
      %3319 = dma.done [#allocation4], 32
    $region65: #{tpu_custom_call.1} parent=1 // pred_fallthru
      _
    %3320 = vsyncpa [#allocation4], 1

</llo_original>
